<compile_context>
chip_gen: v7x
topology: tpu7x:2x2x1
jax: 0.10.0
libtpu: 0.0.40
codegen_flags: <defaults>
</compile_context>

<pallas_src>
import functools

import numpy as np

import jax
import jax.numpy as jnp
from jax import lax
from jax.experimental import pallas as pl
from jax.experimental.pallas import tpu as pltpu


# ---------------------------------------------------------------------------
# Fused LeNet-5 forward kernel (one batch tile of `tile` samples per grid step)
# ---------------------------------------------------------------------------
def _lenet5_kernel(x_ref, a1_ref, b1_ref, a2_ref, b2_ref, w1f_ref, bf1_ref,
                   w2_ref, bf2_ref, w3_ref, bf3_ref, out_ref, *, tile):
    T = tile
    f32, bf16 = jnp.float32, jnp.bfloat16

    # Input tile (already bf16, cast once on the host):
    #   rows = y*T + t (y in [0,32) padded coords), lanes = x in [0,32).
    x2d = x_ref[0]                                            # (32*T, 32) bf16

    # ---- conv1 + bias + ReLU as ONE wide-K matmul (K = 5*32 = 160):
    #   lanes of lhs1 = kh*32 + x_in ; output lanes = x_out*6 + c.
    lhs1 = jnp.concatenate(
        [x2d[kh * T:(kh + 28) * T, :] for kh in range(5)], axis=1)   # (28T, 160)
    c1 = jnp.dot(lhs1, a1_ref[...], preferred_element_type=f32) + b1_ref[...]
    c1 = jnp.maximum(c1, 0.0)                                 # (28*T, 168) f32

    # ---- maxpool1 pair-maxes (stride-2 column selection folded into a2)
    mx = jnp.maximum(c1[:, :162], c1[:, 6:])                  # x-pairs, (28T, 162)
    mr = mx.reshape(14, 2 * T, 162)
    p1 = jnp.maximum(mr[:, :T, :], mr[:, T:, :]).reshape(14 * T, 162)
    p1 = p1.astype(bf16)                                      # cast once

    # ---- conv2 + bias + ReLU as ONE wide-K matmul (K = 5*162 = 810):
    #   lanes of lhs2 = kh*162 + (p*6 + c) ; output lanes = x_out*16 + o.
    lhs2 = jnp.concatenate(
        [p1[kh * T:(kh + 10) * T, :] for kh in range(5)], axis=1)    # (10T, 810)
    c2 = jnp.dot(lhs2, a2_ref[...], preferred_element_type=f32) + b2_ref[...]
    c2 = jnp.maximum(c2, 0.0)                                 # (10*T, 160) f32

    # ---- maxpool2 pair-maxes (stride-2 selection + NCHW flatten folded into w1f)
    mx2 = jnp.maximum(c2[:, :144], c2[:, 16:])                # (10T, 144)
    mr2 = mx2.reshape(5, 2 * T, 144)
    p2 = jnp.maximum(mr2[:, :T, :], mr2[:, T:, :]).astype(bf16)      # (5, T, 144)

    # ---- fc1 + ReLU (bias fused into the first partial product; out padded
    #      120 -> 128 lanes with zeros)
    acc = jnp.dot(p2[0], w1f_ref[0], preferred_element_type=f32) + bf1_ref[...]
    for i in range(1, 5):
        acc = acc + jnp.dot(p2[i], w1f_ref[i], preferred_element_type=f32)
    y = jnp.maximum(acc, 0.0)                                 # (T, 128) f32

    # ---- fc2 + ReLU, fc3 (128-lane padded; real fc3 output lives in lane 0)
    y = jnp.maximum(jnp.dot(y.astype(bf16), w2_ref[...],
                            preferred_element_type=f32) + bf2_ref[...], 0.0)
    y = jnp.dot(y.astype(bf16), w3_ref[...],
                preferred_element_type=f32) + bf3_ref[...]

    out_ref[...] = y                                          # dense (T, 128) store


def _full_spec(shape):
    ndim = len(shape)
    return pl.BlockSpec(shape, lambda g: (0,) * ndim)


def _choose_tile(n, tile):
    """Multiple of 16 (bf16 sublane packing), <= padded batch, keep G>=2 if possible."""
    def r16(v):
        return max(16, (v // 16) * 16)
    t = r16(tile)
    n16 = ((n + 15) // 16) * 16
    t = min(t, n16)
    # v7x has 2 TensorCores: keep at least 2 "parallel" grid steps when batch allows.
    if n16 >= 32 and t > n16 // 2:
        t = r16(n16 // 2)
    return t


def lenet5_forward(x_nchw, ops, *, tile=128):
    """Fused LeNet-5 forward. x_nchw: (N, 1, 28, 28) f32 -> (N,) f32."""
    N = x_nchw.shape[0]
    T = _choose_tile(N, tile)
    n_pad = ((N + T - 1) // T) * T
    G = n_pad // T

    # Host-side plumbing on the raw input only: bf16 cast FIRST (halves the
    # relayout and the kernel DMA), spatial pad 28->32 (conv1 padding=2), pad
    # batch to a tile multiple, interleave rows as (tile_idx, y*T + t, x).
    # TODO(synk): the 32-wide minor dim still pads to 128 lanes in the tiled
    # HBM layout (4x DMA bytes); repack 4 rows per 128-lane row if input DMA
    # ever shows up on the critical path.
    xb = x_nchw[:, 0].astype(jnp.bfloat16)
    xp = jnp.pad(xb, ((0, n_pad - N), (2, 2), (2, 2)))                # (n_pad,32,32)
    xp = xp.reshape(G, T, 32, 32).transpose(0, 2, 1, 3).reshape(G, 32 * T, 32)

    out = pl.pallas_call(
        functools.partial(_lenet5_kernel, tile=T),
        out_shape=jax.ShapeDtypeStruct((n_pad, 128), jnp.float32),
        grid=(G,),
        in_specs=[
            pl.BlockSpec((1, 32 * T, 32), lambda g: (g, 0, 0)),
            _full_spec(ops["a1"].shape), _full_spec(ops["b1t"].shape),
            _full_spec(ops["a2"].shape), _full_spec(ops["b2t"].shape),
            _full_spec(ops["w1f"].shape), _full_spec(ops["bf1"].shape),
            _full_spec(ops["w2p"].shape), _full_spec(ops["bf2"].shape),
            _full_spec(ops["w3p"].shape), _full_spec(ops["bf3"].shape),
        ],
        out_specs=pl.BlockSpec((T, 128), lambda g: (g, 0)),
        compiler_params=pltpu.CompilerParams(
            dimension_semantics=("parallel",),
            vmem_limit_bytes=48 * 1024 * 1024),
    )(xp, ops["a1"], ops["b1t"], ops["a2"], ops["b2t"],
      ops["w1f"], ops["bf1"], ops["w2p"], ops["bf2"], ops["w3p"], ops["bf3"])

    # fc3's real output is lane 0 of the 128-wide padded block.
    return out[:N, 0]


# ---------------------------------------------------------------------------
# One-time weight folding (all layout/selection work moved to init)
# ---------------------------------------------------------------------------
def prepare_weights(params):
    f32, bf16 = jnp.float32, jnp.bfloat16
    w1, b1 = params["w1"], params["b1"]            # (6,1,5,5), (6,)
    w2, b2 = params["w2"], params["b2"]            # (16,6,5,5), (16,)
    fc1_w, fc1_b = params["fc1_w"], params["fc1_b"]
    fc2_w, fc2_b = params["fc2_w"], params["fc2_b"]
    fc3_w, fc3_b = params["fc3_w"], params["fc3_b"]

    # conv1 merged banded matrix:
    #   a1[kh*32 + x_in, x_out*6 + c] = w1[c,0,kh,x_in-x_out]  (0 <= x_in-x_out < 5)
    shift1 = (jnp.arange(32)[None, :, None] ==
              jnp.arange(28)[None, None, :] + jnp.arange(5)[:, None, None]
              ).astype(f32)                                    # (kw, 32, 28)
    a1 = jnp.einsum("spx,cks->kpxc", shift1, w1[:, 0])         # (5,32,28,6)
    a1 = a1.reshape(5 * 32, 28 * 6).astype(bf16)               # (160, 168)
    b1t = jnp.tile(b1, 28).reshape(1, 168).astype(f32)

    # conv2 merged banded matrix with pool1's even-column selection folded in:
    #   a2[kh*162 + p*6 + c, x_out*16 + o] = w2[o,c,kh,kw] iff p == 2*(x_out+kw)
    shift2 = (jnp.arange(27)[None, :, None] ==
              2 * (jnp.arange(10)[None, None, :] + jnp.arange(5)[:, None, None])
              ).astype(f32)                                    # (kw, 27, 10)
    a2 = jnp.einsum("spx,ocks->kpcxo", shift2, w2)             # (5,27,6,10,16)
    a2 = a2.reshape(5 * 27 * 6, 10 * 16).astype(bf16)          # (810, 160)
    b2t = jnp.tile(b2, 10).reshape(1, 160).astype(f32)

    # fc1 with pool2's even-column selection and the torch NCHW flatten folded in:
    #   w1f[i][p*16 + o, k] = fc1_w[k, o*25 + i*5 + j] iff p == 2*j ; pad 120 -> 128
    sel3 = (jnp.arange(9)[:, None] == 2 * jnp.arange(5)[None, :]).astype(f32)
    fc1w_r = fc1_w.reshape(120, 16, 5, 5)                      # (k, o, i, j)
    w1f = jnp.einsum("xj,koij->ixok", sel3, fc1w_r)            # (5,9,16,120)
    w1f = jnp.pad(w1f.reshape(5, 144, 120), ((0, 0), (0, 0), (0, 8))).astype(bf16)
    bf1 = jnp.pad(fc1_b, (0, 8)).reshape(1, 128).astype(f32)

    # fc2 / fc3 padded to 128-lane-wide matmuls (zero pads, exact).
    w2p = jnp.zeros((128, 128), f32).at[:120, :84].set(fc2_w.T).astype(bf16)
    bf2 = jnp.pad(fc2_b, (0, 44)).reshape(1, 128).astype(f32)
    w3p = jnp.zeros((128, 128), f32).at[:84, 0].set(fc3_w[0]).astype(bf16)
    bf3 = jnp.zeros((1, 128), f32).at[0, 0].set(fc3_b[0])

    return dict(a1=a1, b1t=b1t, a2=a2, b2t=b2t, w1f=w1f, bf1=bf1,
                w2p=w2p, bf2=bf2, w3p=w3p, bf3=bf3)


def init_params(key):
    ks = jax.random.split(key, 10)
    f32 = jnp.float32
    p = {}
    p["w1"] = 0.1 * jax.random.normal(ks[0], (6, 1, 5, 5), f32)
    p["b1"] = 0.1 * jax.random.normal(ks[1], (6,), f32)
    p["w2"] = 0.1 * jax.random.normal(ks[2], (16, 6, 5, 5), f32)
    p["b2"] = 0.1 * jax.random.normal(ks[3], (16,), f32)
    p["fc1_w"] = 0.05 * jax.random.normal(ks[4], (120, 400), f32)
    p["fc1_b"] = 0.05 * jax.random.normal(ks[5], (120,), f32)
    p["fc2_w"] = 0.05 * jax.random.normal(ks[6], (84, 120), f32)
    p["fc2_b"] = 0.05 * jax.random.normal(ks[7], (84,), f32)
    p["fc3_w"] = 0.05 * jax.random.normal(ks[8], (1, 84), f32)
    p["fc3_b"] = 0.05 * jax.random.normal(ks[9], (1,), f32)
    return p


# ---------------------------------------------------------------------------
# Pure-JAX reference (mirrors the PyTorch module) for a numeric sanity check
# ---------------------------------------------------------------------------
def lenet5_reference(x, params):
    dn = ("NCHW", "OIHW", "NCHW")
    y = lax.conv_general_dilated(x, params["w1"], (1, 1), ((2, 2), (2, 2)),
                                 dimension_numbers=dn)
    y = jax.nn.relu(y + params["b1"][None, :, None, None])
    y = lax.reduce_window(y, -jnp.inf, lax.max, (1, 1, 2, 2), (1, 1, 2, 2), "VALID")
    y = lax.conv_general_dilated(y, params["w2"], (1, 1), ((0, 0), (0, 0)),
                                 dimension_numbers=dn)
    y = jax.nn.relu(y + params["b2"][None, :, None, None])
    y = lax.reduce_window(y, -jnp.inf, lax.max, (1, 1, 2, 2), (1, 1, 2, 2), "VALID")
    y = y.reshape(y.shape[0], 16 * 5 * 5)
    y = jax.nn.relu(y @ params["fc1_w"].T + params["fc1_b"])
    y = jax.nn.relu(y @ params["fc2_w"].T + params["fc2_b"])
    y = y @ params["fc3_w"].T + params["fc3_b"]
    return jnp.squeeze(y, -1)


if __name__ == "__main__":
    key = jax.random.PRNGKey(0)
    k_x, k_x2, k_p = jax.random.split(key, 3)
    # Input spatial size 28x28 is implied by the 16*5*5 flatten in forward().
    x = jax.random.normal(k_x, (2, 1, 28, 28), jnp.float32)
    params = init_params(k_p)

    ops = prepare_weights(params)          # one-time folding at init
    fwd = jax.jit(lenet5_forward)

    out = jax.block_until_ready(fwd(x, ops))
    assert out.shape == (2,), out.shape
    ref = lenet5_reference(x, params)
    np.testing.assert_allclose(np.asarray(out), np.asarray(ref),
                               rtol=5e-2, atol=3e-2)

    # Exercise the multi-step (G >= 2) tiled path with a slightly larger batch.
    x2 = jax.random.normal(k_x2, (32, 1, 28, 28), jnp.float32)
    out2 = jax.block_until_ready(fwd(x2, ops))
    ref2 = lenet5_reference(x2, params)
    np.testing.assert_allclose(np.asarray(out2), np.asarray(ref2),
                               rtol=5e-2, atol=3e-2)

    print("KERNEL_OK")
</pallas_src>

<mosaic_0001>
module attributes {stable_mosaic.version = 11 : i64} {
  func.func @_lenet5_kernel(%arg0: i32, %arg1: memref<1x512x32xbf16, #tpu.memory_space<vmem>>, %arg2: memref<160x168xbf16, #tpu.memory_space<vmem>>, %arg3: memref<1x168xf32, #tpu.memory_space<vmem>>, %arg4: memref<810x160xbf16, #tpu.memory_space<vmem>>, %arg5: memref<1x160xf32, #tpu.memory_space<vmem>>, %arg6: memref<5x144x128xbf16, #tpu.memory_space<vmem>>, %arg7: memref<1x128xf32, #tpu.memory_space<vmem>>, %arg8: memref<128x128xbf16, #tpu.memory_space<vmem>>, %arg9: memref<1x128xf32, #tpu.memory_space<vmem>>, %arg10: memref<128x128xbf16, #tpu.memory_space<vmem>>, %arg11: memref<1x128xf32, #tpu.memory_space<vmem>>, %arg12: memref<16x128xf32, #tpu.memory_space<vmem>>) attributes {dimension_semantics = [#tpu.dimension_semantics<parallel>], iteration_bounds = array<i64: 1>, scalar_prefetch = 0 : i64, scratch_operands = 0 : i64, tpu.core_type = #tpu.core_type<tc>, window_params = [{transform_indices = @transform_0, window_bounds = array<i64: 1, 512, 32>}, {pipeline_mode = #tpu.pipeline_mode<synchronous>, transform_indices = @transform_1, window_bounds = array<i64: 160, 168>}, {pipeline_mode = #tpu.pipeline_mode<synchronous>, transform_indices = @transform_2, window_bounds = array<i64: 1, 168>}, {pipeline_mode = #tpu.pipeline_mode<synchronous>, transform_indices = @transform_3, window_bounds = array<i64: 810, 160>}, {pipeline_mode = #tpu.pipeline_mode<synchronous>, transform_indices = @transform_4, window_bounds = array<i64: 1, 160>}, {pipeline_mode = #tpu.pipeline_mode<synchronous>, transform_indices = @transform_5, window_bounds = array<i64: 5, 144, 128>}, {pipeline_mode = #tpu.pipeline_mode<synchronous>, transform_indices = @transform_6, window_bounds = array<i64: 1, 128>}, {pipeline_mode = #tpu.pipeline_mode<synchronous>, transform_indices = @transform_7, window_bounds = array<i64: 128, 128>}, {pipeline_mode = #tpu.pipeline_mode<synchronous>, transform_indices = @transform_8, window_bounds = array<i64: 1, 128>}, {pipeline_mode = #tpu.pipeline_mode<synchronous>, transform_indices = @transform_9, window_bounds = array<i64: 128, 128>}, {pipeline_mode = #tpu.pipeline_mode<synchronous>, transform_indices = @transform_10, window_bounds = array<i64: 1, 128>}, {transform_indices = @transform_11, window_bounds = array<i64: 16, 128>}]} {
    %c0 = arith.constant 0 : index
    %c0_0 = arith.constant 0 : index
    %c0_1 = arith.constant 0 : index
    %0 = vector.load %arg1[%c0, %c0_0, %c0_1] : memref<1x512x32xbf16, #tpu.memory_space<vmem>>, vector<1x512x32xbf16>
    %1 = vector.shape_cast %0 : vector<1x512x32xbf16> to vector<512x32xbf16>
    %2 = vector.extract_strided_slice %1 {offsets = [0, 0], sizes = [448, 32], strides = [1, 1]} : vector<512x32xbf16> to vector<448x32xbf16>
    %3 = vector.extract_strided_slice %1 {offsets = [16, 0], sizes = [448, 32], strides = [1, 1]} : vector<512x32xbf16> to vector<448x32xbf16>
    %4 = vector.extract_strided_slice %1 {offsets = [32, 0], sizes = [448, 32], strides = [1, 1]} : vector<512x32xbf16> to vector<448x32xbf16>
    %5 = vector.extract_strided_slice %1 {offsets = [48, 0], sizes = [448, 32], strides = [1, 1]} : vector<512x32xbf16> to vector<448x32xbf16>
    %6 = vector.extract_strided_slice %1 {offsets = [64, 0], sizes = [448, 32], strides = [1, 1]} : vector<512x32xbf16> to vector<448x32xbf16>
    %7 = tpu.concatenate %2, %3, %4, %5, %6 in 1 : vector<448x32xbf16>, vector<448x32xbf16>, vector<448x32xbf16>, vector<448x32xbf16>, vector<448x32xbf16> -> vector<448x160xbf16>
    %c0_2 = arith.constant 0 : index
    %c0_3 = arith.constant 0 : index
    %8 = vector.load %arg2[%c0_2, %c0_3] : memref<160x168xbf16, #tpu.memory_space<vmem>>, vector<160x168xbf16>
    %cst = arith.constant dense<0.000000e+00> : vector<448x168xf32>
    %9 = tpu.matmul %7, %8, %cst {dimension_numbers = #tpu.dot_dimension_numbers<[1], [0], [0], [1], [0, 0, 1, 1], [], []>} : vector<448x160xbf16>, vector<160x168xbf16>, vector<448x168xf32> -> vector<448x168xf32>
    %c0_4 = arith.constant 0 : index
    %c0_5 = arith.constant 0 : index
    %10 = vector.load %arg3[%c0_4, %c0_5] : memref<1x168xf32, #tpu.memory_space<vmem>>, vector<1x168xf32>
    %11 = vector.broadcast %10 : vector<1x168xf32> to vector<448x168xf32>
    %12 = arith.addf %9, %11 : vector<448x168xf32>
    %cst_6 = arith.constant 0.000000e+00 : f32
    %13 = vector.broadcast %cst_6 : f32 to vector<448x168xf32>
    %14 = arith.maximumf %12, %13 : vector<448x168xf32>
    %15 = vector.extract_strided_slice %14 {offsets = [0, 0], sizes = [448, 162], strides = [1, 1]} : vector<448x168xf32> to vector<448x162xf32>
    %16 = vector.extract_strided_slice %14 {offsets = [0, 6], sizes = [448, 162], strides = [1, 1]} : vector<448x168xf32> to vector<448x162xf32>
    %17 = arith.maximumf %15, %16 : vector<448x162xf32>
    %18 = vector.shape_cast %17 : vector<448x162xf32> to vector<14x32x162xf32>
    %19 = vector.extract_strided_slice %18 {offsets = [0, 0, 0], sizes = [14, 16, 162], strides = [1, 1, 1]} : vector<14x32x162xf32> to vector<14x16x162xf32>
    %20 = vector.extract_strided_slice %18 {offsets = [0, 16, 0], sizes = [14, 16, 162], strides = [1, 1, 1]} : vector<14x32x162xf32> to vector<14x16x162xf32>
    %21 = arith.maximumf %19, %20 : vector<14x16x162xf32>
    %22 = vector.shape_cast %21 : vector<14x16x162xf32> to vector<224x162xf32>
    %23 = arith.truncf %22 : vector<224x162xf32> to vector<224x162xbf16>
    %24 = vector.extract_strided_slice %23 {offsets = [0, 0], sizes = [160, 162], strides = [1, 1]} : vector<224x162xbf16> to vector<160x162xbf16>
    %25 = vector.extract_strided_slice %23 {offsets = [16, 0], sizes = [160, 162], strides = [1, 1]} : vector<224x162xbf16> to vector<160x162xbf16>
    %26 = vector.extract_strided_slice %23 {offsets = [32, 0], sizes = [160, 162], strides = [1, 1]} : vector<224x162xbf16> to vector<160x162xbf16>
    %27 = vector.extract_strided_slice %23 {offsets = [48, 0], sizes = [160, 162], strides = [1, 1]} : vector<224x162xbf16> to vector<160x162xbf16>
    %28 = vector.extract_strided_slice %23 {offsets = [64, 0], sizes = [160, 162], strides = [1, 1]} : vector<224x162xbf16> to vector<160x162xbf16>
    %29 = tpu.concatenate %24, %25, %26, %27, %28 in 1 : vector<160x162xbf16>, vector<160x162xbf16>, vector<160x162xbf16>, vector<160x162xbf16>, vector<160x162xbf16> -> vector<160x810xbf16>
    %c0_7 = arith.constant 0 : index
    %c0_8 = arith.constant 0 : index
    %30 = vector.load %arg4[%c0_7, %c0_8] : memref<810x160xbf16, #tpu.memory_space<vmem>>, vector<810x160xbf16>
    %cst_9 = arith.constant dense<0.000000e+00> : vector<160x160xf32>
    %31 = tpu.matmul %29, %30, %cst_9 {dimension_numbers = #tpu.dot_dimension_numbers<[1], [0], [0], [1], [0, 0, 1, 1], [], []>} : vector<160x810xbf16>, vector<810x160xbf16>, vector<160x160xf32> -> vector<160x160xf32>
    %c0_10 = arith.constant 0 : index
    %c0_11 = arith.constant 0 : index
    %32 = vector.load %arg5[%c0_10, %c0_11] : memref<1x160xf32, #tpu.memory_space<vmem>>, vector<1x160xf32>
    %33 = vector.broadcast %32 : vector<1x160xf32> to vector<160x160xf32>
    %34 = arith.addf %31, %33 : vector<160x160xf32>
    %cst_12 = arith.constant 0.000000e+00 : f32
    %35 = vector.broadcast %cst_12 : f32 to vector<160x160xf32>
    %36 = arith.maximumf %34, %35 : vector<160x160xf32>
    %37 = vector.extract_strided_slice %36 {offsets = [0, 0], sizes = [160, 144], strides = [1, 1]} : vector<160x160xf32> to vector<160x144xf32>
    %38 = vector.extract_strided_slice %36 {offsets = [0, 16], sizes = [160, 144], strides = [1, 1]} : vector<160x160xf32> to vector<160x144xf32>
    %39 = arith.maximumf %37, %38 : vector<160x144xf32>
    %40 = vector.shape_cast %39 : vector<160x144xf32> to vector<5x32x144xf32>
    %41 = vector.extract_strided_slice %40 {offsets = [0, 0, 0], sizes = [5, 16, 144], strides = [1, 1, 1]} : vector<5x32x144xf32> to vector<5x16x144xf32>
    %42 = vector.extract_strided_slice %40 {offsets = [0, 16, 0], sizes = [5, 16, 144], strides = [1, 1, 1]} : vector<5x32x144xf32> to vector<5x16x144xf32>
    %43 = arith.maximumf %41, %42 : vector<5x16x144xf32>
    %44 = arith.truncf %43 : vector<5x16x144xf32> to vector<5x16x144xbf16>
    %45 = vector.extract_strided_slice %44 {offsets = [0, 0, 0], sizes = [1, 16, 144], strides = [1, 1, 1]} : vector<5x16x144xbf16> to vector<1x16x144xbf16>
    %46 = vector.shape_cast %45 : vector<1x16x144xbf16> to vector<16x144xbf16>
    %c0_13 = arith.constant 0 : index
    %c0_14 = arith.constant 0 : index
    %c0_15 = arith.constant 0 : index
    %47 = vector.load %arg6[%c0_13, %c0_14, %c0_15] : memref<5x144x128xbf16, #tpu.memory_space<vmem>>, vector<1x144x128xbf16>
    %48 = vector.shape_cast %47 : vector<1x144x128xbf16> to vector<144x128xbf16>
    %cst_16 = arith.constant dense<0.000000e+00> : vector<16x128xf32>
    %49 = tpu.matmul %46, %48, %cst_16 {dimension_numbers = #tpu.dot_dimension_numbers<[1], [0], [0], [1], [0, 0, 1, 1], [], []>} : vector<16x144xbf16>, vector<144x128xbf16>, vector<16x128xf32> -> vector<16x128xf32>
    %c0_17 = arith.constant 0 : index
    %c0_18 = arith.constant 0 : index
    %50 = vector.load %arg7[%c0_17, %c0_18] : memref<1x128xf32, #tpu.memory_space<vmem>>, vector<1x128xf32>
    %51 = vector.broadcast %50 : vector<1x128xf32> to vector<16x128xf32>
    %52 = arith.addf %49, %51 : vector<16x128xf32>
    %53 = vector.extract_strided_slice %44 {offsets = [1, 0, 0], sizes = [1, 16, 144], strides = [1, 1, 1]} : vector<5x16x144xbf16> to vector<1x16x144xbf16>
    %54 = vector.shape_cast %53 : vector<1x16x144xbf16> to vector<16x144xbf16>
    %c1 = arith.constant 1 : index
    %c0_19 = arith.constant 0 : index
    %c0_20 = arith.constant 0 : index
    %55 = vector.load %arg6[%c1, %c0_19, %c0_20] : memref<5x144x128xbf16, #tpu.memory_space<vmem>>, vector<1x144x128xbf16>
    %56 = vector.shape_cast %55 : vector<1x144x128xbf16> to vector<144x128xbf16>
    %cst_21 = arith.constant dense<0.000000e+00> : vector<16x128xf32>
    %57 = tpu.matmul %54, %56, %cst_21 {dimension_numbers = #tpu.dot_dimension_numbers<[1], [0], [0], [1], [0, 0, 1, 1], [], []>} : vector<16x144xbf16>, vector<144x128xbf16>, vector<16x128xf32> -> vector<16x128xf32>
    %58 = arith.addf %52, %57 : vector<16x128xf32>
    %59 = vector.extract_strided_slice %44 {offsets = [2, 0, 0], sizes = [1, 16, 144], strides = [1, 1, 1]} : vector<5x16x144xbf16> to vector<1x16x144xbf16>
    %60 = vector.shape_cast %59 : vector<1x16x144xbf16> to vector<16x144xbf16>
    %c2 = arith.constant 2 : index
    %c0_22 = arith.constant 0 : index
    %c0_23 = arith.constant 0 : index
    %61 = vector.load %arg6[%c2, %c0_22, %c0_23] : memref<5x144x128xbf16, #tpu.memory_space<vmem>>, vector<1x144x128xbf16>
    %62 = vector.shape_cast %61 : vector<1x144x128xbf16> to vector<144x128xbf16>
    %cst_24 = arith.constant dense<0.000000e+00> : vector<16x128xf32>
    %63 = tpu.matmul %60, %62, %cst_24 {dimension_numbers = #tpu.dot_dimension_numbers<[1], [0], [0], [1], [0, 0, 1, 1], [], []>} : vector<16x144xbf16>, vector<144x128xbf16>, vector<16x128xf32> -> vector<16x128xf32>
    %64 = arith.addf %58, %63 : vector<16x128xf32>
    %65 = vector.extract_strided_slice %44 {offsets = [3, 0, 0], sizes = [1, 16, 144], strides = [1, 1, 1]} : vector<5x16x144xbf16> to vector<1x16x144xbf16>
    %66 = vector.shape_cast %65 : vector<1x16x144xbf16> to vector<16x144xbf16>
    %c3 = arith.constant 3 : index
    %c0_25 = arith.constant 0 : index
    %c0_26 = arith.constant 0 : index
    %67 = vector.load %arg6[%c3, %c0_25, %c0_26] : memref<5x144x128xbf16, #tpu.memory_space<vmem>>, vector<1x144x128xbf16>
    %68 = vector.shape_cast %67 : vector<1x144x128xbf16> to vector<144x128xbf16>
    %cst_27 = arith.constant dense<0.000000e+00> : vector<16x128xf32>
    %69 = tpu.matmul %66, %68, %cst_27 {dimension_numbers = #tpu.dot_dimension_numbers<[1], [0], [0], [1], [0, 0, 1, 1], [], []>} : vector<16x144xbf16>, vector<144x128xbf16>, vector<16x128xf32> -> vector<16x128xf32>
    %70 = arith.addf %64, %69 : vector<16x128xf32>
    %71 = vector.extract_strided_slice %44 {offsets = [4, 0, 0], sizes = [1, 16, 144], strides = [1, 1, 1]} : vector<5x16x144xbf16> to vector<1x16x144xbf16>
    %72 = vector.shape_cast %71 : vector<1x16x144xbf16> to vector<16x144xbf16>
    %c4 = arith.constant 4 : index
    %c0_28 = arith.constant 0 : index
    %c0_29 = arith.constant 0 : index
    %73 = vector.load %arg6[%c4, %c0_28, %c0_29] : memref<5x144x128xbf16, #tpu.memory_space<vmem>>, vector<1x144x128xbf16>
    %74 = vector.shape_cast %73 : vector<1x144x128xbf16> to vector<144x128xbf16>
    %cst_30 = arith.constant dense<0.000000e+00> : vector<16x128xf32>
    %75 = tpu.matmul %72, %74, %cst_30 {dimension_numbers = #tpu.dot_dimension_numbers<[1], [0], [0], [1], [0, 0, 1, 1], [], []>} : vector<16x144xbf16>, vector<144x128xbf16>, vector<16x128xf32> -> vector<16x128xf32>
    %76 = arith.addf %70, %75 : vector<16x128xf32>
    %cst_31 = arith.constant 0.000000e+00 : f32
    %77 = vector.broadcast %cst_31 : f32 to vector<16x128xf32>
    %78 = arith.maximumf %76, %77 : vector<16x128xf32>
    %79 = arith.truncf %78 : vector<16x128xf32> to vector<16x128xbf16>
    %c0_32 = arith.constant 0 : index
    %c0_33 = arith.constant 0 : index
    %80 = vector.load %arg8[%c0_32, %c0_33] : memref<128x128xbf16, #tpu.memory_space<vmem>>, vector<128x128xbf16>
    %cst_34 = arith.constant dense<0.000000e+00> : vector<16x128xf32>
    %81 = tpu.matmul %79, %80, %cst_34 {dimension_numbers = #tpu.dot_dimension_numbers<[1], [0], [0], [1], [0, 0, 1, 1], [], []>} : vector<16x128xbf16>, vector<128x128xbf16>, vector<16x128xf32> -> vector<16x128xf32>
    %c0_35 = arith.constant 0 : index
    %c0_36 = arith.constant 0 : index
    %82 = vector.load %arg9[%c0_35, %c0_36] : memref<1x128xf32, #tpu.memory_space<vmem>>, vector<1x128xf32>
    %83 = vector.broadcast %82 : vector<1x128xf32> to vector<16x128xf32>
    %84 = arith.addf %81, %83 : vector<16x128xf32>
    %cst_37 = arith.constant 0.000000e+00 : f32
    %85 = vector.broadcast %cst_37 : f32 to vector<16x128xf32>
    %86 = arith.maximumf %84, %85 : vector<16x128xf32>
    %87 = arith.truncf %86 : vector<16x128xf32> to vector<16x128xbf16>
    %c0_38 = arith.constant 0 : index
    %c0_39 = arith.constant 0 : index
    %88 = vector.load %arg10[%c0_38, %c0_39] : memref<128x128xbf16, #tpu.memory_space<vmem>>, vector<128x128xbf16>
    %cst_40 = arith.constant dense<0.000000e+00> : vector<16x128xf32>
    %89 = tpu.matmul %87, %88, %cst_40 {dimension_numbers = #tpu.dot_dimension_numbers<[1], [0], [0], [1], [0, 0, 1, 1], [], []>} : vector<16x128xbf16>, vector<128x128xbf16>, vector<16x128xf32> -> vector<16x128xf32>
    %c0_41 = arith.constant 0 : index
    %c0_42 = arith.constant 0 : index
    %90 = vector.load %arg11[%c0_41, %c0_42] : memref<1x128xf32, #tpu.memory_space<vmem>>, vector<1x128xf32>
    %91 = vector.broadcast %90 : vector<1x128xf32> to vector<16x128xf32>
    %92 = arith.addf %89, %91 : vector<16x128xf32>
    %c0_43 = arith.constant 0 : index
    %c0_44 = arith.constant 0 : index
    %93 = vector.load %arg12[%c0_43, %c0_44] : memref<16x128xf32, #tpu.memory_space<vmem>>, vector<16x128xf32>
    tpu.vector_store %arg12[%c0_43, %c0_44], %92 {strides = array<i32>} : memref<16x128xf32, #tpu.memory_space<vmem>>, vector<16x128xf32>,
    return
  }
  func.func @transform_0(%arg0: i32) -> (i32, i32, i32) {
    %c0_i32 = arith.constant 0 : i32
    %c0_i32_0 = arith.constant 0 : i32
    %c0_i32_1 = arith.constant 0 : i32
    return %arg0, %c0_i32, %c0_i32_0 : i32, i32, i32
  }
  func.func @transform_1(%arg0: i32) -> (i32, i32) {
    %c0_i32 = arith.constant 0 : i32
    %c0_i32_0 = arith.constant 0 : i32
    %c0_i32_1 = arith.constant 0 : i32
    return %c0_i32, %c0_i32_0 : i32, i32
  }
  func.func @transform_2(%arg0: i32) -> (i32, i32) {
    %c0_i32 = arith.constant 0 : i32
    %c0_i32_0 = arith.constant 0 : i32
    %c0_i32_1 = arith.constant 0 : i32
    return %c0_i32, %c0_i32_0 : i32, i32
  }
  func.func @transform_3(%arg0: i32) -> (i32, i32) {
    %c0_i32 = arith.constant 0 : i32
    %c0_i32_0 = arith.constant 0 : i32
    %c0_i32_1 = arith.constant 0 : i32
    return %c0_i32, %c0_i32_0 : i32, i32
  }
  func.func @transform_4(%arg0: i32) -> (i32, i32) {
    %c0_i32 = arith.constant 0 : i32
    %c0_i32_0 = arith.constant 0 : i32
    %c0_i32_1 = arith.constant 0 : i32
    return %c0_i32, %c0_i32_0 : i32, i32
  }
  func.func @transform_5(%arg0: i32) -> (i32, i32, i32) {
    %c0_i32 = arith.constant 0 : i32
    %c0_i32_0 = arith.constant 0 : i32
    %c0_i32_1 = arith.constant 0 : i32
    %c0_i32_2 = arith.constant 0 : i32
    return %c0_i32, %c0_i32_0, %c0_i32_1 : i32, i32, i32
  }
  func.func @transform_6(%arg0: i32) -> (i32, i32) {
    %c0_i32 = arith.constant 0 : i32
    %c0_i32_0 = arith.constant 0 : i32
    %c0_i32_1 = arith.constant 0 : i32
    return %c0_i32, %c0_i32_0 : i32, i32
  }
  func.func @transform_7(%arg0: i32) -> (i32, i32) {
    %c0_i32 = arith.constant 0 : i32
    %c0_i32_0 = arith.constant 0 : i32
    %c0_i32_1 = arith.constant 0 : i32
    return %c0_i32, %c0_i32_0 : i32, i32
  }
  func.func @transform_8(%arg0: i32) -> (i32, i32) {
    %c0_i32 = arith.constant 0 : i32
    %c0_i32_0 = arith.constant 0 : i32
    %c0_i32_1 = arith.constant 0 : i32
    return %c0_i32, %c0_i32_0 : i32, i32
  }
  func.func @transform_9(%arg0: i32) -> (i32, i32) {
    %c0_i32 = arith.constant 0 : i32
    %c0_i32_0 = arith.constant 0 : i32
    %c0_i32_1 = arith.constant 0 : i32
    return %c0_i32, %c0_i32_0 : i32, i32
  }
  func.func @transform_10(%arg0: i32) -> (i32, i32) {
    %c0_i32 = arith.constant 0 : i32
    %c0_i32_0 = arith.constant 0 : i32
    %c0_i32_1 = arith.constant 0 : i32
    return %c0_i32, %c0_i32_0 : i32, i32
  }
  func.func @transform_11(%arg0: i32) -> (i32, i32) {
    %c0_i32 = arith.constant 0 : i32
    %c0_i32_0 = arith.constant 0 : i32
    return %arg0, %c0_i32 : i32, i32
  }
}

</mosaic_0001>

<llo_original>
// kernel: lenet5_forward.1
$region0: #{lenet5_forward.1}
  #allocation0 [shape = 'u32[]', space=smem, size = 0x4, offset = 0x4, fixed_abs, tag = 'smem constant byte address 0x4 - core index']
  #allocation1 [shape = 'u32[144,128]{1,0:T(1,128)}', space=vmem, size = 0x12000, scoped, tag = 'internal scratch']
  %s0 = inlined_call_operand.vmem [shape: bf16[1,512,32], index: 0, kind: input, shape index: {}]
  %s1 = inlined_call_operand.vmem [shape: bf16[160,168], index: 1, kind: input, shape index: {}]
  %s2 = inlined_call_operand.vmem [shape: f32[1,168], index: 2, kind: input, shape index: {}]
  %s3 = inlined_call_operand.vmem [shape: bf16[810,160], index: 3, kind: input, shape index: {}]
  %s4 = inlined_call_operand.vmem [shape: f32[1,160], index: 4, kind: input, shape index: {}]
  %s5 = inlined_call_operand.vmem [shape: bf16[5,144,128], index: 5, kind: input, shape index: {}]
  %s6 = inlined_call_operand.vmem [shape: f32[1,128], index: 6, kind: input, shape index: {}]
  %s7 = inlined_call_operand.vmem [shape: bf16[128,128], index: 7, kind: input, shape index: {}]
  %s8 = inlined_call_operand.vmem [shape: f32[1,128], index: 8, kind: input, shape index: {}]
  %s9 = inlined_call_operand.vmem [shape: bf16[128,128], index: 9, kind: input, shape index: {}]
  %s10 = inlined_call_operand.vmem [shape: f32[1,128], index: 10, kind: input, shape index: {}]
  %s11 = inlined_call_operand.vmem [shape: f32[16,128], index: 11, kind: output, shape index: {}]
  %s12 = sld [smem:[#allocation0]]
  $region54: #{lenet5_forward.1} parent=0
    _
  %s14 = ssub.s32 1, %s12
  %s15 = scalar_select 0, %s14, %s12
  // Predicated region
  $region2: #{lenet5_forward.1} parent=0 // pred_check
    _
  $region3: #{lenet5_forward.1} parent=0 // pred_check_branch
    %17 = sbr.rel (0) target = $region5
  $region4: #{lenet5_forward.1} parent=0 // pred_region
    _
  $region5: #{lenet5_forward.1} parent=0 // pred_fallthru
    _
  // Predicated region
  $region6: #{lenet5_forward.1} parent=0 // pred_check
    _
  $region7: #{lenet5_forward.1} parent=0 // pred_check_branch
    %19 = sbr.rel (0) target = $region9
  $region8: #{lenet5_forward.1} parent=0 // pred_region
    _
  $region9: #{lenet5_forward.1} parent=0 // pred_fallthru
    _
  // Predicated region
  $region10: #{lenet5_forward.1} parent=0 // pred_check
    _
  $region11: #{lenet5_forward.1} parent=0 // pred_check_branch
    %21 = sbr.rel (0) target = $region13
  $region12: #{lenet5_forward.1} parent=0 // pred_region
    _
  $region13: #{lenet5_forward.1} parent=0 // pred_fallthru
    _
  // Predicated region
  $region14: #{lenet5_forward.1} parent=0 // pred_check
    _
  $region15: #{lenet5_forward.1} parent=0 // pred_check_branch
    %23 = sbr.rel (0) target = $region17
  $region16: #{lenet5_forward.1} parent=0 // pred_region
    _
  $region17: #{lenet5_forward.1} parent=0 // pred_fallthru
    _
  // Predicated region
  $region18: #{lenet5_forward.1} parent=0 // pred_check
    _
  $region19: #{lenet5_forward.1} parent=0 // pred_check_branch
    %25 = sbr.rel (0) target = $region21
  $region20: #{lenet5_forward.1} parent=0 // pred_region
    _
  $region21: #{lenet5_forward.1} parent=0 // pred_fallthru
    _
  // Predicated region
  $region22: #{lenet5_forward.1} parent=0 // pred_check
    _
  $region23: #{lenet5_forward.1} parent=0 // pred_check_branch
    %27 = sbr.rel (0) target = $region25
  $region24: #{lenet5_forward.1} parent=0 // pred_region
    _
  $region25: #{lenet5_forward.1} parent=0 // pred_fallthru
    _
  // Predicated region
  $region26: #{lenet5_forward.1} parent=0 // pred_check
    _
  $region27: #{lenet5_forward.1} parent=0 // pred_check_branch
    %29 = sbr.rel (0) target = $region29
  $region28: #{lenet5_forward.1} parent=0 // pred_region
    _
  $region29: #{lenet5_forward.1} parent=0 // pred_fallthru
    _
  // Predicated region
  $region30: #{lenet5_forward.1} parent=0 // pred_check
    _
  $region31: #{lenet5_forward.1} parent=0 // pred_check_branch
    %31 = sbr.rel (0) target = $region33
  $region32: #{lenet5_forward.1} parent=0 // pred_region
    _
  $region33: #{lenet5_forward.1} parent=0 // pred_fallthru
    _
  // Predicated region
  $region34: #{lenet5_forward.1} parent=0 // pred_check
    _
  $region35: #{lenet5_forward.1} parent=0 // pred_check_branch
    %33 = sbr.rel (0) target = $region37
  $region36: #{lenet5_forward.1} parent=0 // pred_region
    _
  $region37: #{lenet5_forward.1} parent=0 // pred_fallthru
    _
  // Predicated region
  $region38: #{lenet5_forward.1} parent=0 // pred_check
    _
  $region39: #{lenet5_forward.1} parent=0 // pred_check_branch
    %35 = sbr.rel (0) target = $region41
  $region40: #{lenet5_forward.1} parent=0 // pred_region
    _
  $region41: #{lenet5_forward.1} parent=0 // pred_fallthru
    _
  // Predicated region
  $region42: #{lenet5_forward.1} parent=0 // pred_check
    _
  $region43: #{lenet5_forward.1} parent=0 // pred_check_branch
    %37 = sbr.rel (0) target = $region45
  $region44: #{lenet5_forward.1} parent=0 // pred_region
    _
  $region45: #{lenet5_forward.1} parent=0 // pred_fallthru
    _
  %v39 = vld [vmem:[%s0] sm:$0xf]
  %v40 = vld [vmem:[%s0 + $0x4] sm:$0xf]
  %v41 = vld [vmem:[%s0 + $0x8] sm:$0xf]
  %v42 = vld [vmem:[%s0 + $0xc] sm:$0xf]
  %v43 = vld [vmem:[%s0 + $0x10] sm:$0xf]
  %v44 = vld [vmem:[%s0 + $0x14] sm:$0xf]
  %v45 = vld [vmem:[%s0 + $0x18] sm:$0xf]
  %v46 = vld [vmem:[%s0 + $0x1c] sm:$0xf]
  %v47 = vld [vmem:[%s0 + $0x20] sm:$0xf]
  %v48 = vld [vmem:[%s0 + $0x24] sm:$0xf]
  %v49 = vld [vmem:[%s0 + $0x28] sm:$0xf]
  %v50 = vld [vmem:[%s0 + $0x2c] sm:$0xf]
  %v51 = vld [vmem:[%s0 + $0x30] sm:$0xf]
  %v52 = vld [vmem:[%s0 + $0x34] sm:$0xf]
  %v53 = vld [vmem:[%s0 + $0x38] sm:$0xf]
  %v54 = vld [vmem:[%s0 + $0x3c] sm:$0xf]
  %v55 = vld [vmem:[%s0 + $0x40] sm:$0xf]
  %v56 = vld [vmem:[%s0 + $0x44] sm:$0xf]
  %v57 = vld [vmem:[%s0 + $0x48] sm:$0xf]
  %v58 = vld [vmem:[%s0 + $0x4c] sm:$0xf]
  %v59 = vld [vmem:[%s0 + $0x50] sm:$0xf]
  %v60 = vld [vmem:[%s0 + $0x54] sm:$0xf]
  %v61 = vld [vmem:[%s0 + $0x58] sm:$0xf]
  %v62 = vld [vmem:[%s0 + $0x5c] sm:$0xf]
  %v63 = vld [vmem:[%s0 + $0x60] sm:$0xf]
  %v64 = vld [vmem:[%s0 + $0x64] sm:$0xf]
  %v65 = vld [vmem:[%s0 + $0x68] sm:$0xf]
  %v66 = vld [vmem:[%s0 + $0x6c] sm:$0xf]
  %v67 = vld [vmem:[%s0 + $0x70] sm:$0xf]
  %v68 = vld [vmem:[%s0 + $0x74] sm:$0xf]
  %v69 = vld [vmem:[%s0 + $0x78] sm:$0xf]
  %v70 = vld [vmem:[%s0 + $0x7c] sm:$0xf]
  %v71 = vld [vmem:[%s0 + $0x80] sm:$0xf]
  %v72 = vld [vmem:[%s0 + $0x84] sm:$0xf]
  %v73 = vld [vmem:[%s0 + $0x88] sm:$0xf]
  %v74 = vld [vmem:[%s0 + $0x8c] sm:$0xf]
  %v75 = vld [vmem:[%s0 + $0x90] sm:$0xf]
  %v76 = vld [vmem:[%s0 + $0x94] sm:$0xf]
  %v77 = vld [vmem:[%s0 + $0x98] sm:$0xf]
  %v78 = vld [vmem:[%s0 + $0x9c] sm:$0xf]
  %v79 = vld [vmem:[%s0 + $0xa0] sm:$0xf]
  %v80 = vld [vmem:[%s0 + $0xa4] sm:$0xf]
  %v81 = vld [vmem:[%s0 + $0xa8] sm:$0xf]
  %v82 = vld [vmem:[%s0 + $0xac] sm:$0xf]
  %v83 = vld [vmem:[%s0 + $0xb0] sm:$0xf]
  %v84 = vld [vmem:[%s0 + $0xb4] sm:$0xf]
  %v85 = vld [vmem:[%s0 + $0xb8] sm:$0xf]
  %v86 = vld [vmem:[%s0 + $0xbc] sm:$0xf]
  %v87 = vld [vmem:[%s0 + $0xc0] sm:$0xf]
  %v88 = vld [vmem:[%s0 + $0xc4] sm:$0xf]
  %v89 = vld [vmem:[%s0 + $0xc8] sm:$0xf]
  %v90 = vld [vmem:[%s0 + $0xcc] sm:$0xf]
  %v91 = vld [vmem:[%s0 + $0xd0] sm:$0xf]
  %v92 = vld [vmem:[%s0 + $0xd4] sm:$0xf]
  %v93 = vld [vmem:[%s0 + $0xd8] sm:$0xf]
  %v94 = vld [vmem:[%s0 + $0xdc] sm:$0xf]
  %v95 = vld [vmem:[%s0 + $0xe0] sm:$0xf]
  %v96 = vld [vmem:[%s0 + $0xe4] sm:$0xf]
  %v97 = vld [vmem:[%s0 + $0xe8] sm:$0xf]
  %v98 = vld [vmem:[%s0 + $0xec] sm:$0xf]
  %v99 = vld [vmem:[%s0 + $0xf0] sm:$0xf]
  %v100 = vld [vmem:[%s0 + $0xf4] sm:$0xf]
  %v101 = vld [vmem:[%s0 + $0xf8] sm:$0xf]
  %v102 = vld [vmem:[%s0 + $0xfc] sm:$0xf]
  %v159 = vunpack.c.l.b16 %v39
  %v160 = vunpack.c.l.b16 %v40
  %v161 = vunpack.c.l.b16 %v41
  %v162 = vunpack.c.l.b16 %v42
  %v163 = vunpack.c.l.b16 %v43
  %v164 = vunpack.c.l.b16 %v44
  %v165 = vunpack.c.l.b16 %v45
  %v166 = vunpack.c.l.b16 %v46
  %v167 = vunpack.c.l.b16 %v47
  %v168 = vunpack.c.l.b16 %v48
  %v169 = vunpack.c.l.b16 %v49
  %v170 = vunpack.c.l.b16 %v50
  %v171 = vunpack.c.l.b16 %v51
  %v172 = vunpack.c.l.b16 %v52
  %v173 = vunpack.c.l.b16 %v53
  %v174 = vunpack.c.l.b16 %v54
  %v175 = vunpack.c.l.b16 %v55
  %v176 = vunpack.c.l.b16 %v56
  %v177 = vunpack.c.l.b16 %v57
  %v178 = vunpack.c.l.b16 %v58
  %v179 = vunpack.c.l.b16 %v59
  %v180 = vunpack.c.l.b16 %v60
  %v181 = vunpack.c.l.b16 %v61
  %v182 = vunpack.c.l.b16 %v62
  %v183 = vunpack.c.l.b16 %v63
  %v184 = vunpack.c.l.b16 %v64
  %v185 = vunpack.c.l.b16 %v65
  %v186 = vunpack.c.l.b16 %v66
  %v187 = vunpack.c.l.b16 %v67
  %v188 = vunpack.c.l.b16 %v68
  %v189 = vunpack.c.l.b16 %v69
  %v190 = vunpack.c.l.b16 %v70
  %v191 = vunpack.c.l.b16 %v71
  %v192 = vunpack.c.l.b16 %v72
  %v193 = vunpack.c.l.b16 %v73
  %v194 = vunpack.c.l.b16 %v74
  %v195 = vunpack.c.l.b16 %v75
  %v196 = vunpack.c.l.b16 %v76
  %v197 = vunpack.c.l.b16 %v77
  %v198 = vunpack.c.l.b16 %v78
  %v199 = vunpack.c.l.b16 %v79
  %v200 = vunpack.c.l.b16 %v80
  %v201 = vunpack.c.l.b16 %v81
  %v202 = vunpack.c.l.b16 %v82
  %v203 = vunpack.c.l.b16 %v83
  %v204 = vunpack.c.l.b16 %v84
  %v205 = vunpack.c.l.b16 %v85
  %v206 = vunpack.c.l.b16 %v86
  %v207 = vunpack.c.l.b16 %v87
  %v208 = vunpack.c.l.b16 %v88
  %v209 = vunpack.c.l.b16 %v89
  %v210 = vunpack.c.l.b16 %v90
  %v211 = vunpack.c.l.b16 %v91
  %v212 = vunpack.c.l.b16 %v92
  %v213 = vunpack.c.l.b16 %v93
  %v214 = vunpack.c.l.b16 %v94
  %v215 = vpack.c.b16 %v160, %v159
  %v216 = vpack.c.b16 %v162, %v161
  %v217 = vpack.c.b16 %v164, %v163
  %v218 = vpack.c.b16 %v166, %v165
  %v219 = vpack.c.b16 %v168, %v167
  %v220 = vpack.c.b16 %v170, %v169
  %v221 = vpack.c.b16 %v172, %v171
  %v222 = vpack.c.b16 %v174, %v173
  %v223 = vpack.c.b16 %v176, %v175
  %v224 = vpack.c.b16 %v178, %v177
  %v225 = vpack.c.b16 %v180, %v179
  %v226 = vpack.c.b16 %v182, %v181
  %v227 = vpack.c.b16 %v184, %v183
  %v228 = vpack.c.b16 %v186, %v185
  %v229 = vpack.c.b16 %v188, %v187
  %v230 = vpack.c.b16 %v190, %v189
  %v231 = vpack.c.b16 %v192, %v191
  %v232 = vpack.c.b16 %v194, %v193
  %v233 = vpack.c.b16 %v196, %v195
  %v234 = vpack.c.b16 %v198, %v197
  %v235 = vpack.c.b16 %v200, %v199
  %v236 = vpack.c.b16 %v202, %v201
  %v237 = vpack.c.b16 %v204, %v203
  %v238 = vpack.c.b16 %v206, %v205
  %v239 = vpack.c.b16 %v208, %v207
  %v240 = vpack.c.b16 %v210, %v209
  %v241 = vpack.c.b16 %v212, %v211
  %v242 = vpack.c.b16 %v214, %v213
  %v245 = vunpack.c.l.b16 %v95
  %v246 = vunpack.c.l.b16 %v96
  %v247 = vpack.c.b16 %v246, %v245
  %248 = vrot.lane.b32.xlu0 %v216, 32
  %v249 = vpop.permute.xlu0 %248
  %250 = vrot.lane.b32.xlu0 %v217, 32
  %v251 = vpop.permute.xlu0 %250
  %252 = vrot.lane.b32.xlu0 %v218, 32
  %v253 = vpop.permute.xlu0 %252
  %254 = vrot.lane.b32.xlu0 %v219, 32
  %v255 = vpop.permute.xlu0 %254
  %256 = vrot.lane.b32.xlu0 %v220, 32
  %v257 = vpop.permute.xlu0 %256
  %258 = vrot.lane.b32.xlu0 %v221, 32
  %v259 = vpop.permute.xlu0 %258
  %260 = vrot.lane.b32.xlu0 %v222, 32
  %v261 = vpop.permute.xlu0 %260
  %262 = vrot.lane.b32.xlu0 %v223, 32
  %v263 = vpop.permute.xlu0 %262
  %264 = vrot.lane.b32.xlu0 %v224, 32
  %v265 = vpop.permute.xlu0 %264
  %266 = vrot.lane.b32.xlu0 %v225, 32
  %v267 = vpop.permute.xlu0 %266
  %268 = vrot.lane.b32.xlu0 %v226, 32
  %v269 = vpop.permute.xlu0 %268
  %270 = vrot.lane.b32.xlu0 %v227, 32
  %v271 = vpop.permute.xlu0 %270
  %272 = vrot.lane.b32.xlu0 %v228, 32
  %v273 = vpop.permute.xlu0 %272
  %274 = vrot.lane.b32.xlu0 %v229, 32
  %v275 = vpop.permute.xlu0 %274
  %276 = vrot.lane.b32.xlu0 %v230, 32
  %v277 = vpop.permute.xlu0 %276
  %278 = vrot.lane.b32.xlu0 %v231, 32
  %v279 = vpop.permute.xlu0 %278
  %280 = vrot.lane.b32.xlu0 %v232, 32
  %v281 = vpop.permute.xlu0 %280
  %282 = vrot.lane.b32.xlu0 %v233, 32
  %v283 = vpop.permute.xlu0 %282
  %284 = vrot.lane.b32.xlu0 %v234, 32
  %v285 = vpop.permute.xlu0 %284
  %286 = vrot.lane.b32.xlu0 %v235, 32
  %v287 = vpop.permute.xlu0 %286
  %288 = vrot.lane.b32.xlu0 %v236, 32
  %v289 = vpop.permute.xlu0 %288
  %290 = vrot.lane.b32.xlu0 %v237, 32
  %v291 = vpop.permute.xlu0 %290
  %292 = vrot.lane.b32.xlu0 %v238, 32
  %v293 = vpop.permute.xlu0 %292
  %294 = vrot.lane.b32.xlu0 %v239, 32
  %v295 = vpop.permute.xlu0 %294
  %296 = vrot.lane.b32.xlu0 %v240, 32
  %v297 = vpop.permute.xlu0 %296
  %298 = vrot.lane.b32.xlu0 %v241, 32
  %v299 = vpop.permute.xlu0 %298
  %300 = vrot.lane.b32.xlu0 %v242, 32
  %v301 = vpop.permute.xlu0 %300
  %302 = vrot.lane.b32.xlu0 %v247, 32
  %v303 = vpop.permute.xlu0 %302
  %v306 = vunpack.c.l.b16 %v97
  %v307 = vunpack.c.l.b16 %v98
  %v308 = vpack.c.b16 %v307, %v306
  %309 = vrot.lane.b32.xlu0 %v217, 64
  %v310 = vpop.permute.xlu0 %309
  %311 = vrot.lane.b32.xlu0 %v218, 64
  %v312 = vpop.permute.xlu0 %311
  %313 = vrot.lane.b32.xlu0 %v219, 64
  %v314 = vpop.permute.xlu0 %313
  %315 = vrot.lane.b32.xlu0 %v220, 64
  %v316 = vpop.permute.xlu0 %315
  %317 = vrot.lane.b32.xlu0 %v221, 64
  %v318 = vpop.permute.xlu0 %317
  %319 = vrot.lane.b32.xlu0 %v222, 64
  %v320 = vpop.permute.xlu0 %319
  %321 = vrot.lane.b32.xlu0 %v223, 64
  %v322 = vpop.permute.xlu0 %321
  %323 = vrot.lane.b32.xlu0 %v224, 64
  %v324 = vpop.permute.xlu0 %323
  %325 = vrot.lane.b32.xlu0 %v225, 64
  %v326 = vpop.permute.xlu0 %325
  %327 = vrot.lane.b32.xlu0 %v226, 64
  %v328 = vpop.permute.xlu0 %327
  %329 = vrot.lane.b32.xlu0 %v227, 64
  %v330 = vpop.permute.xlu0 %329
  %331 = vrot.lane.b32.xlu0 %v228, 64
  %v332 = vpop.permute.xlu0 %331
  %333 = vrot.lane.b32.xlu0 %v229, 64
  %v334 = vpop.permute.xlu0 %333
  %335 = vrot.lane.b32.xlu0 %v230, 64
  %v336 = vpop.permute.xlu0 %335
  %337 = vrot.lane.b32.xlu0 %v231, 64
  %v338 = vpop.permute.xlu0 %337
  %339 = vrot.lane.b32.xlu0 %v232, 64
  %v340 = vpop.permute.xlu0 %339
  %341 = vrot.lane.b32.xlu0 %v233, 64
  %v342 = vpop.permute.xlu0 %341
  %343 = vrot.lane.b32.xlu0 %v234, 64
  %v344 = vpop.permute.xlu0 %343
  %345 = vrot.lane.b32.xlu0 %v235, 64
  %v346 = vpop.permute.xlu0 %345
  %347 = vrot.lane.b32.xlu0 %v236, 64
  %v348 = vpop.permute.xlu0 %347
  %349 = vrot.lane.b32.xlu0 %v237, 64
  %v350 = vpop.permute.xlu0 %349
  %351 = vrot.lane.b32.xlu0 %v238, 64
  %v352 = vpop.permute.xlu0 %351
  %353 = vrot.lane.b32.xlu0 %v239, 64
  %v354 = vpop.permute.xlu0 %353
  %355 = vrot.lane.b32.xlu0 %v240, 64
  %v356 = vpop.permute.xlu0 %355
  %357 = vrot.lane.b32.xlu0 %v241, 64
  %v358 = vpop.permute.xlu0 %357
  %359 = vrot.lane.b32.xlu0 %v242, 64
  %v360 = vpop.permute.xlu0 %359
  %361 = vrot.lane.b32.xlu0 %v247, 64
  %v362 = vpop.permute.xlu0 %361
  %363 = vrot.lane.b32.xlu0 %v308, 64
  %v364 = vpop.permute.xlu0 %363
  %v367 = vunpack.c.l.b16 %v99
  %v368 = vunpack.c.l.b16 %v100
  %v369 = vpack.c.b16 %v368, %v367
  %370 = vrot.lane.b32.xlu0 %v218, 96
  %v371 = vpop.permute.xlu0 %370
  %372 = vrot.lane.b32.xlu0 %v219, 96
  %v373 = vpop.permute.xlu0 %372
  %374 = vrot.lane.b32.xlu0 %v220, 96
  %v375 = vpop.permute.xlu0 %374
  %376 = vrot.lane.b32.xlu0 %v221, 96
  %v377 = vpop.permute.xlu0 %376
  %378 = vrot.lane.b32.xlu0 %v222, 96
  %v379 = vpop.permute.xlu0 %378
  %380 = vrot.lane.b32.xlu0 %v223, 96
  %v381 = vpop.permute.xlu0 %380
  %382 = vrot.lane.b32.xlu0 %v224, 96
  %v383 = vpop.permute.xlu0 %382
  %384 = vrot.lane.b32.xlu0 %v225, 96
  %v385 = vpop.permute.xlu0 %384
  %386 = vrot.lane.b32.xlu0 %v226, 96
  %v387 = vpop.permute.xlu0 %386
  %388 = vrot.lane.b32.xlu0 %v227, 96
  %v389 = vpop.permute.xlu0 %388
  %390 = vrot.lane.b32.xlu0 %v228, 96
  %v391 = vpop.permute.xlu0 %390
  %392 = vrot.lane.b32.xlu0 %v229, 96
  %v393 = vpop.permute.xlu0 %392
  %394 = vrot.lane.b32.xlu0 %v230, 96
  %v395 = vpop.permute.xlu0 %394
  %396 = vrot.lane.b32.xlu0 %v231, 96
  %v397 = vpop.permute.xlu0 %396
  %398 = vrot.lane.b32.xlu0 %v232, 96
  %v399 = vpop.permute.xlu0 %398
  %400 = vrot.lane.b32.xlu0 %v233, 96
  %v401 = vpop.permute.xlu0 %400
  %402 = vrot.lane.b32.xlu0 %v234, 96
  %v403 = vpop.permute.xlu0 %402
  %404 = vrot.lane.b32.xlu0 %v235, 96
  %v405 = vpop.permute.xlu0 %404
  %406 = vrot.lane.b32.xlu0 %v236, 96
  %v407 = vpop.permute.xlu0 %406
  %408 = vrot.lane.b32.xlu0 %v237, 96
  %v409 = vpop.permute.xlu0 %408
  %410 = vrot.lane.b32.xlu0 %v238, 96
  %v411 = vpop.permute.xlu0 %410
  %412 = vrot.lane.b32.xlu0 %v239, 96
  %v413 = vpop.permute.xlu0 %412
  %414 = vrot.lane.b32.xlu0 %v240, 96
  %v415 = vpop.permute.xlu0 %414
  %416 = vrot.lane.b32.xlu0 %v241, 96
  %v417 = vpop.permute.xlu0 %416
  %418 = vrot.lane.b32.xlu0 %v242, 96
  %v419 = vpop.permute.xlu0 %418
  %420 = vrot.lane.b32.xlu0 %v247, 96
  %v421 = vpop.permute.xlu0 %420
  %422 = vrot.lane.b32.xlu0 %v308, 96
  %v423 = vpop.permute.xlu0 %422
  %424 = vrot.lane.b32.xlu0 %v369, 96
  %v425 = vpop.permute.xlu0 %424
  %v428 = vunpack.c.l.b16 %v101
  %v429 = vunpack.c.l.b16 %v102
  %v430 = vpack.c.b16 %v429, %v428
  %vm431 = vcmask 261120
  %v434 = vsel %vm431, %v215, %v249
  %v437 = vsel %vm431, %v216, %v251
  %v440 = vsel %vm431, %v217, %v253
  %v443 = vsel %vm431, %v218, %v255
  %v446 = vsel %vm431, %v219, %v257
  %v449 = vsel %vm431, %v220, %v259
  %v452 = vsel %vm431, %v221, %v261
  %v455 = vsel %vm431, %v222, %v263
  %v458 = vsel %vm431, %v223, %v265
  %v461 = vsel %vm431, %v224, %v267
  %v464 = vsel %vm431, %v225, %v269
  %v467 = vsel %vm431, %v226, %v271
  %v470 = vsel %vm431, %v227, %v273
  %v473 = vsel %vm431, %v228, %v275
  %v476 = vsel %vm431, %v229, %v277
  %v479 = vsel %vm431, %v230, %v279
  %v482 = vsel %vm431, %v231, %v281
  %v485 = vsel %vm431, %v232, %v283
  %v488 = vsel %vm431, %v233, %v285
  %v491 = vsel %vm431, %v234, %v287
  %v494 = vsel %vm431, %v235, %v289
  %v497 = vsel %vm431, %v236, %v291
  %v500 = vsel %vm431, %v237, %v293
  %v503 = vsel %vm431, %v238, %v295
  %v506 = vsel %vm431, %v239, %v297
  %v509 = vsel %vm431, %v240, %v299
  %v512 = vsel %vm431, %v241, %v301
  %v515 = vsel %vm431, %v242, %v303
  %vm516 = vcmask 523264
  %v518 = vsel %vm516, %v434, %v310
  %v520 = vsel %vm516, %v437, %v312
  %v522 = vsel %vm516, %v440, %v314
  %v524 = vsel %vm516, %v443, %v316
  %v526 = vsel %vm516, %v446, %v318
  %v528 = vsel %vm516, %v449, %v320
  %v530 = vsel %vm516, %v452, %v322
  %v532 = vsel %vm516, %v455, %v324
  %v534 = vsel %vm516, %v458, %v326
  %v536 = vsel %vm516, %v461, %v328
  %v538 = vsel %vm516, %v464, %v330
  %v540 = vsel %vm516, %v467, %v332
  %v542 = vsel %vm516, %v470, %v334
  %v544 = vsel %vm516, %v473, %v336
  %v546 = vsel %vm516, %v476, %v338
  %v548 = vsel %vm516, %v479, %v340
  %v550 = vsel %vm516, %v482, %v342
  %v552 = vsel %vm516, %v485, %v344
  %v554 = vsel %vm516, %v488, %v346
  %v556 = vsel %vm516, %v491, %v348
  %v558 = vsel %vm516, %v494, %v350
  %v560 = vsel %vm516, %v497, %v352
  %v562 = vsel %vm516, %v500, %v354
  %v564 = vsel %vm516, %v503, %v356
  %v566 = vsel %vm516, %v506, %v358
  %v568 = vsel %vm516, %v509, %v360
  %v570 = vsel %vm516, %v512, %v362
  %v572 = vsel %vm516, %v515, %v364
  %vm573 = vcmask 785408
  %v575 = vsel %vm573, %v518, %v371
  %v578 = vsel %vm573, %v520, %v373
  %v581 = vsel %vm573, %v522, %v375
  %v584 = vsel %vm573, %v524, %v377
  %v587 = vsel %vm573, %v526, %v379
  %v590 = vsel %vm573, %v528, %v381
  %v593 = vsel %vm573, %v530, %v383
  %v596 = vsel %vm573, %v532, %v385
  %v599 = vsel %vm573, %v534, %v387
  %v602 = vsel %vm573, %v536, %v389
  %v605 = vsel %vm573, %v538, %v391
  %v608 = vsel %vm573, %v540, %v393
  %v611 = vsel %vm573, %v542, %v395
  %v614 = vsel %vm573, %v544, %v397
  %v617 = vsel %vm573, %v546, %v399
  %v620 = vsel %vm573, %v548, %v401
  %v623 = vsel %vm573, %v550, %v403
  %v626 = vsel %vm573, %v552, %v405
  %v629 = vsel %vm573, %v554, %v407
  %v632 = vsel %vm573, %v556, %v409
  %v635 = vsel %vm573, %v558, %v411
  %v638 = vsel %vm573, %v560, %v413
  %v641 = vsel %vm573, %v562, %v415
  %v644 = vsel %vm573, %v564, %v417
  %v647 = vsel %vm573, %v566, %v419
  %v650 = vsel %vm573, %v568, %v421
  %v653 = vsel %vm573, %v570, %v423
  %v656 = vsel %vm573, %v572, %v425
  %v658 = vld [vmem:[%s1] sm:$0xff]
  %v659 = vld [vmem:[%s1 + $0x8] sm:$0xff]
  %v660 = vld [vmem:[%s1 + $0x10] sm:$0xff]
  %v661 = vld [vmem:[%s1 + $0x18] sm:$0xff]
  %v662 = vld [vmem:[%s1 + $0x20] sm:$0xff]
  %v663 = vld [vmem:[%s1 + $0x28] sm:$0xff]
  %v664 = vld [vmem:[%s1 + $0x30] sm:$0xff]
  %v665 = vld [vmem:[%s1 + $0x38] sm:$0xff]
  %v666 = vld [vmem:[%s1 + $0x40] sm:$0xff]
  %v667 = vld [vmem:[%s1 + $0x48] sm:$0xff]
  %v668 = vld [vmem:[%s1 + $0x50] sm:$0xff]
  %v669 = vld [vmem:[%s1 + $0x58] sm:$0xff]
  %v670 = vld [vmem:[%s1 + $0x60] sm:$0xff]
  %v671 = vld [vmem:[%s1 + $0x68] sm:$0xff]
  %v672 = vld [vmem:[%s1 + $0x70] sm:$0xff]
  %v673 = vld [vmem:[%s1 + $0x78] sm:$0xff]
  %v674 = vld [vmem:[%s1 + $0x80] sm:$0xff]
  %v675 = vld [vmem:[%s1 + $0x88] sm:$0xff]
  %v676 = vld [vmem:[%s1 + $0x90] sm:$0xff]
  %v677 = vld [vmem:[%s1 + $0x98] sm:$0xff]
  %v678 = vld [vmem:[%s2] sm:$0x3]
  %v680 = vlaneseq
  %v681 = vshrl.u32 %v680, 7
  %v682 = vsub.s32 0, %v681
  %v683 = vrot.slane %v678, %v682
  %v684 = vlaneseq
  %v685 = vshrl.u32 %v684, 7
  %v686 = vsub.s32 1, %v685
  %v687 = vrot.slane %v678, %v686
  %v710 = vunpack.c.l.b16 %v658
  %v711 = vunpack.c.h.b16 %v658
  %v712 = vunpack.c.l.b16 %v659
  %v713 = vunpack.c.h.b16 %v659
  %v714 = vunpack.c.l.b16 %v660
  %v715 = vunpack.c.h.b16 %v660
  %v716 = vunpack.c.l.b16 %v661
  %v717 = vunpack.c.h.b16 %v661
  %v718 = vunpack.c.l.b16 %v662
  %v719 = vunpack.c.h.b16 %v662
  %v720 = vunpack.c.l.b16 %v663
  %v721 = vunpack.c.h.b16 %v663
  %v722 = vunpack.c.l.b16 %v664
  %v723 = vunpack.c.h.b16 %v664
  %v724 = vunpack.c.l.b16 %v665
  %v725 = vunpack.c.h.b16 %v665
  %v726 = vunpack.c.l.b16 %v666
  %v727 = vunpack.c.h.b16 %v666
  %v728 = vunpack.c.l.b16 %v667
  %v729 = vunpack.c.h.b16 %v667
  %v730 = vunpack.c.l.b16 %v668
  %v731 = vunpack.c.h.b16 %v668
  %v732 = vunpack.c.l.b16 %v669
  %v733 = vunpack.c.h.b16 %v669
  %v734 = vunpack.c.l.b16 %v670
  %v735 = vunpack.c.h.b16 %v670
  %v736 = vunpack.c.l.b16 %v671
  %v737 = vunpack.c.h.b16 %v671
  %v738 = vunpack.c.l.b16 %v672
  %v739 = vunpack.c.h.b16 %v672
  %v740 = vunpack.c.l.b16 %v673
  %v741 = vunpack.c.h.b16 %v673
  %v742 = vunpack.c.l.b16 %v674
  %v743 = vunpack.c.h.b16 %v674
  %v744 = vunpack.c.l.b16 %v675
  %v745 = vunpack.c.h.b16 %v675
  %v746 = vunpack.c.l.b16 %v676
  %v747 = vunpack.c.h.b16 %v676
  %v748 = vunpack.c.l.b16 %v677
  %v749 = vunpack.c.h.b16 %v677
  %v750 = vpack.c.b16 %v712, %v710
  %v751 = vpack.c.b16 %v713, %v711
  %v752 = vpack.c.b16 %v716, %v714
  %v753 = vpack.c.b16 %v717, %v715
  %v754 = vpack.c.b16 %v720, %v718
  %v755 = vpack.c.b16 %v721, %v719
  %v756 = vpack.c.b16 %v724, %v722
  %v757 = vpack.c.b16 %v725, %v723
  %v758 = vpack.c.b16 %v728, %v726
  %v759 = vpack.c.b16 %v729, %v727
  %v760 = vpack.c.b16 %v732, %v730
  %v761 = vpack.c.b16 %v733, %v731
  %v762 = vpack.c.b16 %v736, %v734
  %v763 = vpack.c.b16 %v737, %v735
  %v764 = vpack.c.b16 %v740, %v738
  %v765 = vpack.c.b16 %v741, %v739
  %v766 = vpack.c.b16 %v744, %v742
  %v767 = vpack.c.b16 %v745, %v743
  %v768 = vpack.c.b16 %v748, %v746
  %v769 = vpack.c.b16 %v749, %v747
  %v790 = vsel %vm431, %v219, 0
  %v792 = vsel %vm431, %v220, 0
  %v794 = vsel %vm431, %v221, 0
  %v796 = vsel %vm431, %v222, 0
  %v798 = vsel %vm431, %v223, 0
  %v800 = vsel %vm431, %v224, 0
  %v802 = vsel %vm431, %v225, 0
  %v804 = vsel %vm431, %v226, 0
  %v806 = vsel %vm431, %v227, 0
  %v808 = vsel %vm431, %v228, 0
  %v810 = vsel %vm431, %v229, 0
  %v812 = vsel %vm431, %v230, 0
  %v814 = vsel %vm431, %v231, 0
  %v816 = vsel %vm431, %v232, 0
  %v818 = vsel %vm431, %v233, 0
  %v820 = vsel %vm431, %v234, 0
  %v822 = vsel %vm431, %v235, 0
  %v824 = vsel %vm431, %v236, 0
  %v826 = vsel %vm431, %v237, 0
  %v828 = vsel %vm431, %v238, 0
  %v830 = vsel %vm431, %v239, 0
  %v832 = vsel %vm431, %v240, 0
  %v834 = vsel %vm431, %v241, 0
  %v836 = vsel %vm431, %v242, 0
  %v839 = vsel %vm431, %v247, 0
  %v842 = vsel %vm431, %v308, 0
  %v845 = vsel %vm431, %v369, 0
  %v848 = vsel %vm431, %v430, 0
  %850 = vmatprep.subr.bf16.mxu0 %v751
  %851 = vmatpush1.bf16.msra.mxu0 %v750
  %852 = vmatprep.subr.bf16.mxu0 %v753
  %853 = vmatpush1.bf16.msra.mxu0 %v752
  %854 = vmatprep.subr.bf16.mxu0 %v755
  %855 = vmatpush1.bf16.msra.mxu0 %v754
  %856 = vmatprep.subr.bf16.mxu0 %v757
  %857 = vmatpush1.bf16.msra.mxu0 %v756
  %858 = vmatprep.subr.bf16.mxu0 %v759
  %859 = vmatpush1.bf16.msra.mxu0 %v758
  %860 = vmatprep.subr.bf16.mxu0 %v761
  %861 = vmatpush1.bf16.msra.mxu0 %v760
  %862 = vmatprep.subr.bf16.mxu0 %v763
  %863 = vmatpush1.bf16.msra.mxu0 %v762
  %864 = vmatprep.subr.bf16.mxu0 %v765
  %865 = vmatpush1.bf16.msra.mxu0 %v764
  %866 = vmatprep.subr.bf16.mxu0 %v767
  %867 = vmatpush1.bf16.msra.mxu0 %v766
  %868 = vmatprep.subr.bf16.mxu0 %v769
  %869 = vmatpush1.bf16.msra.mxu0 %v768
  %870 = vmatprep.subr.bf16.mxu0 0
  %871 = vmatpush1.bf16.msra.mxu0 0
  %872 = vmatprep.subr.bf16.mxu0 0
  %873 = vmatpush1.bf16.msra.mxu0 0
  %874 = vmatprep.subr.bf16.mxu0 0
  %875 = vmatpush1.bf16.msra.mxu0 0
  %876 = vmatprep.subr.bf16.mxu0 0
  %877 = vmatpush1.bf16.msra.mxu0 0
  %878 = vmatprep.subr.bf16.mxu0 0
  %879 = vmatpush1.bf16.msra.mxu0 0
  %880 = vmatprep.subr.bf16.mxu0 0
  %881 = vmatpush1.bf16.msra.mxu0 0
  %882 = vmatprep.mubr.bf16.mxu0 %v790
  %883 = vmatmul.mubr.bf16.gmra.mrb[0].mxu0 %v575
  %v884 = vpop.f32.mrb[0].mxu0
  %v885 = vadd.f32 %v683, %v884
  %v886 = vpop.f32.mrb[0].mxu0
  %v887 = vadd.f32 %v687, %v886
  %v888 = vpop.f32.mrb[0].mxu0
  %v889 = vadd.f32 %v683, %v888
  %v890 = vpop.f32.mrb[0].mxu0
  %v891 = vadd.f32 %v687, %v890
  %892 = vmatprep.mubr.bf16.mxu0 %v792
  %893 = vmatmul.mubr.bf16.gmra.mrb[0].mxu0 %v578
  %v894 = vpop.f32.mrb[0].mxu0
  %v895 = vadd.f32 %v683, %v894
  %v896 = vpop.f32.mrb[0].mxu0
  %v897 = vadd.f32 %v687, %v896
  %v898 = vpop.f32.mrb[0].mxu0
  %v899 = vadd.f32 %v683, %v898
  %v900 = vpop.f32.mrb[0].mxu0
  %v901 = vadd.f32 %v687, %v900
  %902 = vmatprep.mubr.bf16.mxu0 %v794
  %903 = vmatmul.mubr.bf16.gmra.mrb[0].mxu0 %v581
  %v904 = vpop.f32.mrb[0].mxu0
  %v905 = vadd.f32 %v683, %v904
  %v906 = vpop.f32.mrb[0].mxu0
  %v907 = vadd.f32 %v687, %v906
  %v908 = vpop.f32.mrb[0].mxu0
  %v909 = vadd.f32 %v683, %v908
  %v910 = vpop.f32.mrb[0].mxu0
  %v911 = vadd.f32 %v687, %v910
  %912 = vmatprep.mubr.bf16.mxu0 %v796
  %913 = vmatmul.mubr.bf16.gmra.mrb[0].mxu0 %v584
  %v914 = vpop.f32.mrb[0].mxu0
  %v915 = vadd.f32 %v683, %v914
  %v916 = vpop.f32.mrb[0].mxu0
  %v917 = vadd.f32 %v687, %v916
  %v918 = vpop.f32.mrb[0].mxu0
  %v919 = vadd.f32 %v683, %v918
  %v920 = vpop.f32.mrb[0].mxu0
  %v921 = vadd.f32 %v687, %v920
  %922 = vmatprep.mubr.bf16.mxu0 %v798
  %923 = vmatmul.mubr.bf16.gmra.mrb[0].mxu0 %v587
  %v924 = vpop.f32.mrb[0].mxu0
  %v925 = vadd.f32 %v683, %v924
  %v926 = vpop.f32.mrb[0].mxu0
  %v927 = vadd.f32 %v687, %v926
  %v928 = vpop.f32.mrb[0].mxu0
  %v929 = vadd.f32 %v683, %v928
  %v930 = vpop.f32.mrb[0].mxu0
  %v931 = vadd.f32 %v687, %v930
  %932 = vmatprep.mubr.bf16.mxu0 %v800
  %933 = vmatmul.mubr.bf16.gmra.mrb[0].mxu0 %v590
  %v934 = vpop.f32.mrb[0].mxu0
  %v935 = vadd.f32 %v683, %v934
  %v936 = vpop.f32.mrb[0].mxu0
  %v937 = vadd.f32 %v687, %v936
  %v938 = vpop.f32.mrb[0].mxu0
  %v939 = vadd.f32 %v683, %v938
  %v940 = vpop.f32.mrb[0].mxu0
  %v941 = vadd.f32 %v687, %v940
  %942 = vmatprep.mubr.bf16.mxu0 %v802
  %943 = vmatmul.mubr.bf16.gmra.mrb[0].mxu0 %v593
  %v944 = vpop.f32.mrb[0].mxu0
  %v945 = vadd.f32 %v683, %v944
  %v946 = vpop.f32.mrb[0].mxu0
  %v947 = vadd.f32 %v687, %v946
  %v948 = vpop.f32.mrb[0].mxu0
  %v949 = vadd.f32 %v683, %v948
  %v950 = vpop.f32.mrb[0].mxu0
  %v951 = vadd.f32 %v687, %v950
  %952 = vmatprep.mubr.bf16.mxu0 %v804
  %953 = vmatmul.mubr.bf16.gmra.mrb[0].mxu0 %v596
  %v954 = vpop.f32.mrb[0].mxu0
  %v955 = vadd.f32 %v683, %v954
  %v956 = vpop.f32.mrb[0].mxu0
  %v957 = vadd.f32 %v687, %v956
  %v958 = vpop.f32.mrb[0].mxu0
  %v959 = vadd.f32 %v683, %v958
  %v960 = vpop.f32.mrb[0].mxu0
  %v961 = vadd.f32 %v687, %v960
  %962 = vmatprep.mubr.bf16.mxu0 %v806
  %963 = vmatmul.mubr.bf16.gmra.mrb[0].mxu0 %v599
  %v964 = vpop.f32.mrb[0].mxu0
  %v965 = vadd.f32 %v683, %v964
  %v966 = vpop.f32.mrb[0].mxu0
  %v967 = vadd.f32 %v687, %v966
  %v968 = vpop.f32.mrb[0].mxu0
  %v969 = vadd.f32 %v683, %v968
  %v970 = vpop.f32.mrb[0].mxu0
  %v971 = vadd.f32 %v687, %v970
  %972 = vmatprep.mubr.bf16.mxu0 %v808
  %973 = vmatmul.mubr.bf16.gmra.mrb[0].mxu0 %v602
  %v974 = vpop.f32.mrb[0].mxu0
  %v975 = vadd.f32 %v683, %v974
  %v976 = vpop.f32.mrb[0].mxu0
  %v977 = vadd.f32 %v687, %v976
  %v978 = vpop.f32.mrb[0].mxu0
  %v979 = vadd.f32 %v683, %v978
  %v980 = vpop.f32.mrb[0].mxu0
  %v981 = vadd.f32 %v687, %v980
  %982 = vmatprep.mubr.bf16.mxu0 %v810
  %983 = vmatmul.mubr.bf16.gmra.mrb[0].mxu0 %v605
  %v984 = vpop.f32.mrb[0].mxu0
  %v985 = vadd.f32 %v683, %v984
  %v986 = vpop.f32.mrb[0].mxu0
  %v987 = vadd.f32 %v687, %v986
  %v988 = vpop.f32.mrb[0].mxu0
  %v989 = vadd.f32 %v683, %v988
  %v990 = vpop.f32.mrb[0].mxu0
  %v991 = vadd.f32 %v687, %v990
  %992 = vmatprep.mubr.bf16.mxu0 %v812
  %993 = vmatmul.mubr.bf16.gmra.mrb[0].mxu0 %v608
  %v994 = vpop.f32.mrb[0].mxu0
  %v995 = vadd.f32 %v683, %v994
  %v996 = vpop.f32.mrb[0].mxu0
  %v997 = vadd.f32 %v687, %v996
  %v998 = vpop.f32.mrb[0].mxu0
  %v999 = vadd.f32 %v683, %v998
  %v1000 = vpop.f32.mrb[0].mxu0
  %v1001 = vadd.f32 %v687, %v1000
  %1002 = vmatprep.mubr.bf16.mxu0 %v814
  %1003 = vmatmul.mubr.bf16.gmra.mrb[0].mxu0 %v611
  %v1004 = vpop.f32.mrb[0].mxu0
  %v1005 = vadd.f32 %v683, %v1004
  %v1006 = vpop.f32.mrb[0].mxu0
  %v1007 = vadd.f32 %v687, %v1006
  %v1008 = vpop.f32.mrb[0].mxu0
  %v1009 = vadd.f32 %v683, %v1008
  %v1010 = vpop.f32.mrb[0].mxu0
  %v1011 = vadd.f32 %v687, %v1010
  %1012 = vmatprep.mubr.bf16.mxu0 %v816
  %1013 = vmatmul.mubr.bf16.gmra.mrb[0].mxu0 %v614
  %v1014 = vpop.f32.mrb[0].mxu0
  %v1015 = vadd.f32 %v683, %v1014
  %v1016 = vpop.f32.mrb[0].mxu0
  %v1017 = vadd.f32 %v687, %v1016
  %v1018 = vpop.f32.mrb[0].mxu0
  %v1019 = vadd.f32 %v683, %v1018
  %v1020 = vpop.f32.mrb[0].mxu0
  %v1021 = vadd.f32 %v687, %v1020
  %1022 = vmatprep.mubr.bf16.mxu0 %v818
  %1023 = vmatmul.mubr.bf16.gmra.mrb[0].mxu0 %v617
  %v1024 = vpop.f32.mrb[0].mxu0
  %v1025 = vadd.f32 %v683, %v1024
  %v1026 = vpop.f32.mrb[0].mxu0
  %v1027 = vadd.f32 %v687, %v1026
  %v1028 = vpop.f32.mrb[0].mxu0
  %v1029 = vadd.f32 %v683, %v1028
  %v1030 = vpop.f32.mrb[0].mxu0
  %v1031 = vadd.f32 %v687, %v1030
  %1032 = vmatprep.mubr.bf16.mxu0 %v820
  %1033 = vmatmul.mubr.bf16.gmra.mrb[0].mxu0 %v620
  %v1034 = vpop.f32.mrb[0].mxu0
  %v1035 = vadd.f32 %v683, %v1034
  %v1036 = vpop.f32.mrb[0].mxu0
  %v1037 = vadd.f32 %v687, %v1036
  %v1038 = vpop.f32.mrb[0].mxu0
  %v1039 = vadd.f32 %v683, %v1038
  %v1040 = vpop.f32.mrb[0].mxu0
  %v1041 = vadd.f32 %v687, %v1040
  %1042 = vmatprep.mubr.bf16.mxu0 %v822
  %1043 = vmatmul.mubr.bf16.gmra.mrb[0].mxu0 %v623
  %v1044 = vpop.f32.mrb[0].mxu0
  %v1045 = vadd.f32 %v683, %v1044
  %v1046 = vpop.f32.mrb[0].mxu0
  %v1047 = vadd.f32 %v687, %v1046
  %v1048 = vpop.f32.mrb[0].mxu0
  %v1049 = vadd.f32 %v683, %v1048
  %v1050 = vpop.f32.mrb[0].mxu0
  %v1051 = vadd.f32 %v687, %v1050
  %1052 = vmatprep.mubr.bf16.mxu0 %v824
  %1053 = vmatmul.mubr.bf16.gmra.mrb[0].mxu0 %v626
  %v1054 = vpop.f32.mrb[0].mxu0
  %v1055 = vadd.f32 %v683, %v1054
  %v1056 = vpop.f32.mrb[0].mxu0
  %v1057 = vadd.f32 %v687, %v1056
  %v1058 = vpop.f32.mrb[0].mxu0
  %v1059 = vadd.f32 %v683, %v1058
  %v1060 = vpop.f32.mrb[0].mxu0
  %v1061 = vadd.f32 %v687, %v1060
  %1062 = vmatprep.mubr.bf16.mxu0 %v826
  %1063 = vmatmul.mubr.bf16.gmra.mrb[0].mxu0 %v629
  %v1064 = vpop.f32.mrb[0].mxu0
  %v1065 = vadd.f32 %v683, %v1064
  %v1066 = vpop.f32.mrb[0].mxu0
  %v1067 = vadd.f32 %v687, %v1066
  %v1068 = vpop.f32.mrb[0].mxu0
  %v1069 = vadd.f32 %v683, %v1068
  %v1070 = vpop.f32.mrb[0].mxu0
  %v1071 = vadd.f32 %v687, %v1070
  %1072 = vmatprep.mubr.bf16.mxu0 %v828
  %1073 = vmatmul.mubr.bf16.gmra.mrb[0].mxu0 %v632
  %v1074 = vpop.f32.mrb[0].mxu0
  %v1075 = vadd.f32 %v683, %v1074
  %v1076 = vpop.f32.mrb[0].mxu0
  %v1077 = vadd.f32 %v687, %v1076
  %v1078 = vpop.f32.mrb[0].mxu0
  %v1079 = vadd.f32 %v683, %v1078
  %v1080 = vpop.f32.mrb[0].mxu0
  %v1081 = vadd.f32 %v687, %v1080
  %1082 = vmatprep.mubr.bf16.mxu0 %v830
  %1083 = vmatmul.mubr.bf16.gmra.mrb[0].mxu0 %v635
  %v1084 = vpop.f32.mrb[0].mxu0
  %v1085 = vadd.f32 %v683, %v1084
  %v1086 = vpop.f32.mrb[0].mxu0
  %v1087 = vadd.f32 %v687, %v1086
  %v1088 = vpop.f32.mrb[0].mxu0
  %v1089 = vadd.f32 %v683, %v1088
  %v1090 = vpop.f32.mrb[0].mxu0
  %v1091 = vadd.f32 %v687, %v1090
  %1092 = vmatprep.mubr.bf16.mxu0 %v832
  %1093 = vmatmul.mubr.bf16.gmra.mrb[0].mxu0 %v638
  %v1094 = vpop.f32.mrb[0].mxu0
  %v1095 = vadd.f32 %v683, %v1094
  %v1096 = vpop.f32.mrb[0].mxu0
  %v1097 = vadd.f32 %v687, %v1096
  %v1098 = vpop.f32.mrb[0].mxu0
  %v1099 = vadd.f32 %v683, %v1098
  %v1100 = vpop.f32.mrb[0].mxu0
  %v1101 = vadd.f32 %v687, %v1100
  %1102 = vmatprep.mubr.bf16.mxu0 %v834
  %1103 = vmatmul.mubr.bf16.gmra.mrb[0].mxu0 %v641
  %v1104 = vpop.f32.mrb[0].mxu0
  %v1105 = vadd.f32 %v683, %v1104
  %v1106 = vpop.f32.mrb[0].mxu0
  %v1107 = vadd.f32 %v687, %v1106
  %v1108 = vpop.f32.mrb[0].mxu0
  %v1109 = vadd.f32 %v683, %v1108
  %v1110 = vpop.f32.mrb[0].mxu0
  %v1111 = vadd.f32 %v687, %v1110
  %1112 = vmatprep.mubr.bf16.mxu0 %v836
  %1113 = vmatmul.mubr.bf16.gmra.mrb[0].mxu0 %v644
  %v1114 = vpop.f32.mrb[0].mxu0
  %v1115 = vadd.f32 %v683, %v1114
  %v1116 = vpop.f32.mrb[0].mxu0
  %v1117 = vadd.f32 %v687, %v1116
  %v1118 = vpop.f32.mrb[0].mxu0
  %v1119 = vadd.f32 %v683, %v1118
  %v1120 = vpop.f32.mrb[0].mxu0
  %v1121 = vadd.f32 %v687, %v1120
  %1122 = vmatprep.mubr.bf16.mxu0 %v839
  %1123 = vmatmul.mubr.bf16.gmra.mrb[0].mxu0 %v647
  %v1124 = vpop.f32.mrb[0].mxu0
  %v1125 = vadd.f32 %v683, %v1124
  %v1126 = vpop.f32.mrb[0].mxu0
  %v1127 = vadd.f32 %v687, %v1126
  %v1128 = vpop.f32.mrb[0].mxu0
  %v1129 = vadd.f32 %v683, %v1128
  %v1130 = vpop.f32.mrb[0].mxu0
  %v1131 = vadd.f32 %v687, %v1130
  %1132 = vmatprep.mubr.bf16.mxu0 %v842
  %1133 = vmatmul.mubr.bf16.gmra.mrb[0].mxu0 %v650
  %v1134 = vpop.f32.mrb[0].mxu0
  %v1135 = vadd.f32 %v683, %v1134
  %v1136 = vpop.f32.mrb[0].mxu0
  %v1137 = vadd.f32 %v687, %v1136
  %v1138 = vpop.f32.mrb[0].mxu0
  %v1139 = vadd.f32 %v683, %v1138
  %v1140 = vpop.f32.mrb[0].mxu0
  %v1141 = vadd.f32 %v687, %v1140
  %1142 = vmatprep.mubr.bf16.mxu0 %v845
  %1143 = vmatmul.mubr.bf16.gmra.mrb[0].mxu0 %v653
  %v1144 = vpop.f32.mrb[0].mxu0
  %v1145 = vadd.f32 %v683, %v1144
  %v1146 = vpop.f32.mrb[0].mxu0
  %v1147 = vadd.f32 %v687, %v1146
  %v1148 = vpop.f32.mrb[0].mxu0
  %v1149 = vadd.f32 %v683, %v1148
  %v1150 = vpop.f32.mrb[0].mxu0
  %v1151 = vadd.f32 %v687, %v1150
  %1152 = vmatprep.mubr.bf16.mxu0 %v848
  %1153 = vmatmul.mubr.bf16.gmra.mrb[0].mxu0 %v656
  %v1154 = vpop.f32.mrb[0].mxu0
  %v1155 = vadd.f32 %v683, %v1154
  %v1156 = vpop.f32.mrb[0].mxu0
  %v1157 = vadd.f32 %v687, %v1156
  %v1158 = vpop.f32.mrb[0].mxu0
  %v1159 = vadd.f32 %v683, %v1158
  %v1160 = vpop.f32.mrb[0].mxu0
  %v1161 = vadd.f32 %v687, %v1160
  %1162 = vdwg.mxu0
  %v1163 = vmax.f32 %v885, 0.0
  %v1164 = vmax.f32 %v887, 0.0
  %v1165 = vmax.f32 %v889, 0.0
  %v1166 = vmax.f32 %v891, 0.0
  %v1167 = vmax.f32 %v895, 0.0
  %v1168 = vmax.f32 %v897, 0.0
  %v1169 = vmax.f32 %v899, 0.0
  %v1170 = vmax.f32 %v901, 0.0
  %v1171 = vmax.f32 %v905, 0.0
  %v1172 = vmax.f32 %v907, 0.0
  %v1173 = vmax.f32 %v909, 0.0
  %v1174 = vmax.f32 %v911, 0.0
  %v1175 = vmax.f32 %v915, 0.0
  %v1176 = vmax.f32 %v917, 0.0
  %v1177 = vmax.f32 %v919, 0.0
  %v1178 = vmax.f32 %v921, 0.0
  %v1179 = vmax.f32 %v925, 0.0
  %v1180 = vmax.f32 %v927, 0.0
  %v1181 = vmax.f32 %v929, 0.0
  %v1182 = vmax.f32 %v931, 0.0
  %v1183 = vmax.f32 %v935, 0.0
  %v1184 = vmax.f32 %v937, 0.0
  %v1185 = vmax.f32 %v939, 0.0
  %v1186 = vmax.f32 %v941, 0.0
  %v1187 = vmax.f32 %v945, 0.0
  %v1188 = vmax.f32 %v947, 0.0
  %v1189 = vmax.f32 %v949, 0.0
  %v1190 = vmax.f32 %v951, 0.0
  %v1191 = vmax.f32 %v955, 0.0
  %v1192 = vmax.f32 %v957, 0.0
  %v1193 = vmax.f32 %v959, 0.0
  %v1194 = vmax.f32 %v961, 0.0
  %v1195 = vmax.f32 %v965, 0.0
  %v1196 = vmax.f32 %v967, 0.0
  %v1197 = vmax.f32 %v969, 0.0
  %v1198 = vmax.f32 %v971, 0.0
  %v1199 = vmax.f32 %v975, 0.0
  %v1200 = vmax.f32 %v977, 0.0
  %v1201 = vmax.f32 %v979, 0.0
  %v1202 = vmax.f32 %v981, 0.0
  %v1203 = vmax.f32 %v985, 0.0
  %v1204 = vmax.f32 %v987, 0.0
  %v1205 = vmax.f32 %v989, 0.0
  %v1206 = vmax.f32 %v991, 0.0
  %v1207 = vmax.f32 %v995, 0.0
  %v1208 = vmax.f32 %v997, 0.0
  %v1209 = vmax.f32 %v999, 0.0
  %v1210 = vmax.f32 %v1001, 0.0
  %v1211 = vmax.f32 %v1005, 0.0
  %v1212 = vmax.f32 %v1007, 0.0
  %v1213 = vmax.f32 %v1009, 0.0
  %v1214 = vmax.f32 %v1011, 0.0
  %v1215 = vmax.f32 %v1015, 0.0
  %v1216 = vmax.f32 %v1017, 0.0
  %v1217 = vmax.f32 %v1019, 0.0
  %v1218 = vmax.f32 %v1021, 0.0
  %v1219 = vmax.f32 %v1025, 0.0
  %v1220 = vmax.f32 %v1027, 0.0
  %v1221 = vmax.f32 %v1029, 0.0
  %v1222 = vmax.f32 %v1031, 0.0
  %v1223 = vmax.f32 %v1035, 0.0
  %v1224 = vmax.f32 %v1037, 0.0
  %v1225 = vmax.f32 %v1039, 0.0
  %v1226 = vmax.f32 %v1041, 0.0
  %v1227 = vmax.f32 %v1045, 0.0
  %v1228 = vmax.f32 %v1047, 0.0
  %v1229 = vmax.f32 %v1049, 0.0
  %v1230 = vmax.f32 %v1051, 0.0
  %v1231 = vmax.f32 %v1055, 0.0
  %v1232 = vmax.f32 %v1057, 0.0
  %v1233 = vmax.f32 %v1059, 0.0
  %v1234 = vmax.f32 %v1061, 0.0
  %v1235 = vmax.f32 %v1065, 0.0
  %v1236 = vmax.f32 %v1067, 0.0
  %v1237 = vmax.f32 %v1069, 0.0
  %v1238 = vmax.f32 %v1071, 0.0
  %v1239 = vmax.f32 %v1075, 0.0
  %v1240 = vmax.f32 %v1077, 0.0
  %v1241 = vmax.f32 %v1079, 0.0
  %v1242 = vmax.f32 %v1081, 0.0
  %v1243 = vmax.f32 %v1085, 0.0
  %v1244 = vmax.f32 %v1087, 0.0
  %v1245 = vmax.f32 %v1089, 0.0
  %v1246 = vmax.f32 %v1091, 0.0
  %v1247 = vmax.f32 %v1095, 0.0
  %v1248 = vmax.f32 %v1097, 0.0
  %v1249 = vmax.f32 %v1099, 0.0
  %v1250 = vmax.f32 %v1101, 0.0
  %v1251 = vmax.f32 %v1105, 0.0
  %v1252 = vmax.f32 %v1107, 0.0
  %v1253 = vmax.f32 %v1109, 0.0
  %v1254 = vmax.f32 %v1111, 0.0
  %v1255 = vmax.f32 %v1115, 0.0
  %v1256 = vmax.f32 %v1117, 0.0
  %v1257 = vmax.f32 %v1119, 0.0
  %v1258 = vmax.f32 %v1121, 0.0
  %v1259 = vmax.f32 %v1125, 0.0
  %v1260 = vmax.f32 %v1127, 0.0
  %v1261 = vmax.f32 %v1129, 0.0
  %v1262 = vmax.f32 %v1131, 0.0
  %v1263 = vmax.f32 %v1135, 0.0
  %v1264 = vmax.f32 %v1137, 0.0
  %v1265 = vmax.f32 %v1139, 0.0
  %v1266 = vmax.f32 %v1141, 0.0
  %v1267 = vmax.f32 %v1145, 0.0
  %v1268 = vmax.f32 %v1147, 0.0
  %v1269 = vmax.f32 %v1149, 0.0
  %v1270 = vmax.f32 %v1151, 0.0
  %v1271 = vmax.f32 %v1155, 0.0
  %v1272 = vmax.f32 %v1157, 0.0
  %v1273 = vmax.f32 %v1159, 0.0
  %v1274 = vmax.f32 %v1161, 0.0
  %1387 = vrot.lane.b32.xlu0 %v1163, 122
  %v1388 = vpop.permute.xlu0 %1387
  %1389 = vrot.lane.b32.xlu0 %v1164, 122
  %v1390 = vpop.permute.xlu0 %1389
  %1391 = vrot.lane.b32.xlu0 %v1165, 122
  %v1392 = vpop.permute.xlu0 %1391
  %1393 = vrot.lane.b32.xlu0 %v1166, 122
  %v1394 = vpop.permute.xlu0 %1393
  %1395 = vrot.lane.b32.xlu0 %v1167, 122
  %v1396 = vpop.permute.xlu0 %1395
  %1397 = vrot.lane.b32.xlu0 %v1168, 122
  %v1398 = vpop.permute.xlu0 %1397
  %1399 = vrot.lane.b32.xlu0 %v1169, 122
  %v1400 = vpop.permute.xlu0 %1399
  %1401 = vrot.lane.b32.xlu0 %v1170, 122
  %v1402 = vpop.permute.xlu0 %1401
  %1403 = vrot.lane.b32.xlu0 %v1171, 122
  %v1404 = vpop.permute.xlu0 %1403
  %1405 = vrot.lane.b32.xlu0 %v1172, 122
  %v1406 = vpop.permute.xlu0 %1405
  %1407 = vrot.lane.b32.xlu0 %v1173, 122
  %v1408 = vpop.permute.xlu0 %1407
  %1409 = vrot.lane.b32.xlu0 %v1174, 122
  %v1410 = vpop.permute.xlu0 %1409
  %1411 = vrot.lane.b32.xlu0 %v1175, 122
  %v1412 = vpop.permute.xlu0 %1411
  %1413 = vrot.lane.b32.xlu0 %v1176, 122
  %v1414 = vpop.permute.xlu0 %1413
  %1415 = vrot.lane.b32.xlu0 %v1177, 122
  %v1416 = vpop.permute.xlu0 %1415
  %1417 = vrot.lane.b32.xlu0 %v1178, 122
  %v1418 = vpop.permute.xlu0 %1417
  %1419 = vrot.lane.b32.xlu0 %v1179, 122
  %v1420 = vpop.permute.xlu0 %1419
  %1421 = vrot.lane.b32.xlu0 %v1180, 122
  %v1422 = vpop.permute.xlu0 %1421
  %1423 = vrot.lane.b32.xlu0 %v1181, 122
  %v1424 = vpop.permute.xlu0 %1423
  %1425 = vrot.lane.b32.xlu0 %v1182, 122
  %v1426 = vpop.permute.xlu0 %1425
  %1427 = vrot.lane.b32.xlu0 %v1183, 122
  %v1428 = vpop.permute.xlu0 %1427
  %1429 = vrot.lane.b32.xlu0 %v1184, 122
  %v1430 = vpop.permute.xlu0 %1429
  %1431 = vrot.lane.b32.xlu0 %v1185, 122
  %v1432 = vpop.permute.xlu0 %1431
  %1433 = vrot.lane.b32.xlu0 %v1186, 122
  %v1434 = vpop.permute.xlu0 %1433
  %1435 = vrot.lane.b32.xlu0 %v1187, 122
  %v1436 = vpop.permute.xlu0 %1435
  %1437 = vrot.lane.b32.xlu0 %v1188, 122
  %v1438 = vpop.permute.xlu0 %1437
  %1439 = vrot.lane.b32.xlu0 %v1189, 122
  %v1440 = vpop.permute.xlu0 %1439
  %1441 = vrot.lane.b32.xlu0 %v1190, 122
  %v1442 = vpop.permute.xlu0 %1441
  %1443 = vrot.lane.b32.xlu0 %v1191, 122
  %v1444 = vpop.permute.xlu0 %1443
  %1445 = vrot.lane.b32.xlu0 %v1192, 122
  %v1446 = vpop.permute.xlu0 %1445
  %1447 = vrot.lane.b32.xlu0 %v1193, 122
  %v1448 = vpop.permute.xlu0 %1447
  %1449 = vrot.lane.b32.xlu0 %v1194, 122
  %v1450 = vpop.permute.xlu0 %1449
  %1451 = vrot.lane.b32.xlu0 %v1195, 122
  %v1452 = vpop.permute.xlu0 %1451
  %1453 = vrot.lane.b32.xlu0 %v1196, 122
  %v1454 = vpop.permute.xlu0 %1453
  %1455 = vrot.lane.b32.xlu0 %v1197, 122
  %v1456 = vpop.permute.xlu0 %1455
  %1457 = vrot.lane.b32.xlu0 %v1198, 122
  %v1458 = vpop.permute.xlu0 %1457
  %1459 = vrot.lane.b32.xlu0 %v1199, 122
  %v1460 = vpop.permute.xlu0 %1459
  %1461 = vrot.lane.b32.xlu0 %v1200, 122
  %v1462 = vpop.permute.xlu0 %1461
  %1463 = vrot.lane.b32.xlu0 %v1201, 122
  %v1464 = vpop.permute.xlu0 %1463
  %1465 = vrot.lane.b32.xlu0 %v1202, 122
  %v1466 = vpop.permute.xlu0 %1465
  %1467 = vrot.lane.b32.xlu0 %v1203, 122
  %v1468 = vpop.permute.xlu0 %1467
  %1469 = vrot.lane.b32.xlu0 %v1204, 122
  %v1470 = vpop.permute.xlu0 %1469
  %1471 = vrot.lane.b32.xlu0 %v1205, 122
  %v1472 = vpop.permute.xlu0 %1471
  %1473 = vrot.lane.b32.xlu0 %v1206, 122
  %v1474 = vpop.permute.xlu0 %1473
  %1475 = vrot.lane.b32.xlu0 %v1207, 122
  %v1476 = vpop.permute.xlu0 %1475
  %1477 = vrot.lane.b32.xlu0 %v1208, 122
  %v1478 = vpop.permute.xlu0 %1477
  %1479 = vrot.lane.b32.xlu0 %v1209, 122
  %v1480 = vpop.permute.xlu0 %1479
  %1481 = vrot.lane.b32.xlu0 %v1210, 122
  %v1482 = vpop.permute.xlu0 %1481
  %1483 = vrot.lane.b32.xlu0 %v1211, 122
  %v1484 = vpop.permute.xlu0 %1483
  %1485 = vrot.lane.b32.xlu0 %v1212, 122
  %v1486 = vpop.permute.xlu0 %1485
  %1487 = vrot.lane.b32.xlu0 %v1213, 122
  %v1488 = vpop.permute.xlu0 %1487
  %1489 = vrot.lane.b32.xlu0 %v1214, 122
  %v1490 = vpop.permute.xlu0 %1489
  %1491 = vrot.lane.b32.xlu0 %v1215, 122
  %v1492 = vpop.permute.xlu0 %1491
  %1493 = vrot.lane.b32.xlu0 %v1216, 122
  %v1494 = vpop.permute.xlu0 %1493
  %1495 = vrot.lane.b32.xlu0 %v1217, 122
  %v1496 = vpop.permute.xlu0 %1495
  %1497 = vrot.lane.b32.xlu0 %v1218, 122
  %v1498 = vpop.permute.xlu0 %1497
  %1499 = vrot.lane.b32.xlu0 %v1219, 122
  %v1500 = vpop.permute.xlu0 %1499
  %1501 = vrot.lane.b32.xlu0 %v1220, 122
  %v1502 = vpop.permute.xlu0 %1501
  %1503 = vrot.lane.b32.xlu0 %v1221, 122
  %v1504 = vpop.permute.xlu0 %1503
  %1505 = vrot.lane.b32.xlu0 %v1222, 122
  %v1506 = vpop.permute.xlu0 %1505
  %1507 = vrot.lane.b32.xlu0 %v1223, 122
  %v1508 = vpop.permute.xlu0 %1507
  %1509 = vrot.lane.b32.xlu0 %v1224, 122
  %v1510 = vpop.permute.xlu0 %1509
  %1511 = vrot.lane.b32.xlu0 %v1225, 122
  %v1512 = vpop.permute.xlu0 %1511
  %1513 = vrot.lane.b32.xlu0 %v1226, 122
  %v1514 = vpop.permute.xlu0 %1513
  %1515 = vrot.lane.b32.xlu0 %v1227, 122
  %v1516 = vpop.permute.xlu0 %1515
  %1517 = vrot.lane.b32.xlu0 %v1228, 122
  %v1518 = vpop.permute.xlu0 %1517
  %1519 = vrot.lane.b32.xlu0 %v1229, 122
  %v1520 = vpop.permute.xlu0 %1519
  %1521 = vrot.lane.b32.xlu0 %v1230, 122
  %v1522 = vpop.permute.xlu0 %1521
  %1523 = vrot.lane.b32.xlu0 %v1231, 122
  %v1524 = vpop.permute.xlu0 %1523
  %1525 = vrot.lane.b32.xlu0 %v1232, 122
  %v1526 = vpop.permute.xlu0 %1525
  %1527 = vrot.lane.b32.xlu0 %v1233, 122
  %v1528 = vpop.permute.xlu0 %1527
  %1529 = vrot.lane.b32.xlu0 %v1234, 122
  %v1530 = vpop.permute.xlu0 %1529
  %1531 = vrot.lane.b32.xlu0 %v1235, 122
  %v1532 = vpop.permute.xlu0 %1531
  %1533 = vrot.lane.b32.xlu0 %v1236, 122
  %v1534 = vpop.permute.xlu0 %1533
  %1535 = vrot.lane.b32.xlu0 %v1237, 122
  %v1536 = vpop.permute.xlu0 %1535
  %1537 = vrot.lane.b32.xlu0 %v1238, 122
  %v1538 = vpop.permute.xlu0 %1537
  %1539 = vrot.lane.b32.xlu0 %v1239, 122
  %v1540 = vpop.permute.xlu0 %1539
  %1541 = vrot.lane.b32.xlu0 %v1240, 122
  %v1542 = vpop.permute.xlu0 %1541
  %1543 = vrot.lane.b32.xlu0 %v1241, 122
  %v1544 = vpop.permute.xlu0 %1543
  %1545 = vrot.lane.b32.xlu0 %v1242, 122
  %v1546 = vpop.permute.xlu0 %1545
  %1547 = vrot.lane.b32.xlu0 %v1243, 122
  %v1548 = vpop.permute.xlu0 %1547
  %1549 = vrot.lane.b32.xlu0 %v1244, 122
  %v1550 = vpop.permute.xlu0 %1549
  %1551 = vrot.lane.b32.xlu0 %v1245, 122
  %v1552 = vpop.permute.xlu0 %1551
  %1553 = vrot.lane.b32.xlu0 %v1246, 122
  %v1554 = vpop.permute.xlu0 %1553
  %1555 = vrot.lane.b32.xlu0 %v1247, 122
  %v1556 = vpop.permute.xlu0 %1555
  %1557 = vrot.lane.b32.xlu0 %v1248, 122
  %v1558 = vpop.permute.xlu0 %1557
  %1559 = vrot.lane.b32.xlu0 %v1249, 122
  %v1560 = vpop.permute.xlu0 %1559
  %1561 = vrot.lane.b32.xlu0 %v1250, 122
  %v1562 = vpop.permute.xlu0 %1561
  %1563 = vrot.lane.b32.xlu0 %v1251, 122
  %v1564 = vpop.permute.xlu0 %1563
  %1565 = vrot.lane.b32.xlu0 %v1252, 122
  %v1566 = vpop.permute.xlu0 %1565
  %1567 = vrot.lane.b32.xlu0 %v1253, 122
  %v1568 = vpop.permute.xlu0 %1567
  %1569 = vrot.lane.b32.xlu0 %v1254, 122
  %v1570 = vpop.permute.xlu0 %1569
  %1571 = vrot.lane.b32.xlu0 %v1255, 122
  %v1572 = vpop.permute.xlu0 %1571
  %1573 = vrot.lane.b32.xlu0 %v1256, 122
  %v1574 = vpop.permute.xlu0 %1573
  %1575 = vrot.lane.b32.xlu0 %v1257, 122
  %v1576 = vpop.permute.xlu0 %1575
  %1577 = vrot.lane.b32.xlu0 %v1258, 122
  %v1578 = vpop.permute.xlu0 %1577
  %1579 = vrot.lane.b32.xlu0 %v1259, 122
  %v1580 = vpop.permute.xlu0 %1579
  %1581 = vrot.lane.b32.xlu0 %v1260, 122
  %v1582 = vpop.permute.xlu0 %1581
  %1583 = vrot.lane.b32.xlu0 %v1261, 122
  %v1584 = vpop.permute.xlu0 %1583
  %1585 = vrot.lane.b32.xlu0 %v1262, 122
  %v1586 = vpop.permute.xlu0 %1585
  %1587 = vrot.lane.b32.xlu0 %v1263, 122
  %v1588 = vpop.permute.xlu0 %1587
  %1589 = vrot.lane.b32.xlu0 %v1264, 122
  %v1590 = vpop.permute.xlu0 %1589
  %1591 = vrot.lane.b32.xlu0 %v1265, 122
  %v1592 = vpop.permute.xlu0 %1591
  %1593 = vrot.lane.b32.xlu0 %v1266, 122
  %v1594 = vpop.permute.xlu0 %1593
  %1595 = vrot.lane.b32.xlu0 %v1267, 122
  %v1596 = vpop.permute.xlu0 %1595
  %1597 = vrot.lane.b32.xlu0 %v1268, 122
  %v1598 = vpop.permute.xlu0 %1597
  %1599 = vrot.lane.b32.xlu0 %v1269, 122
  %v1600 = vpop.permute.xlu0 %1599
  %1601 = vrot.lane.b32.xlu0 %v1270, 122
  %v1602 = vpop.permute.xlu0 %1601
  %1603 = vrot.lane.b32.xlu0 %v1271, 122
  %v1604 = vpop.permute.xlu0 %1603
  %1605 = vrot.lane.b32.xlu0 %v1272, 122
  %v1606 = vpop.permute.xlu0 %1605
  %1607 = vrot.lane.b32.xlu0 %v1273, 122
  %v1608 = vpop.permute.xlu0 %1607
  %1609 = vrot.lane.b32.xlu0 %v1274, 122
  %v1610 = vpop.permute.xlu0 %1609
  %vm1611 = vcmask 998400
  %v1612 = vsel %vm1611, %v1388, %v1390
  %v1613 = vsel %vm1611, %v1392, %v1394
  %v1614 = vsel %vm1611, %v1396, %v1398
  %v1615 = vsel %vm1611, %v1400, %v1402
  %v1616 = vsel %vm1611, %v1404, %v1406
  %v1617 = vsel %vm1611, %v1408, %v1410
  %v1618 = vsel %vm1611, %v1412, %v1414
  %v1619 = vsel %vm1611, %v1416, %v1418
  %v1620 = vsel %vm1611, %v1420, %v1422
  %v1621 = vsel %vm1611, %v1424, %v1426
  %v1622 = vsel %vm1611, %v1428, %v1430
  %v1623 = vsel %vm1611, %v1432, %v1434
  %v1624 = vsel %vm1611, %v1436, %v1438
  %v1625 = vsel %vm1611, %v1440, %v1442
  %v1626 = vsel %vm1611, %v1444, %v1446
  %v1627 = vsel %vm1611, %v1448, %v1450
  %v1628 = vsel %vm1611, %v1452, %v1454
  %v1629 = vsel %vm1611, %v1456, %v1458
  %v1630 = vsel %vm1611, %v1460, %v1462
  %v1631 = vsel %vm1611, %v1464, %v1466
  %v1632 = vsel %vm1611, %v1468, %v1470
  %v1633 = vsel %vm1611, %v1472, %v1474
  %v1634 = vsel %vm1611, %v1476, %v1478
  %v1635 = vsel %vm1611, %v1480, %v1482
  %v1636 = vsel %vm1611, %v1484, %v1486
  %v1637 = vsel %vm1611, %v1488, %v1490
  %v1638 = vsel %vm1611, %v1492, %v1494
  %v1639 = vsel %vm1611, %v1496, %v1498
  %v1640 = vsel %vm1611, %v1500, %v1502
  %v1641 = vsel %vm1611, %v1504, %v1506
  %v1642 = vsel %vm1611, %v1508, %v1510
  %v1643 = vsel %vm1611, %v1512, %v1514
  %v1644 = vsel %vm1611, %v1516, %v1518
  %v1645 = vsel %vm1611, %v1520, %v1522
  %v1646 = vsel %vm1611, %v1524, %v1526
  %v1647 = vsel %vm1611, %v1528, %v1530
  %v1648 = vsel %vm1611, %v1532, %v1534
  %v1649 = vsel %vm1611, %v1536, %v1538
  %v1650 = vsel %vm1611, %v1540, %v1542
  %v1651 = vsel %vm1611, %v1544, %v1546
  %v1652 = vsel %vm1611, %v1548, %v1550
  %v1653 = vsel %vm1611, %v1552, %v1554
  %v1654 = vsel %vm1611, %v1556, %v1558
  %v1655 = vsel %vm1611, %v1560, %v1562
  %v1656 = vsel %vm1611, %v1564, %v1566
  %v1657 = vsel %vm1611, %v1568, %v1570
  %v1658 = vsel %vm1611, %v1572, %v1574
  %v1659 = vsel %vm1611, %v1576, %v1578
  %v1660 = vsel %vm1611, %v1580, %v1582
  %v1661 = vsel %vm1611, %v1584, %v1586
  %v1662 = vsel %vm1611, %v1588, %v1590
  %v1663 = vsel %vm1611, %v1592, %v1594
  %v1664 = vsel %vm1611, %v1596, %v1598
  %v1665 = vsel %vm1611, %v1600, %v1602
  %v1666 = vsel %vm1611, %v1604, %v1606
  %v1667 = vsel %vm1611, %v1608, %v1610
  %v1780 = vmax.f32 %v1163, %v1612
  %v1781 = vmax.f32 %v1164, %v1390
  %v1782 = vmax.f32 %v1165, %v1613
  %v1783 = vmax.f32 %v1166, %v1394
  %v1784 = vmax.f32 %v1167, %v1614
  %v1785 = vmax.f32 %v1168, %v1398
  %v1786 = vmax.f32 %v1169, %v1615
  %v1787 = vmax.f32 %v1170, %v1402
  %v1788 = vmax.f32 %v1171, %v1616
  %v1789 = vmax.f32 %v1172, %v1406
  %v1790 = vmax.f32 %v1173, %v1617
  %v1791 = vmax.f32 %v1174, %v1410
  %v1792 = vmax.f32 %v1175, %v1618
  %v1793 = vmax.f32 %v1176, %v1414
  %v1794 = vmax.f32 %v1177, %v1619
  %v1795 = vmax.f32 %v1178, %v1418
  %v1796 = vmax.f32 %v1179, %v1620
  %v1797 = vmax.f32 %v1180, %v1422
  %v1798 = vmax.f32 %v1181, %v1621
  %v1799 = vmax.f32 %v1182, %v1426
  %v1800 = vmax.f32 %v1183, %v1622
  %v1801 = vmax.f32 %v1184, %v1430
  %v1802 = vmax.f32 %v1185, %v1623
  %v1803 = vmax.f32 %v1186, %v1434
  %v1804 = vmax.f32 %v1187, %v1624
  %v1805 = vmax.f32 %v1188, %v1438
  %v1806 = vmax.f32 %v1189, %v1625
  %v1807 = vmax.f32 %v1190, %v1442
  %v1808 = vmax.f32 %v1191, %v1626
  %v1809 = vmax.f32 %v1192, %v1446
  %v1810 = vmax.f32 %v1193, %v1627
  %v1811 = vmax.f32 %v1194, %v1450
  %v1812 = vmax.f32 %v1195, %v1628
  %v1813 = vmax.f32 %v1196, %v1454
  %v1814 = vmax.f32 %v1197, %v1629
  %v1815 = vmax.f32 %v1198, %v1458
  %v1816 = vmax.f32 %v1199, %v1630
  %v1817 = vmax.f32 %v1200, %v1462
  %v1818 = vmax.f32 %v1201, %v1631
  %v1819 = vmax.f32 %v1202, %v1466
  %v1820 = vmax.f32 %v1203, %v1632
  %v1821 = vmax.f32 %v1204, %v1470
  %v1822 = vmax.f32 %v1205, %v1633
  %v1823 = vmax.f32 %v1206, %v1474
  %v1824 = vmax.f32 %v1207, %v1634
  %v1825 = vmax.f32 %v1208, %v1478
  %v1826 = vmax.f32 %v1209, %v1635
  %v1827 = vmax.f32 %v1210, %v1482
  %v1828 = vmax.f32 %v1211, %v1636
  %v1829 = vmax.f32 %v1212, %v1486
  %v1830 = vmax.f32 %v1213, %v1637
  %v1831 = vmax.f32 %v1214, %v1490
  %v1832 = vmax.f32 %v1215, %v1638
  %v1833 = vmax.f32 %v1216, %v1494
  %v1834 = vmax.f32 %v1217, %v1639
  %v1835 = vmax.f32 %v1218, %v1498
  %v1836 = vmax.f32 %v1219, %v1640
  %v1837 = vmax.f32 %v1220, %v1502
  %v1838 = vmax.f32 %v1221, %v1641
  %v1839 = vmax.f32 %v1222, %v1506
  %v1840 = vmax.f32 %v1223, %v1642
  %v1841 = vmax.f32 %v1224, %v1510
  %v1842 = vmax.f32 %v1225, %v1643
  %v1843 = vmax.f32 %v1226, %v1514
  %v1844 = vmax.f32 %v1227, %v1644
  %v1845 = vmax.f32 %v1228, %v1518
  %v1846 = vmax.f32 %v1229, %v1645
  %v1847 = vmax.f32 %v1230, %v1522
  %v1848 = vmax.f32 %v1231, %v1646
  %v1849 = vmax.f32 %v1232, %v1526
  %v1850 = vmax.f32 %v1233, %v1647
  %v1851 = vmax.f32 %v1234, %v1530
  %v1852 = vmax.f32 %v1235, %v1648
  %v1853 = vmax.f32 %v1236, %v1534
  %v1854 = vmax.f32 %v1237, %v1649
  %v1855 = vmax.f32 %v1238, %v1538
  %v1856 = vmax.f32 %v1239, %v1650
  %v1857 = vmax.f32 %v1240, %v1542
  %v1858 = vmax.f32 %v1241, %v1651
  %v1859 = vmax.f32 %v1242, %v1546
  %v1860 = vmax.f32 %v1243, %v1652
  %v1861 = vmax.f32 %v1244, %v1550
  %v1862 = vmax.f32 %v1245, %v1653
  %v1863 = vmax.f32 %v1246, %v1554
  %v1864 = vmax.f32 %v1247, %v1654
  %v1865 = vmax.f32 %v1248, %v1558
  %v1866 = vmax.f32 %v1249, %v1655
  %v1867 = vmax.f32 %v1250, %v1562
  %v1868 = vmax.f32 %v1251, %v1656
  %v1869 = vmax.f32 %v1252, %v1566
  %v1870 = vmax.f32 %v1253, %v1657
  %v1871 = vmax.f32 %v1254, %v1570
  %v1872 = vmax.f32 %v1255, %v1658
  %v1873 = vmax.f32 %v1256, %v1574
  %v1874 = vmax.f32 %v1257, %v1659
  %v1875 = vmax.f32 %v1258, %v1578
  %v1876 = vmax.f32 %v1259, %v1660
  %v1877 = vmax.f32 %v1260, %v1582
  %v1878 = vmax.f32 %v1261, %v1661
  %v1879 = vmax.f32 %v1262, %v1586
  %v1880 = vmax.f32 %v1263, %v1662
  %v1881 = vmax.f32 %v1264, %v1590
  %v1882 = vmax.f32 %v1265, %v1663
  %v1883 = vmax.f32 %v1266, %v1594
  %v1884 = vmax.f32 %v1267, %v1664
  %v1885 = vmax.f32 %v1268, %v1598
  %v1886 = vmax.f32 %v1269, %v1665
  %v1887 = vmax.f32 %v1270, %v1602
  %v1888 = vmax.f32 %v1271, %v1666
  %v1889 = vmax.f32 %v1272, %v1606
  %v1890 = vmax.f32 %v1273, %v1667
  %v1891 = vmax.f32 %v1274, %v1610
  %v1892 = vmax.f32 %v1780, %v1784
  %v1893 = vmax.f32 %v1781, %v1785
  %v1894 = vmax.f32 %v1782, %v1786
  %v1895 = vmax.f32 %v1783, %v1787
  %v1896 = vmax.f32 %v1788, %v1792
  %v1897 = vmax.f32 %v1789, %v1793
  %v1898 = vmax.f32 %v1790, %v1794
  %v1899 = vmax.f32 %v1791, %v1795
  %v1900 = vmax.f32 %v1796, %v1800
  %v1901 = vmax.f32 %v1797, %v1801
  %v1902 = vmax.f32 %v1798, %v1802
  %v1903 = vmax.f32 %v1799, %v1803
  %v1904 = vmax.f32 %v1804, %v1808
  %v1905 = vmax.f32 %v1805, %v1809
  %v1906 = vmax.f32 %v1806, %v1810
  %v1907 = vmax.f32 %v1807, %v1811
  %v1908 = vmax.f32 %v1812, %v1816
  %v1909 = vmax.f32 %v1813, %v1817
  %v1910 = vmax.f32 %v1814, %v1818
  %v1911 = vmax.f32 %v1815, %v1819
  %v1912 = vmax.f32 %v1820, %v1824
  %v1913 = vmax.f32 %v1821, %v1825
  %v1914 = vmax.f32 %v1822, %v1826
  %v1915 = vmax.f32 %v1823, %v1827
  %v1916 = vmax.f32 %v1828, %v1832
  %v1917 = vmax.f32 %v1829, %v1833
  %v1918 = vmax.f32 %v1830, %v1834
  %v1919 = vmax.f32 %v1831, %v1835
  %v1920 = vmax.f32 %v1836, %v1840
  %v1921 = vmax.f32 %v1837, %v1841
  %v1922 = vmax.f32 %v1838, %v1842
  %v1923 = vmax.f32 %v1839, %v1843
  %v1924 = vmax.f32 %v1844, %v1848
  %v1925 = vmax.f32 %v1845, %v1849
  %v1926 = vmax.f32 %v1846, %v1850
  %v1927 = vmax.f32 %v1847, %v1851
  %v1928 = vmax.f32 %v1852, %v1856
  %v1929 = vmax.f32 %v1853, %v1857
  %v1930 = vmax.f32 %v1854, %v1858
  %v1931 = vmax.f32 %v1855, %v1859
  %v1932 = vmax.f32 %v1860, %v1864
  %v1933 = vmax.f32 %v1861, %v1865
  %v1934 = vmax.f32 %v1862, %v1866
  %v1935 = vmax.f32 %v1863, %v1867
  %v1936 = vmax.f32 %v1868, %v1872
  %v1937 = vmax.f32 %v1869, %v1873
  %v1938 = vmax.f32 %v1870, %v1874
  %v1939 = vmax.f32 %v1871, %v1875
  %v1940 = vmax.f32 %v1876, %v1880
  %v1941 = vmax.f32 %v1877, %v1881
  %v1942 = vmax.f32 %v1878, %v1882
  %v1943 = vmax.f32 %v1879, %v1883
  %v1944 = vmax.f32 %v1884, %v1888
  %v1945 = vmax.f32 %v1885, %v1889
  %v1946 = vmax.f32 %v1886, %v1890
  %v1947 = vmax.f32 %v1887, %v1891
  %v1948 = vpack.c.bf16 %v1894, %v1892
  %v1949 = vpack.c.bf16 %v1895, %v1893
  %v1950 = vpack.c.bf16 %v1898, %v1896
  %v1951 = vpack.c.bf16 %v1899, %v1897
  %v1952 = vpack.c.bf16 %v1902, %v1900
  %v1953 = vpack.c.bf16 %v1903, %v1901
  %v1954 = vpack.c.bf16 %v1906, %v1904
  %v1955 = vpack.c.bf16 %v1907, %v1905
  %v1956 = vpack.c.bf16 %v1910, %v1908
  %v1957 = vpack.c.bf16 %v1911, %v1909
  %v1958 = vpack.c.bf16 %v1914, %v1912
  %v1959 = vpack.c.bf16 %v1915, %v1913
  %v1960 = vpack.c.bf16 %v1918, %v1916
  %v1961 = vpack.c.bf16 %v1919, %v1917
  %v1962 = vpack.c.bf16 %v1922, %v1920
  %v1963 = vpack.c.bf16 %v1923, %v1921
  %v1964 = vpack.c.bf16 %v1926, %v1924
  %v1965 = vpack.c.bf16 %v1927, %v1925
  %v1966 = vpack.c.bf16 %v1930, %v1928
  %v1967 = vpack.c.bf16 %v1931, %v1929
  %v1968 = vpack.c.bf16 %v1934, %v1932
  %v1969 = vpack.c.bf16 %v1935, %v1933
  %v1970 = vpack.c.bf16 %v1938, %v1936
  %v1971 = vpack.c.bf16 %v1939, %v1937
  %v1972 = vpack.c.bf16 %v1942, %v1940
  %v1973 = vpack.c.bf16 %v1943, %v1941
  %v1974 = vpack.c.bf16 %v1946, %v1944
  %v1975 = vpack.c.bf16 %v1947, %v1945
  %1996 = vrot.lane.b32.xlu0 %v1950, 34
  %v1997 = vpop.permute.xlu0 %1996
  %1998 = vrot.lane.b32.xlu0 %v1951, 34
  %v1999 = vpop.permute.xlu0 %1998
  %2000 = vrot.lane.b32.xlu0 %v1952, 34
  %v2001 = vpop.permute.xlu0 %2000
  %2002 = vrot.lane.b32.xlu0 %v1953, 34
  %v2003 = vpop.permute.xlu0 %2002
  %2004 = vrot.lane.b32.xlu0 %v1954, 34
  %v2005 = vpop.permute.xlu0 %2004
  %2006 = vrot.lane.b32.xlu0 %v1955, 34
  %v2007 = vpop.permute.xlu0 %2006
  %2008 = vrot.lane.b32.xlu0 %v1956, 34
  %v2009 = vpop.permute.xlu0 %2008
  %2010 = vrot.lane.b32.xlu0 %v1957, 34
  %v2011 = vpop.permute.xlu0 %2010
  %2012 = vrot.lane.b32.xlu0 %v1958, 34
  %v2013 = vpop.permute.xlu0 %2012
  %2014 = vrot.lane.b32.xlu0 %v1959, 34
  %v2015 = vpop.permute.xlu0 %2014
  %2016 = vrot.lane.b32.xlu0 %v1960, 34
  %v2017 = vpop.permute.xlu0 %2016
  %2018 = vrot.lane.b32.xlu0 %v1961, 34
  %v2019 = vpop.permute.xlu0 %2018
  %2020 = vrot.lane.b32.xlu0 %v1962, 34
  %v2021 = vpop.permute.xlu0 %2020
  %2022 = vrot.lane.b32.xlu0 %v1963, 34
  %v2023 = vpop.permute.xlu0 %2022
  %2024 = vrot.lane.b32.xlu0 %v1964, 34
  %v2025 = vpop.permute.xlu0 %2024
  %2026 = vrot.lane.b32.xlu0 %v1965, 34
  %v2027 = vpop.permute.xlu0 %2026
  %2028 = vrot.lane.b32.xlu0 %v1966, 34
  %v2029 = vpop.permute.xlu0 %2028
  %2030 = vrot.lane.b32.xlu0 %v1967, 34
  %v2031 = vpop.permute.xlu0 %2030
  %2032 = vrot.lane.b32.xlu0 %v1968, 34
  %v2033 = vpop.permute.xlu0 %2032
  %2034 = vrot.lane.b32.xlu0 %v1969, 34
  %v2035 = vpop.permute.xlu0 %2034
  %vm2036 = vcmask 277504
  %v2037 = vsel %vm2036, %v1997, %v1999
  %v2038 = vsel %vm2036, %v2001, %v2003
  %v2039 = vsel %vm2036, %v2005, %v2007
  %v2040 = vsel %vm2036, %v2009, %v2011
  %v2041 = vsel %vm2036, %v2013, %v2015
  %v2042 = vsel %vm2036, %v2017, %v2019
  %v2043 = vsel %vm2036, %v2021, %v2023
  %v2044 = vsel %vm2036, %v2025, %v2027
  %v2045 = vsel %vm2036, %v2029, %v2031
  %v2046 = vsel %vm2036, %v2033, %v2035
  %2049 = vrot.lane.b32.xlu0 %v1952, 68
  %v2050 = vpop.permute.xlu0 %2049
  %2051 = vrot.lane.b32.xlu0 %v1953, 68
  %v2052 = vpop.permute.xlu0 %2051
  %2053 = vrot.lane.b32.xlu0 %v1954, 68
  %v2054 = vpop.permute.xlu0 %2053
  %2055 = vrot.lane.b32.xlu0 %v1955, 68
  %v2056 = vpop.permute.xlu0 %2055
  %2057 = vrot.lane.b32.xlu0 %v1956, 68
  %v2058 = vpop.permute.xlu0 %2057
  %2059 = vrot.lane.b32.xlu0 %v1957, 68
  %v2060 = vpop.permute.xlu0 %2059
  %2061 = vrot.lane.b32.xlu0 %v1958, 68
  %v2062 = vpop.permute.xlu0 %2061
  %2063 = vrot.lane.b32.xlu0 %v1959, 68
  %v2064 = vpop.permute.xlu0 %2063
  %2065 = vrot.lane.b32.xlu0 %v1960, 68
  %v2066 = vpop.permute.xlu0 %2065
  %2067 = vrot.lane.b32.xlu0 %v1961, 68
  %v2068 = vpop.permute.xlu0 %2067
  %2069 = vrot.lane.b32.xlu0 %v1962, 68
  %v2070 = vpop.permute.xlu0 %2069
  %2071 = vrot.lane.b32.xlu0 %v1963, 68
  %v2072 = vpop.permute.xlu0 %2071
  %2073 = vrot.lane.b32.xlu0 %v1964, 68
  %v2074 = vpop.permute.xlu0 %2073
  %2075 = vrot.lane.b32.xlu0 %v1965, 68
  %v2076 = vpop.permute.xlu0 %2075
  %2077 = vrot.lane.b32.xlu0 %v1966, 68
  %v2078 = vpop.permute.xlu0 %2077
  %2079 = vrot.lane.b32.xlu0 %v1967, 68
  %v2080 = vpop.permute.xlu0 %2079
  %2081 = vrot.lane.b32.xlu0 %v1968, 68
  %v2082 = vpop.permute.xlu0 %2081
  %2083 = vrot.lane.b32.xlu0 %v1969, 68
  %v2084 = vpop.permute.xlu0 %2083
  %2085 = vrot.lane.b32.xlu0 %v1970, 68
  %v2086 = vpop.permute.xlu0 %2085
  %2087 = vrot.lane.b32.xlu0 %v1971, 68
  %v2088 = vpop.permute.xlu0 %2087
  %vm2089 = vcmask 556032
  %v2090 = vsel %vm2089, %v2050, %v2052
  %v2091 = vsel %vm2089, %v2054, %v2056
  %v2092 = vsel %vm2089, %v2058, %v2060
  %v2093 = vsel %vm2089, %v2062, %v2064
  %v2094 = vsel %vm2089, %v2066, %v2068
  %v2095 = vsel %vm2089, %v2070, %v2072
  %v2096 = vsel %vm2089, %v2074, %v2076
  %v2097 = vsel %vm2089, %v2078, %v2080
  %v2098 = vsel %vm2089, %v2082, %v2084
  %v2099 = vsel %vm2089, %v2086, %v2088
  %2102 = vrot.lane.b32.xlu0 %v1954, 102
  %v2103 = vpop.permute.xlu0 %2102
  %2104 = vrot.lane.b32.xlu0 %v1955, 102
  %v2105 = vpop.permute.xlu0 %2104
  %2106 = vrot.lane.b32.xlu0 %v1956, 102
  %v2107 = vpop.permute.xlu0 %2106
  %2108 = vrot.lane.b32.xlu0 %v1957, 102
  %v2109 = vpop.permute.xlu0 %2108
  %2110 = vrot.lane.b32.xlu0 %v1958, 102
  %v2111 = vpop.permute.xlu0 %2110
  %2112 = vrot.lane.b32.xlu0 %v1959, 102
  %v2113 = vpop.permute.xlu0 %2112
  %2114 = vrot.lane.b32.xlu0 %v1960, 102
  %v2115 = vpop.permute.xlu0 %2114
  %2116 = vrot.lane.b32.xlu0 %v1961, 102
  %v2117 = vpop.permute.xlu0 %2116
  %2118 = vrot.lane.b32.xlu0 %v1962, 102
  %v2119 = vpop.permute.xlu0 %2118
  %2120 = vrot.lane.b32.xlu0 %v1963, 102
  %v2121 = vpop.permute.xlu0 %2120
  %2122 = vrot.lane.b32.xlu0 %v1964, 102
  %v2123 = vpop.permute.xlu0 %2122
  %2124 = vrot.lane.b32.xlu0 %v1965, 102
  %v2125 = vpop.permute.xlu0 %2124
  %2126 = vrot.lane.b32.xlu0 %v1966, 102
  %v2127 = vpop.permute.xlu0 %2126
  %2128 = vrot.lane.b32.xlu0 %v1967, 102
  %v2129 = vpop.permute.xlu0 %2128
  %2130 = vrot.lane.b32.xlu0 %v1968, 102
  %v2131 = vpop.permute.xlu0 %2130
  %2132 = vrot.lane.b32.xlu0 %v1969, 102
  %v2133 = vpop.permute.xlu0 %2132
  %2134 = vrot.lane.b32.xlu0 %v1970, 102
  %v2135 = vpop.permute.xlu0 %2134
  %2136 = vrot.lane.b32.xlu0 %v1971, 102
  %v2137 = vpop.permute.xlu0 %2136
  %2138 = vrot.lane.b32.xlu0 %v1972, 102
  %v2139 = vpop.permute.xlu0 %2138
  %2140 = vrot.lane.b32.xlu0 %v1973, 102
  %v2141 = vpop.permute.xlu0 %2140
  %vm2142 = vcmask 834560
  %v2143 = vsel %vm2142, %v2103, %v2105
  %v2144 = vsel %vm2142, %v2107, %v2109
  %v2145 = vsel %vm2142, %v2111, %v2113
  %v2146 = vsel %vm2142, %v2115, %v2117
  %v2147 = vsel %vm2142, %v2119, %v2121
  %v2148 = vsel %vm2142, %v2123, %v2125
  %v2149 = vsel %vm2142, %v2127, %v2129
  %v2150 = vsel %vm2142, %v2131, %v2133
  %v2151 = vsel %vm2142, %v2135, %v2137
  %v2152 = vsel %vm2142, %v2139, %v2141
  %2165 = vrot.lane.b32.xlu0 %v1956, 8
  %v2166 = vpop.permute.xlu0 %2165
  %2167 = vrot.lane.b32.xlu0 %v1957, 8
  %v2168 = vpop.permute.xlu0 %2167
  %2169 = vrot.lane.b32.xlu0 %v1958, 8
  %v2170 = vpop.permute.xlu0 %2169
  %2171 = vrot.lane.b32.xlu0 %v1959, 8
  %v2172 = vpop.permute.xlu0 %2171
  %2173 = vrot.lane.b32.xlu0 %v1960, 8
  %v2174 = vpop.permute.xlu0 %2173
  %2175 = vrot.lane.b32.xlu0 %v1961, 8
  %v2176 = vpop.permute.xlu0 %2175
  %2177 = vrot.lane.b32.xlu0 %v1962, 8
  %v2178 = vpop.permute.xlu0 %2177
  %2179 = vrot.lane.b32.xlu0 %v1963, 8
  %v2180 = vpop.permute.xlu0 %2179
  %2181 = vrot.lane.b32.xlu0 %v1964, 8
  %v2182 = vpop.permute.xlu0 %2181
  %2183 = vrot.lane.b32.xlu0 %v1965, 8
  %v2184 = vpop.permute.xlu0 %2183
  %2185 = vrot.lane.b32.xlu0 %v1966, 8
  %v2186 = vpop.permute.xlu0 %2185
  %2187 = vrot.lane.b32.xlu0 %v1967, 8
  %v2188 = vpop.permute.xlu0 %2187
  %2189 = vrot.lane.b32.xlu0 %v1968, 8
  %v2190 = vpop.permute.xlu0 %2189
  %2191 = vrot.lane.b32.xlu0 %v1969, 8
  %v2192 = vpop.permute.xlu0 %2191
  %2193 = vrot.lane.b32.xlu0 %v1970, 8
  %v2194 = vpop.permute.xlu0 %2193
  %2195 = vrot.lane.b32.xlu0 %v1971, 8
  %v2196 = vpop.permute.xlu0 %2195
  %2197 = vrot.lane.b32.xlu0 %v1972, 8
  %v2198 = vpop.permute.xlu0 %2197
  %2199 = vrot.lane.b32.xlu0 %v1973, 8
  %v2200 = vpop.permute.xlu0 %2199
  %2201 = vrot.lane.b32.xlu0 %v1974, 8
  %v2202 = vpop.permute.xlu0 %2201
  %2203 = vrot.lane.b32.xlu0 %v1975, 8
  %v2204 = vpop.permute.xlu0 %2203
  %vm2205 = vcmask 64512
  %v2206 = vsel %vm2205, %v2166, %v2168
  %v2207 = vsel %vm2205, %v2170, %v2172
  %v2208 = vsel %vm2205, %v2174, %v2176
  %v2209 = vsel %vm2205, %v2178, %v2180
  %v2210 = vsel %vm2205, %v2182, %v2184
  %v2211 = vsel %vm2205, %v2186, %v2188
  %v2212 = vsel %vm2205, %v2190, %v2192
  %v2213 = vsel %vm2205, %v2194, %v2196
  %v2214 = vsel %vm2205, %v2198, %v2200
  %v2215 = vsel %vm2205, %v2202, %v2204
  %vm2216 = vcmask 277504
  %v2219 = vsel %vm2216, %v1949, %v1997
  %v2223 = vsel %vm2216, %v1951, %v2001
  %v2227 = vsel %vm2216, %v1953, %v2005
  %v2231 = vsel %vm2216, %v1955, %v2009
  %v2235 = vsel %vm2216, %v1957, %v2013
  %v2239 = vsel %vm2216, %v1959, %v2017
  %v2243 = vsel %vm2216, %v1961, %v2021
  %v2247 = vsel %vm2216, %v1963, %v2025
  %v2251 = vsel %vm2216, %v1965, %v2029
  %v2255 = vsel %vm2216, %v1967, %v2033
  %vm2257 = vcmask 556032
  %v2260 = vsel %vm2257, %v2037, %v2050
  %v2264 = vsel %vm2257, %v2038, %v2054
  %v2268 = vsel %vm2257, %v2039, %v2058
  %v2272 = vsel %vm2257, %v2040, %v2062
  %v2276 = vsel %vm2257, %v2041, %v2066
  %v2280 = vsel %vm2257, %v2042, %v2070
  %v2284 = vsel %vm2257, %v2043, %v2074
  %v2288 = vsel %vm2257, %v2044, %v2078
  %v2292 = vsel %vm2257, %v2045, %v2082
  %v2296 = vsel %vm2257, %v2046, %v2086
  %vm2298 = vcmask 834560
  %v2301 = vsel %vm2298, %v2090, %v2103
  %v2305 = vsel %vm2298, %v2091, %v2107
  %v2309 = vsel %vm2298, %v2092, %v2111
  %v2313 = vsel %vm2298, %v2093, %v2115
  %v2317 = vsel %vm2298, %v2094, %v2119
  %v2321 = vsel %vm2298, %v2095, %v2123
  %v2325 = vsel %vm2298, %v2096, %v2127
  %v2329 = vsel %vm2298, %v2097, %v2131
  %v2333 = vsel %vm2298, %v2098, %v2135
  %v2337 = vsel %vm2298, %v2099, %v2139
  %vm2339 = vcmask 64512
  %v2342 = vsel %vm2339, %v2105, %v2166
  %v2346 = vsel %vm2339, %v2109, %v2170
  %v2350 = vsel %vm2339, %v2113, %v2174
  %v2354 = vsel %vm2339, %v2117, %v2178
  %v2358 = vsel %vm2339, %v2121, %v2182
  %v2362 = vsel %vm2339, %v2125, %v2186
  %v2366 = vsel %vm2339, %v2129, %v2190
  %v2370 = vsel %vm2339, %v2133, %v2194
  %v2374 = vsel %vm2339, %v2137, %v2198
  %v2378 = vsel %vm2339, %v2141, %v2202
  %v2380 = vld [vmem:[%s3] sm:$0xff]
  %v2381 = vld [vmem:[%s3 + $0x8] sm:$0xff]
  %v2382 = vld [vmem:[%s3 + $0x10] sm:$0xff]
  %v2383 = vld [vmem:[%s3 + $0x18] sm:$0xff]
  %v2384 = vld [vmem:[%s3 + $0x20] sm:$0xff]
  %v2385 = vld [vmem:[%s3 + $0x28] sm:$0xff]
  %v2386 = vld [vmem:[%s3 + $0x30] sm:$0xff]
  %v2387 = vld [vmem:[%s3 + $0x38] sm:$0xff]
  %v2388 = vld [vmem:[%s3 + $0x40] sm:$0xff]
  %v2389 = vld [vmem:[%s3 + $0x48] sm:$0xff]
  %v2390 = vld [vmem:[%s3 + $0x50] sm:$0xff]
  %v2391 = vld [vmem:[%s3 + $0x58] sm:$0xff]
  %v2392 = vld [vmem:[%s3 + $0x60] sm:$0xff]
  %v2393 = vld [vmem:[%s3 + $0x68] sm:$0xff]
  %v2394 = vld [vmem:[%s3 + $0x70] sm:$0xff]
  %v2395 = vld [vmem:[%s3 + $0x78] sm:$0xff]
  %v2396 = vld [vmem:[%s3 + $0x80] sm:$0xff]
  %v2397 = vld [vmem:[%s3 + $0x88] sm:$0xff]
  %v2398 = vld [vmem:[%s3 + $0x90] sm:$0xff]
  %v2399 = vld [vmem:[%s3 + $0x98] sm:$0xff]
  %v2400 = vld [vmem:[%s3 + $0xa0] sm:$0xff]
  %v2401 = vld [vmem:[%s3 + $0xa8] sm:$0xff]
  %v2402 = vld [vmem:[%s3 + $0xb0] sm:$0xff]
  %v2403 = vld [vmem:[%s3 + $0xb8] sm:$0xff]
  %v2404 = vld [vmem:[%s3 + $0xc0] sm:$0xff]
  %v2405 = vld [vmem:[%s3 + $0xc8] sm:$0xff]
  %v2406 = vld [vmem:[%s3 + $0xd0] sm:$0xff]
  %v2407 = vld [vmem:[%s3 + $0xd8] sm:$0xff]
  %v2408 = vld [vmem:[%s3 + $0xe0] sm:$0xff]
  %v2409 = vld [vmem:[%s3 + $0xe8] sm:$0xff]
  %v2410 = vld [vmem:[%s3 + $0xf0] sm:$0xff]
  %v2411 = vld [vmem:[%s3 + $0xf8] sm:$0xff]
  %v2412 = vld [vmem:[%s3 + $0x100] sm:$0xff]
  %v2413 = vld [vmem:[%s3 + $0x108] sm:$0xff]
  %v2414 = vld [vmem:[%s3 + $0x110] sm:$0xff]
  %v2415 = vld [vmem:[%s3 + $0x118] sm:$0xff]
  %v2416 = vld [vmem:[%s3 + $0x120] sm:$0xff]
  %v2417 = vld [vmem:[%s3 + $0x128] sm:$0xff]
  %v2418 = vld [vmem:[%s3 + $0x130] sm:$0xff]
  %v2419 = vld [vmem:[%s3 + $0x138] sm:$0xff]
  %v2420 = vld [vmem:[%s3 + $0x140] sm:$0xff]
  %v2421 = vld [vmem:[%s3 + $0x148] sm:$0xff]
  %v2422 = vld [vmem:[%s3 + $0x150] sm:$0xff]
  %v2423 = vld [vmem:[%s3 + $0x158] sm:$0xff]
  %v2424 = vld [vmem:[%s3 + $0x160] sm:$0xff]
  %v2425 = vld [vmem:[%s3 + $0x168] sm:$0xff]
  %v2426 = vld [vmem:[%s3 + $0x170] sm:$0xff]
  %v2427 = vld [vmem:[%s3 + $0x178] sm:$0xff]
  %v2428 = vld [vmem:[%s3 + $0x180] sm:$0xff]
  %v2429 = vld [vmem:[%s3 + $0x188] sm:$0xff]
  %v2430 = vld [vmem:[%s3 + $0x190] sm:$0xff]
  %v2431 = vld [vmem:[%s3 + $0x198] sm:$0xff]
  %v2432 = vld [vmem:[%s3 + $0x1a0] sm:$0xff]
  %v2433 = vld [vmem:[%s3 + $0x1a8] sm:$0xff]
  %v2434 = vld [vmem:[%s3 + $0x1b0] sm:$0xff]
  %v2435 = vld [vmem:[%s3 + $0x1b8] sm:$0xff]
  %v2436 = vld [vmem:[%s3 + $0x1c0] sm:$0xff]
  %v2437 = vld [vmem:[%s3 + $0x1c8] sm:$0xff]
  %v2438 = vld [vmem:[%s3 + $0x1d0] sm:$0xff]
  %v2439 = vld [vmem:[%s3 + $0x1d8] sm:$0xff]
  %v2440 = vld [vmem:[%s3 + $0x1e0] sm:$0xff]
  %v2441 = vld [vmem:[%s3 + $0x1e8] sm:$0xff]
  %v2442 = vld [vmem:[%s3 + $0x1f0] sm:$0xff]
  %v2443 = vld [vmem:[%s3 + $0x1f8] sm:$0xff]
  %v2444 = vld [vmem:[%s3 + $0x200] sm:$0xff]
  %v2445 = vld [vmem:[%s3 + $0x208] sm:$0xff]
  %v2446 = vld [vmem:[%s3 + $0x210] sm:$0xff]
  %v2447 = vld [vmem:[%s3 + $0x218] sm:$0xff]
  %v2448 = vld [vmem:[%s3 + $0x220] sm:$0xff]
  %v2449 = vld [vmem:[%s3 + $0x228] sm:$0xff]
  %v2450 = vld [vmem:[%s3 + $0x230] sm:$0xff]
  %v2451 = vld [vmem:[%s3 + $0x238] sm:$0xff]
  %v2452 = vld [vmem:[%s3 + $0x240] sm:$0xff]
  %v2453 = vld [vmem:[%s3 + $0x248] sm:$0xff]
  %v2454 = vld [vmem:[%s3 + $0x250] sm:$0xff]
  %v2455 = vld [vmem:[%s3 + $0x258] sm:$0xff]
  %v2456 = vld [vmem:[%s3 + $0x260] sm:$0xff]
  %v2457 = vld [vmem:[%s3 + $0x268] sm:$0xff]
  %v2458 = vld [vmem:[%s3 + $0x270] sm:$0xff]
  %v2459 = vld [vmem:[%s3 + $0x278] sm:$0xff]
  %v2460 = vld [vmem:[%s3 + $0x280] sm:$0xff]
  %v2461 = vld [vmem:[%s3 + $0x288] sm:$0xff]
  %v2462 = vld [vmem:[%s3 + $0x290] sm:$0xff]
  %v2463 = vld [vmem:[%s3 + $0x298] sm:$0xff]
  %v2464 = vld [vmem:[%s3 + $0x2a0] sm:$0xff]
  %v2465 = vld [vmem:[%s3 + $0x2a8] sm:$0xff]
  %v2466 = vld [vmem:[%s3 + $0x2b0] sm:$0xff]
  %v2467 = vld [vmem:[%s3 + $0x2b8] sm:$0xff]
  %v2468 = vld [vmem:[%s3 + $0x2c0] sm:$0xff]
  %v2469 = vld [vmem:[%s3 + $0x2c8] sm:$0xff]
  %v2470 = vld [vmem:[%s3 + $0x2d0] sm:$0xff]
  %v2471 = vld [vmem:[%s3 + $0x2d8] sm:$0xff]
  %v2472 = vld [vmem:[%s3 + $0x2e0] sm:$0xff]
  %v2473 = vld [vmem:[%s3 + $0x2e8] sm:$0xff]
  %v2474 = vld [vmem:[%s3 + $0x2f0] sm:$0xff]
  %v2475 = vld [vmem:[%s3 + $0x2f8] sm:$0xff]
  %v2476 = vld [vmem:[%s3 + $0x300] sm:$0xff]
  %v2477 = vld [vmem:[%s3 + $0x308] sm:$0xff]
  %v2478 = vld [vmem:[%s3 + $0x310] sm:$0xff]
  %v2479 = vld [vmem:[%s3 + $0x318] sm:$0xff]
  %v2480 = vld [vmem:[%s3 + $0x320] sm:$0xff]
  %v2481 = vld [vmem:[%s3 + $0x328] sm:$0x11]
  %v2482 = vld [vmem:[%s4] sm:$0x3]
  %v2484 = vlaneseq
  %v2485 = vshrl.u32 %v2484, 7
  %v2486 = vsub.s32 0, %v2485
  %v2487 = vrot.slane %v2482, %v2486
  %v2488 = vlaneseq
  %v2489 = vshrl.u32 %v2488, 7
  %v2490 = vsub.s32 1, %v2489
  %v2491 = vrot.slane %v2482, %v2490
  %v2596 = vunpack.c.l.b16 %v2380
  %v2597 = vunpack.c.h.b16 %v2380
  %v2598 = vunpack.c.l.b16 %v2381
  %v2599 = vunpack.c.h.b16 %v2381
  %v2600 = vunpack.c.l.b16 %v2382
  %v2601 = vunpack.c.h.b16 %v2382
  %v2602 = vunpack.c.l.b16 %v2383
  %v2603 = vunpack.c.h.b16 %v2383
  %v2604 = vunpack.c.l.b16 %v2384
  %v2605 = vunpack.c.h.b16 %v2384
  %v2606 = vunpack.c.l.b16 %v2385
  %v2607 = vunpack.c.h.b16 %v2385
  %v2608 = vunpack.c.l.b16 %v2386
  %v2609 = vunpack.c.h.b16 %v2386
  %v2610 = vunpack.c.l.b16 %v2387
  %v2611 = vunpack.c.h.b16 %v2387
  %v2612 = vunpack.c.l.b16 %v2388
  %v2613 = vunpack.c.h.b16 %v2388
  %v2614 = vunpack.c.l.b16 %v2389
  %v2615 = vunpack.c.h.b16 %v2389
  %v2616 = vunpack.c.l.b16 %v2390
  %v2617 = vunpack.c.h.b16 %v2390
  %v2618 = vunpack.c.l.b16 %v2391
  %v2619 = vunpack.c.h.b16 %v2391
  %v2620 = vunpack.c.l.b16 %v2392
  %v2621 = vunpack.c.h.b16 %v2392
  %v2622 = vunpack.c.l.b16 %v2393
  %v2623 = vunpack.c.h.b16 %v2393
  %v2624 = vunpack.c.l.b16 %v2394
  %v2625 = vunpack.c.h.b16 %v2394
  %v2626 = vunpack.c.l.b16 %v2395
  %v2627 = vunpack.c.h.b16 %v2395
  %v2628 = vunpack.c.l.b16 %v2396
  %v2629 = vunpack.c.h.b16 %v2396
  %v2630 = vunpack.c.l.b16 %v2397
  %v2631 = vunpack.c.h.b16 %v2397
  %v2632 = vunpack.c.l.b16 %v2398
  %v2633 = vunpack.c.h.b16 %v2398
  %v2634 = vunpack.c.l.b16 %v2399
  %v2635 = vunpack.c.h.b16 %v2399
  %v2636 = vunpack.c.l.b16 %v2400
  %v2637 = vunpack.c.h.b16 %v2400
  %v2638 = vunpack.c.l.b16 %v2401
  %v2639 = vunpack.c.h.b16 %v2401
  %v2640 = vunpack.c.l.b16 %v2402
  %v2641 = vunpack.c.h.b16 %v2402
  %v2642 = vunpack.c.l.b16 %v2403
  %v2643 = vunpack.c.h.b16 %v2403
  %v2644 = vunpack.c.l.b16 %v2404
  %v2645 = vunpack.c.h.b16 %v2404
  %v2646 = vunpack.c.l.b16 %v2405
  %v2647 = vunpack.c.h.b16 %v2405
  %v2648 = vunpack.c.l.b16 %v2406
  %v2649 = vunpack.c.h.b16 %v2406
  %v2650 = vunpack.c.l.b16 %v2407
  %v2651 = vunpack.c.h.b16 %v2407
  %v2652 = vunpack.c.l.b16 %v2408
  %v2653 = vunpack.c.h.b16 %v2408
  %v2654 = vunpack.c.l.b16 %v2409
  %v2655 = vunpack.c.h.b16 %v2409
  %v2656 = vunpack.c.l.b16 %v2410
  %v2657 = vunpack.c.h.b16 %v2410
  %v2658 = vunpack.c.l.b16 %v2411
  %v2659 = vunpack.c.h.b16 %v2411
  %v2660 = vunpack.c.l.b16 %v2412
  %v2661 = vunpack.c.h.b16 %v2412
  %v2662 = vunpack.c.l.b16 %v2413
  %v2663 = vunpack.c.h.b16 %v2413
  %v2664 = vunpack.c.l.b16 %v2414
  %v2665 = vunpack.c.h.b16 %v2414
  %v2666 = vunpack.c.l.b16 %v2415
  %v2667 = vunpack.c.h.b16 %v2415
  %v2668 = vunpack.c.l.b16 %v2416
  %v2669 = vunpack.c.h.b16 %v2416
  %v2670 = vunpack.c.l.b16 %v2417
  %v2671 = vunpack.c.h.b16 %v2417
  %v2672 = vunpack.c.l.b16 %v2418
  %v2673 = vunpack.c.h.b16 %v2418
  %v2674 = vunpack.c.l.b16 %v2419
  %v2675 = vunpack.c.h.b16 %v2419
  %v2676 = vunpack.c.l.b16 %v2420
  %v2677 = vunpack.c.h.b16 %v2420
  %v2678 = vunpack.c.l.b16 %v2421
  %v2679 = vunpack.c.h.b16 %v2421
  %v2680 = vunpack.c.l.b16 %v2422
  %v2681 = vunpack.c.h.b16 %v2422
  %v2682 = vunpack.c.l.b16 %v2423
  %v2683 = vunpack.c.h.b16 %v2423
  %v2684 = vunpack.c.l.b16 %v2424
  %v2685 = vunpack.c.h.b16 %v2424
  %v2686 = vunpack.c.l.b16 %v2425
  %v2687 = vunpack.c.h.b16 %v2425
  %v2688 = vunpack.c.l.b16 %v2426
  %v2689 = vunpack.c.h.b16 %v2426
  %v2690 = vunpack.c.l.b16 %v2427
  %v2691 = vunpack.c.h.b16 %v2427
  %v2692 = vunpack.c.l.b16 %v2428
  %v2693 = vunpack.c.h.b16 %v2428
  %v2694 = vunpack.c.l.b16 %v2429
  %v2695 = vunpack.c.h.b16 %v2429
  %v2696 = vunpack.c.l.b16 %v2430
  %v2697 = vunpack.c.h.b16 %v2430
  %v2698 = vunpack.c.l.b16 %v2431
  %v2699 = vunpack.c.h.b16 %v2431
  %v2700 = vunpack.c.l.b16 %v2432
  %v2701 = vunpack.c.h.b16 %v2432
  %v2702 = vunpack.c.l.b16 %v2433
  %v2703 = vunpack.c.h.b16 %v2433
  %v2704 = vunpack.c.l.b16 %v2434
  %v2705 = vunpack.c.h.b16 %v2434
  %v2706 = vunpack.c.l.b16 %v2435
  %v2707 = vunpack.c.h.b16 %v2435
  %v2708 = vunpack.c.l.b16 %v2436
  %v2709 = vunpack.c.h.b16 %v2436
  %v2710 = vunpack.c.l.b16 %v2437
  %v2711 = vunpack.c.h.b16 %v2437
  %v2712 = vunpack.c.l.b16 %v2438
  %v2713 = vunpack.c.h.b16 %v2438
  %v2714 = vunpack.c.l.b16 %v2439
  %v2715 = vunpack.c.h.b16 %v2439
  %v2716 = vunpack.c.l.b16 %v2440
  %v2717 = vunpack.c.h.b16 %v2440
  %v2718 = vunpack.c.l.b16 %v2441
  %v2719 = vunpack.c.h.b16 %v2441
  %v2720 = vunpack.c.l.b16 %v2442
  %v2721 = vunpack.c.h.b16 %v2442
  %v2722 = vunpack.c.l.b16 %v2443
  %v2723 = vunpack.c.h.b16 %v2443
  %v2724 = vunpack.c.l.b16 %v2444
  %v2725 = vunpack.c.h.b16 %v2444
  %v2726 = vunpack.c.l.b16 %v2445
  %v2727 = vunpack.c.h.b16 %v2445
  %v2728 = vunpack.c.l.b16 %v2446
  %v2729 = vunpack.c.h.b16 %v2446
  %v2730 = vunpack.c.l.b16 %v2447
  %v2731 = vunpack.c.h.b16 %v2447
  %v2732 = vunpack.c.l.b16 %v2448
  %v2733 = vunpack.c.h.b16 %v2448
  %v2734 = vunpack.c.l.b16 %v2449
  %v2735 = vunpack.c.h.b16 %v2449
  %v2736 = vunpack.c.l.b16 %v2450
  %v2737 = vunpack.c.h.b16 %v2450
  %v2738 = vunpack.c.l.b16 %v2451
  %v2739 = vunpack.c.h.b16 %v2451
  %v2740 = vunpack.c.l.b16 %v2452
  %v2741 = vunpack.c.h.b16 %v2452
  %v2742 = vunpack.c.l.b16 %v2453
  %v2743 = vunpack.c.h.b16 %v2453
  %v2744 = vunpack.c.l.b16 %v2454
  %v2745 = vunpack.c.h.b16 %v2454
  %v2746 = vunpack.c.l.b16 %v2455
  %v2747 = vunpack.c.h.b16 %v2455
  %v2748 = vunpack.c.l.b16 %v2456
  %v2749 = vunpack.c.h.b16 %v2456
  %v2750 = vunpack.c.l.b16 %v2457
  %v2751 = vunpack.c.h.b16 %v2457
  %v2752 = vunpack.c.l.b16 %v2458
  %v2753 = vunpack.c.h.b16 %v2458
  %v2754 = vunpack.c.l.b16 %v2459
  %v2755 = vunpack.c.h.b16 %v2459
  %v2756 = vunpack.c.l.b16 %v2460
  %v2757 = vunpack.c.h.b16 %v2460
  %v2758 = vunpack.c.l.b16 %v2461
  %v2759 = vunpack.c.h.b16 %v2461
  %v2760 = vunpack.c.l.b16 %v2462
  %v2761 = vunpack.c.h.b16 %v2462
  %v2762 = vunpack.c.l.b16 %v2463
  %v2763 = vunpack.c.h.b16 %v2463
  %v2764 = vunpack.c.l.b16 %v2464
  %v2765 = vunpack.c.h.b16 %v2464
  %v2766 = vunpack.c.l.b16 %v2465
  %v2767 = vunpack.c.h.b16 %v2465
  %v2768 = vunpack.c.l.b16 %v2466
  %v2769 = vunpack.c.h.b16 %v2466
  %v2770 = vunpack.c.l.b16 %v2467
  %v2771 = vunpack.c.h.b16 %v2467
  %v2772 = vunpack.c.l.b16 %v2468
  %v2773 = vunpack.c.h.b16 %v2468
  %v2774 = vunpack.c.l.b16 %v2469
  %v2775 = vunpack.c.h.b16 %v2469
  %v2776 = vunpack.c.l.b16 %v2470
  %v2777 = vunpack.c.h.b16 %v2470
  %v2778 = vunpack.c.l.b16 %v2471
  %v2779 = vunpack.c.h.b16 %v2471
  %v2780 = vunpack.c.l.b16 %v2472
  %v2781 = vunpack.c.h.b16 %v2472
  %v2782 = vunpack.c.l.b16 %v2473
  %v2783 = vunpack.c.h.b16 %v2473
  %v2784 = vunpack.c.l.b16 %v2474
  %v2785 = vunpack.c.h.b16 %v2474
  %v2786 = vunpack.c.l.b16 %v2475
  %v2787 = vunpack.c.h.b16 %v2475
  %v2788 = vunpack.c.l.b16 %v2476
  %v2789 = vunpack.c.h.b16 %v2476
  %v2790 = vunpack.c.l.b16 %v2477
  %v2791 = vunpack.c.h.b16 %v2477
  %v2792 = vunpack.c.l.b16 %v2478
  %v2793 = vunpack.c.h.b16 %v2478
  %v2794 = vunpack.c.l.b16 %v2479
  %v2795 = vunpack.c.h.b16 %v2479
  %v2796 = vunpack.c.l.b16 %v2480
  %v2797 = vunpack.c.h.b16 %v2480
  %v2798 = vunpack.c.l.b16 %v2481
  %v2799 = vunpack.c.h.b16 %v2481
  %v2800 = vpack.c.b16 %v2598, %v2596
  %v2801 = vpack.c.b16 %v2599, %v2597
  %v2802 = vpack.c.b16 %v2602, %v2600
  %v2803 = vpack.c.b16 %v2603, %v2601
  %v2804 = vpack.c.b16 %v2606, %v2604
  %v2805 = vpack.c.b16 %v2607, %v2605
  %v2806 = vpack.c.b16 %v2610, %v2608
  %v2807 = vpack.c.b16 %v2611, %v2609
  %v2808 = vpack.c.b16 %v2614, %v2612
  %v2809 = vpack.c.b16 %v2615, %v2613
  %v2810 = vpack.c.b16 %v2618, %v2616
  %v2811 = vpack.c.b16 %v2619, %v2617
  %v2812 = vpack.c.b16 %v2622, %v2620
  %v2813 = vpack.c.b16 %v2623, %v2621
  %v2814 = vpack.c.b16 %v2626, %v2624
  %v2815 = vpack.c.b16 %v2627, %v2625
  %v2816 = vpack.c.b16 %v2630, %v2628
  %v2817 = vpack.c.b16 %v2631, %v2629
  %v2818 = vpack.c.b16 %v2634, %v2632
  %v2819 = vpack.c.b16 %v2635, %v2633
  %v2820 = vpack.c.b16 %v2638, %v2636
  %v2821 = vpack.c.b16 %v2639, %v2637
  %v2822 = vpack.c.b16 %v2642, %v2640
  %v2823 = vpack.c.b16 %v2643, %v2641
  %v2824 = vpack.c.b16 %v2646, %v2644
  %v2825 = vpack.c.b16 %v2647, %v2645
  %v2826 = vpack.c.b16 %v2650, %v2648
  %v2827 = vpack.c.b16 %v2651, %v2649
  %v2828 = vpack.c.b16 %v2654, %v2652
  %v2829 = vpack.c.b16 %v2655, %v2653
  %v2830 = vpack.c.b16 %v2658, %v2656
  %v2831 = vpack.c.b16 %v2659, %v2657
  %v2832 = vpack.c.b16 %v2662, %v2660
  %v2833 = vpack.c.b16 %v2663, %v2661
  %v2834 = vpack.c.b16 %v2666, %v2664
  %v2835 = vpack.c.b16 %v2667, %v2665
  %v2836 = vpack.c.b16 %v2670, %v2668
  %v2837 = vpack.c.b16 %v2671, %v2669
  %v2838 = vpack.c.b16 %v2674, %v2672
  %v2839 = vpack.c.b16 %v2675, %v2673
  %v2840 = vpack.c.b16 %v2678, %v2676
  %v2841 = vpack.c.b16 %v2679, %v2677
  %v2842 = vpack.c.b16 %v2682, %v2680
  %v2843 = vpack.c.b16 %v2683, %v2681
  %v2844 = vpack.c.b16 %v2686, %v2684
  %v2845 = vpack.c.b16 %v2687, %v2685
  %v2846 = vpack.c.b16 %v2690, %v2688
  %v2847 = vpack.c.b16 %v2691, %v2689
  %v2848 = vpack.c.b16 %v2694, %v2692
  %v2849 = vpack.c.b16 %v2695, %v2693
  %v2850 = vpack.c.b16 %v2698, %v2696
  %v2851 = vpack.c.b16 %v2699, %v2697
  %v2852 = vpack.c.b16 %v2702, %v2700
  %v2853 = vpack.c.b16 %v2703, %v2701
  %v2854 = vpack.c.b16 %v2706, %v2704
  %v2855 = vpack.c.b16 %v2707, %v2705
  %v2856 = vpack.c.b16 %v2710, %v2708
  %v2857 = vpack.c.b16 %v2711, %v2709
  %v2858 = vpack.c.b16 %v2714, %v2712
  %v2859 = vpack.c.b16 %v2715, %v2713
  %v2860 = vpack.c.b16 %v2718, %v2716
  %v2861 = vpack.c.b16 %v2719, %v2717
  %v2862 = vpack.c.b16 %v2722, %v2720
  %v2863 = vpack.c.b16 %v2723, %v2721
  %v2864 = vpack.c.b16 %v2726, %v2724
  %v2865 = vpack.c.b16 %v2727, %v2725
  %v2866 = vpack.c.b16 %v2730, %v2728
  %v2867 = vpack.c.b16 %v2731, %v2729
  %v2868 = vpack.c.b16 %v2734, %v2732
  %v2869 = vpack.c.b16 %v2735, %v2733
  %v2870 = vpack.c.b16 %v2738, %v2736
  %v2871 = vpack.c.b16 %v2739, %v2737
  %v2872 = vpack.c.b16 %v2742, %v2740
  %v2873 = vpack.c.b16 %v2743, %v2741
  %v2874 = vpack.c.b16 %v2746, %v2744
  %v2875 = vpack.c.b16 %v2747, %v2745
  %v2876 = vpack.c.b16 %v2750, %v2748
  %v2877 = vpack.c.b16 %v2751, %v2749
  %v2878 = vpack.c.b16 %v2754, %v2752
  %v2879 = vpack.c.b16 %v2755, %v2753
  %v2880 = vpack.c.b16 %v2758, %v2756
  %v2881 = vpack.c.b16 %v2759, %v2757
  %v2882 = vpack.c.b16 %v2762, %v2760
  %v2883 = vpack.c.b16 %v2763, %v2761
  %v2884 = vpack.c.b16 %v2766, %v2764
  %v2885 = vpack.c.b16 %v2767, %v2765
  %v2886 = vpack.c.b16 %v2770, %v2768
  %v2887 = vpack.c.b16 %v2771, %v2769
  %v2888 = vpack.c.b16 %v2774, %v2772
  %v2889 = vpack.c.b16 %v2775, %v2773
  %v2890 = vpack.c.b16 %v2778, %v2776
  %v2891 = vpack.c.b16 %v2779, %v2777
  %v2892 = vpack.c.b16 %v2782, %v2780
  %v2893 = vpack.c.b16 %v2783, %v2781
  %v2894 = vpack.c.b16 %v2786, %v2784
  %v2895 = vpack.c.b16 %v2787, %v2785
  %v2896 = vpack.c.b16 %v2790, %v2788
  %v2897 = vpack.c.b16 %v2791, %v2789
  %v2898 = vpack.c.b16 %v2794, %v2792
  %v2899 = vpack.c.b16 %v2795, %v2793
  %v2900 = vpack.c.b16 %v2798, %v2796
  %v2901 = vpack.c.b16 %v2799, %v2797
  %vm3002 = vcmask 343040
  %v3004 = vsel %vm3002, %v2206, 0
  %v3007 = vsel %vm3002, %v2207, 0
  %v3010 = vsel %vm3002, %v2208, 0
  %v3013 = vsel %vm3002, %v2209, 0
  %v3016 = vsel %vm3002, %v2210, 0
  %v3019 = vsel %vm3002, %v2211, 0
  %v3022 = vsel %vm3002, %v2212, 0
  %v3025 = vsel %vm3002, %v2213, 0
  %v3028 = vsel %vm3002, %v2214, 0
  %v3031 = vsel %vm3002, %v2215, 0
  %vm3033 = vcmask 1044480
  %v3035 = vsel %vm3033, %v2900, 0
  %v3038 = vsel %vm3033, %v2901, 0
  %3040 = vmatprep.subr.bf16.mxu0 %v2801
  %3041 = vmatpush1.bf16.msra.mxu0 %v2800
  %3042 = vmatprep.subr.bf16.mxu0 %v2803
  %3043 = vmatpush1.bf16.msra.mxu0 %v2802
  %3044 = vmatprep.subr.bf16.mxu0 %v2805
  %3045 = vmatpush1.bf16.msra.mxu0 %v2804
  %3046 = vmatprep.subr.bf16.mxu0 %v2807
  %3047 = vmatpush1.bf16.msra.mxu0 %v2806
  %3048 = vmatprep.subr.bf16.mxu0 %v2809
  %3049 = vmatpush1.bf16.msra.mxu0 %v2808
  %3050 = vmatprep.subr.bf16.mxu0 %v2811
  %3051 = vmatpush1.bf16.msra.mxu0 %v2810
  %3052 = vmatprep.subr.bf16.mxu0 %v2813
  %3053 = vmatpush1.bf16.msra.mxu0 %v2812
  %3054 = vmatprep.subr.bf16.mxu0 %v2815
  %3055 = vmatpush1.bf16.msra.mxu0 %v2814
  %3056 = vmatprep.subr.bf16.mxu0 %v2817
  %3057 = vmatpush1.bf16.msra.mxu0 %v2816
  %3058 = vmatprep.subr.bf16.mxu0 %v2819
  %3059 = vmatpush1.bf16.msra.mxu0 %v2818
  %3060 = vmatprep.subr.bf16.mxu0 %v2821
  %3061 = vmatpush1.bf16.msra.mxu0 %v2820
  %3062 = vmatprep.subr.bf16.mxu0 %v2823
  %3063 = vmatpush1.bf16.msra.mxu0 %v2822
  %3064 = vmatprep.subr.bf16.mxu0 %v2825
  %3065 = vmatpush1.bf16.msra.mxu0 %v2824
  %3066 = vmatprep.subr.bf16.mxu0 %v2827
  %3067 = vmatpush1.bf16.msra.mxu0 %v2826
  %3068 = vmatprep.subr.bf16.mxu0 %v2829
  %3069 = vmatpush1.bf16.msra.mxu0 %v2828
  %3070 = vmatprep.subr.bf16.mxu0 %v2831
  %3071 = vmatpush1.bf16.msra.mxu0 %v2830
  %3072 = vmatprep.mubr.bf16.mxu0 %v2219
  %3073 = vmatmul.mubr.bf16.gmra.mrb[0].mxu0 %v1948
  %v3074 = vpop.f32.mrb[0].mxu0
  %v3075 = vadd.f32 %v2487, %v3074
  %v3076 = vpop.f32.mrb[0].mxu0
  %v3077 = vadd.f32 %v2491, %v3076
  %v3078 = vpop.f32.mrb[0].mxu0
  %v3079 = vadd.f32 %v2487, %v3078
  %v3080 = vpop.f32.mrb[0].mxu0
  %v3081 = vadd.f32 %v2491, %v3080
  %3082 = vmatprep.mubr.bf16.mxu0 %v2223
  %3083 = vmatmul.mubr.bf16.gmra.mrb[0].mxu0 %v1950
  %v3084 = vpop.f32.mrb[0].mxu0
  %v3085 = vadd.f32 %v2487, %v3084
  %v3086 = vpop.f32.mrb[0].mxu0
  %v3087 = vadd.f32 %v2491, %v3086
  %v3088 = vpop.f32.mrb[0].mxu0
  %v3089 = vadd.f32 %v2487, %v3088
  %v3090 = vpop.f32.mrb[0].mxu0
  %v3091 = vadd.f32 %v2491, %v3090
  %3092 = vmatprep.mubr.bf16.mxu0 %v2227
  %3093 = vmatmul.mubr.bf16.gmra.mrb[0].mxu0 %v1952
  %v3094 = vpop.f32.mrb[0].mxu0
  %v3095 = vadd.f32 %v2487, %v3094
  %v3096 = vpop.f32.mrb[0].mxu0
  %v3097 = vadd.f32 %v2491, %v3096
  %v3098 = vpop.f32.mrb[0].mxu0
  %v3099 = vadd.f32 %v2487, %v3098
  %v3100 = vpop.f32.mrb[0].mxu0
  %v3101 = vadd.f32 %v2491, %v3100
  %3102 = vmatprep.mubr.bf16.mxu0 %v2231
  %3103 = vmatmul.mubr.bf16.gmra.mrb[0].mxu0 %v1954
  %v3104 = vpop.f32.mrb[0].mxu0
  %v3105 = vadd.f32 %v2487, %v3104
  %v3106 = vpop.f32.mrb[0].mxu0
  %v3107 = vadd.f32 %v2491, %v3106
  %v3108 = vpop.f32.mrb[0].mxu0
  %v3109 = vadd.f32 %v2487, %v3108
  %v3110 = vpop.f32.mrb[0].mxu0
  %v3111 = vadd.f32 %v2491, %v3110
  %3112 = vmatprep.mubr.bf16.mxu0 %v2235
  %3113 = vmatmul.mubr.bf16.gmra.mrb[0].mxu0 %v1956
  %v3114 = vpop.f32.mrb[0].mxu0
  %v3115 = vadd.f32 %v2487, %v3114
  %v3116 = vpop.f32.mrb[0].mxu0
  %v3117 = vadd.f32 %v2491, %v3116
  %v3118 = vpop.f32.mrb[0].mxu0
  %v3119 = vadd.f32 %v2487, %v3118
  %v3120 = vpop.f32.mrb[0].mxu0
  %v3121 = vadd.f32 %v2491, %v3120
  %3122 = vmatprep.mubr.bf16.mxu0 %v2239
  %3123 = vmatmul.mubr.bf16.gmra.mrb[0].mxu0 %v1958
  %v3124 = vpop.f32.mrb[0].mxu0
  %v3125 = vadd.f32 %v2487, %v3124
  %v3126 = vpop.f32.mrb[0].mxu0
  %v3127 = vadd.f32 %v2491, %v3126
  %v3128 = vpop.f32.mrb[0].mxu0
  %v3129 = vadd.f32 %v2487, %v3128
  %v3130 = vpop.f32.mrb[0].mxu0
  %v3131 = vadd.f32 %v2491, %v3130
  %3132 = vmatprep.mubr.bf16.mxu0 %v2243
  %3133 = vmatmul.mubr.bf16.gmra.mrb[0].mxu0 %v1960
  %v3134 = vpop.f32.mrb[0].mxu0
  %v3135 = vadd.f32 %v2487, %v3134
  %v3136 = vpop.f32.mrb[0].mxu0
  %v3137 = vadd.f32 %v2491, %v3136
  %v3138 = vpop.f32.mrb[0].mxu0
  %v3139 = vadd.f32 %v2487, %v3138
  %v3140 = vpop.f32.mrb[0].mxu0
  %v3141 = vadd.f32 %v2491, %v3140
  %3142 = vmatprep.mubr.bf16.mxu0 %v2247
  %3143 = vmatmul.mubr.bf16.gmra.mrb[0].mxu0 %v1962
  %v3144 = vpop.f32.mrb[0].mxu0
  %v3145 = vadd.f32 %v2487, %v3144
  %v3146 = vpop.f32.mrb[0].mxu0
  %v3147 = vadd.f32 %v2491, %v3146
  %v3148 = vpop.f32.mrb[0].mxu0
  %v3149 = vadd.f32 %v2487, %v3148
  %v3150 = vpop.f32.mrb[0].mxu0
  %v3151 = vadd.f32 %v2491, %v3150
  %3152 = vmatprep.mubr.bf16.mxu0 %v2251
  %3153 = vmatmul.mubr.bf16.gmra.mrb[0].mxu0 %v1964
  %v3154 = vpop.f32.mrb[0].mxu0
  %v3155 = vadd.f32 %v2487, %v3154
  %v3156 = vpop.f32.mrb[0].mxu0
  %v3157 = vadd.f32 %v2491, %v3156
  %v3158 = vpop.f32.mrb[0].mxu0
  %v3159 = vadd.f32 %v2487, %v3158
  %v3160 = vpop.f32.mrb[0].mxu0
  %v3161 = vadd.f32 %v2491, %v3160
  %3162 = vmatprep.mubr.bf16.mxu0 %v2255
  %3163 = vmatmul.mubr.bf16.gmra.mrb[0].mxu0 %v1966
  %v3164 = vpop.f32.mrb[0].mxu0
  %v3165 = vadd.f32 %v2487, %v3164
  %v3166 = vpop.f32.mrb[0].mxu0
  %v3167 = vadd.f32 %v2491, %v3166
  %v3168 = vpop.f32.mrb[0].mxu0
  %v3169 = vadd.f32 %v2487, %v3168
  %v3170 = vpop.f32.mrb[0].mxu0
  %v3171 = vadd.f32 %v2491, %v3170
  %3172 = vdwg.mxu0
  %3173 = vmatprep.subr.bf16.mxu0 %v2833
  %3174 = vmatpush1.bf16.msra.mxu0 %v2832
  %3175 = vmatprep.subr.bf16.mxu0 %v2835
  %3176 = vmatpush1.bf16.msra.mxu0 %v2834
  %3177 = vmatprep.subr.bf16.mxu0 %v2837
  %3178 = vmatpush1.bf16.msra.mxu0 %v2836
  %3179 = vmatprep.subr.bf16.mxu0 %v2839
  %3180 = vmatpush1.bf16.msra.mxu0 %v2838
  %3181 = vmatprep.subr.bf16.mxu0 %v2841
  %3182 = vmatpush1.bf16.msra.mxu0 %v2840
  %3183 = vmatprep.subr.bf16.mxu0 %v2843
  %3184 = vmatpush1.bf16.msra.mxu0 %v2842
  %3185 = vmatprep.subr.bf16.mxu0 %v2845
  %3186 = vmatpush1.bf16.msra.mxu0 %v2844
  %3187 = vmatprep.subr.bf16.mxu0 %v2847
  %3188 = vmatpush1.bf16.msra.mxu0 %v2846
  %3189 = vmatprep.subr.bf16.mxu0 %v2849
  %3190 = vmatpush1.bf16.msra.mxu0 %v2848
  %3191 = vmatprep.subr.bf16.mxu0 %v2851
  %3192 = vmatpush1.bf16.msra.mxu0 %v2850
  %3193 = vmatprep.subr.bf16.mxu0 %v2853
  %3194 = vmatpush1.bf16.msra.mxu0 %v2852
  %3195 = vmatprep.subr.bf16.mxu0 %v2855
  %3196 = vmatpush1.bf16.msra.mxu0 %v2854
  %3197 = vmatprep.subr.bf16.mxu0 %v2857
  %3198 = vmatpush1.bf16.msra.mxu0 %v2856
  %3199 = vmatprep.subr.bf16.mxu0 %v2859
  %3200 = vmatpush1.bf16.msra.mxu0 %v2858
  %3201 = vmatprep.subr.bf16.mxu0 %v2861
  %3202 = vmatpush1.bf16.msra.mxu0 %v2860
  %3203 = vmatprep.subr.bf16.mxu0 %v2863
  %3204 = vmatpush1.bf16.msra.mxu0 %v2862
  %3205 = vmatprep.mubr.bf16.mxu0 %v2301
  %3206 = vmatmul.mubr.bf16.gmra.mrb[0].mxu0 %v2260
  %v3207 = vpop.f32.mrb[0].mxu0
  %v3208 = vadd.f32 %v3075, %v3207
  %v3209 = vpop.f32.mrb[0].mxu0
  %v3210 = vadd.f32 %v3077, %v3209
  %v3211 = vpop.f32.mrb[0].mxu0
  %v3212 = vadd.f32 %v3079, %v3211
  %v3213 = vpop.f32.mrb[0].mxu0
  %v3214 = vadd.f32 %v3081, %v3213
  %3215 = vmatprep.mubr.bf16.mxu0 %v2305
  %3216 = vmatmul.mubr.bf16.gmra.mrb[0].mxu0 %v2264
  %v3217 = vpop.f32.mrb[0].mxu0
  %v3218 = vadd.f32 %v3085, %v3217
  %v3219 = vpop.f32.mrb[0].mxu0
  %v3220 = vadd.f32 %v3087, %v3219
  %v3221 = vpop.f32.mrb[0].mxu0
  %v3222 = vadd.f32 %v3089, %v3221
  %v3223 = vpop.f32.mrb[0].mxu0
  %v3224 = vadd.f32 %v3091, %v3223
  %3225 = vmatprep.mubr.bf16.mxu0 %v2309
  %3226 = vmatmul.mubr.bf16.gmra.mrb[0].mxu0 %v2268
  %v3227 = vpop.f32.mrb[0].mxu0
  %v3228 = vadd.f32 %v3095, %v3227
  %v3229 = vpop.f32.mrb[0].mxu0
  %v3230 = vadd.f32 %v3097, %v3229
  %v3231 = vpop.f32.mrb[0].mxu0
  %v3232 = vadd.f32 %v3099, %v3231
  %v3233 = vpop.f32.mrb[0].mxu0
  %v3234 = vadd.f32 %v3101, %v3233
  %3235 = vmatprep.mubr.bf16.mxu0 %v2313
  %3236 = vmatmul.mubr.bf16.gmra.mrb[0].mxu0 %v2272
  %v3237 = vpop.f32.mrb[0].mxu0
  %v3238 = vadd.f32 %v3105, %v3237
  %v3239 = vpop.f32.mrb[0].mxu0
  %v3240 = vadd.f32 %v3107, %v3239
  %v3241 = vpop.f32.mrb[0].mxu0
  %v3242 = vadd.f32 %v3109, %v3241
  %v3243 = vpop.f32.mrb[0].mxu0
  %v3244 = vadd.f32 %v3111, %v3243
  %3245 = vmatprep.mubr.bf16.mxu0 %v2317
  %3246 = vmatmul.mubr.bf16.gmra.mrb[0].mxu0 %v2276
  %v3247 = vpop.f32.mrb[0].mxu0
  %v3248 = vadd.f32 %v3115, %v3247
  %v3249 = vpop.f32.mrb[0].mxu0
  %v3250 = vadd.f32 %v3117, %v3249
  %v3251 = vpop.f32.mrb[0].mxu0
  %v3252 = vadd.f32 %v3119, %v3251
  %v3253 = vpop.f32.mrb[0].mxu0
  %v3254 = vadd.f32 %v3121, %v3253
  %3255 = vmatprep.mubr.bf16.mxu0 %v2321
  %3256 = vmatmul.mubr.bf16.gmra.mrb[0].mxu0 %v2280
  %v3257 = vpop.f32.mrb[0].mxu0
  %v3258 = vadd.f32 %v3125, %v3257
  %v3259 = vpop.f32.mrb[0].mxu0
  %v3260 = vadd.f32 %v3127, %v3259
  %v3261 = vpop.f32.mrb[0].mxu0
  %v3262 = vadd.f32 %v3129, %v3261
  %v3263 = vpop.f32.mrb[0].mxu0
  %v3264 = vadd.f32 %v3131, %v3263
  %3265 = vmatprep.mubr.bf16.mxu0 %v2325
  %3266 = vmatmul.mubr.bf16.gmra.mrb[0].mxu0 %v2284
  %v3267 = vpop.f32.mrb[0].mxu0
  %v3268 = vadd.f32 %v3135, %v3267
  %v3269 = vpop.f32.mrb[0].mxu0
  %v3270 = vadd.f32 %v3137, %v3269
  %v3271 = vpop.f32.mrb[0].mxu0
  %v3272 = vadd.f32 %v3139, %v3271
  %v3273 = vpop.f32.mrb[0].mxu0
  %v3274 = vadd.f32 %v3141, %v3273
  %3275 = vmatprep.mubr.bf16.mxu0 %v2329
  %3276 = vmatmul.mubr.bf16.gmra.mrb[0].mxu0 %v2288
  %v3277 = vpop.f32.mrb[0].mxu0
  %v3278 = vadd.f32 %v3145, %v3277
  %v3279 = vpop.f32.mrb[0].mxu0
  %v3280 = vadd.f32 %v3147, %v3279
  %v3281 = vpop.f32.mrb[0].mxu0
  %v3282 = vadd.f32 %v3149, %v3281
  %v3283 = vpop.f32.mrb[0].mxu0
  %v3284 = vadd.f32 %v3151, %v3283
  %3285 = vmatprep.mubr.bf16.mxu0 %v2333
  %3286 = vmatmul.mubr.bf16.gmra.mrb[0].mxu0 %v2292
  %v3287 = vpop.f32.mrb[0].mxu0
  %v3288 = vadd.f32 %v3155, %v3287
  %v3289 = vpop.f32.mrb[0].mxu0
  %v3290 = vadd.f32 %v3157, %v3289
  %v3291 = vpop.f32.mrb[0].mxu0
  %v3292 = vadd.f32 %v3159, %v3291
  %v3293 = vpop.f32.mrb[0].mxu0
  %v3294 = vadd.f32 %v3161, %v3293
  %3295 = vmatprep.mubr.bf16.mxu0 %v2337
  %3296 = vmatmul.mubr.bf16.gmra.mrb[0].mxu0 %v2296
  %v3297 = vpop.f32.mrb[0].mxu0
  %v3298 = vadd.f32 %v3165, %v3297
  %v3299 = vpop.f32.mrb[0].mxu0
  %v3300 = vadd.f32 %v3167, %v3299
  %v3301 = vpop.f32.mrb[0].mxu0
  %v3302 = vadd.f32 %v3169, %v3301
  %v3303 = vpop.f32.mrb[0].mxu0
  %v3304 = vadd.f32 %v3171, %v3303
  %3305 = vdwg.mxu0
  %3306 = vmatprep.subr.bf16.mxu0 %v2865
  %3307 = vmatpush1.bf16.msra.mxu0 %v2864
  %3308 = vmatprep.subr.bf16.mxu0 %v2867
  %3309 = vmatpush1.bf16.msra.mxu0 %v2866
  %3310 = vmatprep.subr.bf16.mxu0 %v2869
  %3311 = vmatpush1.bf16.msra.mxu0 %v2868
  %3312 = vmatprep.subr.bf16.mxu0 %v2871
  %3313 = vmatpush1.bf16.msra.mxu0 %v2870
  %3314 = vmatprep.subr.bf16.mxu0 %v2873
  %3315 = vmatpush1.bf16.msra.mxu0 %v2872
  %3316 = vmatprep.subr.bf16.mxu0 %v2875
  %3317 = vmatpush1.bf16.msra.mxu0 %v2874
  %3318 = vmatprep.subr.bf16.mxu0 %v2877
  %3319 = vmatpush1.bf16.msra.mxu0 %v2876
  %3320 = vmatprep.subr.bf16.mxu0 %v2879
  %3321 = vmatpush1.bf16.msra.mxu0 %v2878
  %3322 = vmatprep.subr.bf16.mxu0 %v2881
  %3323 = vmatpush1.bf16.msra.mxu0 %v2880
  %3324 = vmatprep.subr.bf16.mxu0 %v2883
  %3325 = vmatpush1.bf16.msra.mxu0 %v2882
  %3326 = vmatprep.subr.bf16.mxu0 %v2885
  %3327 = vmatpush1.bf16.msra.mxu0 %v2884
  %3328 = vmatprep.subr.bf16.mxu0 %v2887
  %3329 = vmatpush1.bf16.msra.mxu0 %v2886
  %3330 = vmatprep.subr.bf16.mxu0 %v2889
  %3331 = vmatpush1.bf16.msra.mxu0 %v2888
  %3332 = vmatprep.subr.bf16.mxu0 %v2891
  %3333 = vmatpush1.bf16.msra.mxu0 %v2890
  %3334 = vmatprep.subr.bf16.mxu0 %v2893
  %3335 = vmatpush1.bf16.msra.mxu0 %v2892
  %3336 = vmatprep.subr.bf16.mxu0 %v2895
  %3337 = vmatpush1.bf16.msra.mxu0 %v2894
  %3338 = vmatprep.mubr.bf16.mxu0 %v2342
  %3339 = vmatmul.mubr.bf16.gmra.mrb[0].mxu0 %v2143
  %v3340 = vpop.f32.mrb[0].mxu0
  %v3341 = vadd.f32 %v3208, %v3340
  %v3342 = vpop.f32.mrb[0].mxu0
  %v3343 = vadd.f32 %v3210, %v3342
  %v3344 = vpop.f32.mrb[0].mxu0
  %v3345 = vadd.f32 %v3212, %v3344
  %v3346 = vpop.f32.mrb[0].mxu0
  %v3347 = vadd.f32 %v3214, %v3346
  %3348 = vmatprep.mubr.bf16.mxu0 %v2346
  %3349 = vmatmul.mubr.bf16.gmra.mrb[0].mxu0 %v2144
  %v3350 = vpop.f32.mrb[0].mxu0
  %v3351 = vadd.f32 %v3218, %v3350
  %v3352 = vpop.f32.mrb[0].mxu0
  %v3353 = vadd.f32 %v3220, %v3352
  %v3354 = vpop.f32.mrb[0].mxu0
  %v3355 = vadd.f32 %v3222, %v3354
  %v3356 = vpop.f32.mrb[0].mxu0
  %v3357 = vadd.f32 %v3224, %v3356
  %3358 = vmatprep.mubr.bf16.mxu0 %v2350
  %3359 = vmatmul.mubr.bf16.gmra.mrb[0].mxu0 %v2145
  %v3360 = vpop.f32.mrb[0].mxu0
  %v3361 = vadd.f32 %v3228, %v3360
  %v3362 = vpop.f32.mrb[0].mxu0
  %v3363 = vadd.f32 %v3230, %v3362
  %v3364 = vpop.f32.mrb[0].mxu0
  %v3365 = vadd.f32 %v3232, %v3364
  %v3366 = vpop.f32.mrb[0].mxu0
  %v3367 = vadd.f32 %v3234, %v3366
  %3368 = vmatprep.mubr.bf16.mxu0 %v2354
  %3369 = vmatmul.mubr.bf16.gmra.mrb[0].mxu0 %v2146
  %v3370 = vpop.f32.mrb[0].mxu0
  %v3371 = vadd.f32 %v3238, %v3370
  %v3372 = vpop.f32.mrb[0].mxu0
  %v3373 = vadd.f32 %v3240, %v3372
  %v3374 = vpop.f32.mrb[0].mxu0
  %v3375 = vadd.f32 %v3242, %v3374
  %v3376 = vpop.f32.mrb[0].mxu0
  %v3377 = vadd.f32 %v3244, %v3376
  %3378 = vmatprep.mubr.bf16.mxu0 %v2358
  %3379 = vmatmul.mubr.bf16.gmra.mrb[0].mxu0 %v2147
  %v3380 = vpop.f32.mrb[0].mxu0
  %v3381 = vadd.f32 %v3248, %v3380
  %v3382 = vpop.f32.mrb[0].mxu0
  %v3383 = vadd.f32 %v3250, %v3382
  %v3384 = vpop.f32.mrb[0].mxu0
  %v3385 = vadd.f32 %v3252, %v3384
  %v3386 = vpop.f32.mrb[0].mxu0
  %v3387 = vadd.f32 %v3254, %v3386
  %3388 = vmatprep.mubr.bf16.mxu0 %v2362
  %3389 = vmatmul.mubr.bf16.gmra.mrb[0].mxu0 %v2148
  %v3390 = vpop.f32.mrb[0].mxu0
  %v3391 = vadd.f32 %v3258, %v3390
  %v3392 = vpop.f32.mrb[0].mxu0
  %v3393 = vadd.f32 %v3260, %v3392
  %v3394 = vpop.f32.mrb[0].mxu0
  %v3395 = vadd.f32 %v3262, %v3394
  %v3396 = vpop.f32.mrb[0].mxu0
  %v3397 = vadd.f32 %v3264, %v3396
  %3398 = vmatprep.mubr.bf16.mxu0 %v2366
  %3399 = vmatmul.mubr.bf16.gmra.mrb[0].mxu0 %v2149
  %v3400 = vpop.f32.mrb[0].mxu0
  %v3401 = vadd.f32 %v3268, %v3400
  %v3402 = vpop.f32.mrb[0].mxu0
  %v3403 = vadd.f32 %v3270, %v3402
  %v3404 = vpop.f32.mrb[0].mxu0
  %v3405 = vadd.f32 %v3272, %v3404
  %v3406 = vpop.f32.mrb[0].mxu0
  %v3407 = vadd.f32 %v3274, %v3406
  %3408 = vmatprep.mubr.bf16.mxu0 %v2370
  %3409 = vmatmul.mubr.bf16.gmra.mrb[0].mxu0 %v2150
  %v3410 = vpop.f32.mrb[0].mxu0
  %v3411 = vadd.f32 %v3278, %v3410
  %v3412 = vpop.f32.mrb[0].mxu0
  %v3413 = vadd.f32 %v3280, %v3412
  %v3414 = vpop.f32.mrb[0].mxu0
  %v3415 = vadd.f32 %v3282, %v3414
  %v3416 = vpop.f32.mrb[0].mxu0
  %v3417 = vadd.f32 %v3284, %v3416
  %3418 = vmatprep.mubr.bf16.mxu0 %v2374
  %3419 = vmatmul.mubr.bf16.gmra.mrb[0].mxu0 %v2151
  %v3420 = vpop.f32.mrb[0].mxu0
  %v3421 = vadd.f32 %v3288, %v3420
  %v3422 = vpop.f32.mrb[0].mxu0
  %v3423 = vadd.f32 %v3290, %v3422
  %v3424 = vpop.f32.mrb[0].mxu0
  %v3425 = vadd.f32 %v3292, %v3424
  %v3426 = vpop.f32.mrb[0].mxu0
  %v3427 = vadd.f32 %v3294, %v3426
  %3428 = vmatprep.mubr.bf16.mxu0 %v2378
  %3429 = vmatmul.mubr.bf16.gmra.mrb[0].mxu0 %v2152
  %v3430 = vpop.f32.mrb[0].mxu0
  %v3431 = vadd.f32 %v3298, %v3430
  %v3432 = vpop.f32.mrb[0].mxu0
  %v3433 = vadd.f32 %v3300, %v3432
  %v3434 = vpop.f32.mrb[0].mxu0
  %v3435 = vadd.f32 %v3302, %v3434
  %v3436 = vpop.f32.mrb[0].mxu0
  %v3437 = vadd.f32 %v3304, %v3436
  %3438 = vdwg.mxu0
  %3439 = vmatprep.subr.bf16.mxu0 %v2897
  %3440 = vmatpush1.bf16.msra.mxu0 %v2896
  %3441 = vmatprep.subr.bf16.mxu0 %v2899
  %3442 = vmatpush1.bf16.msra.mxu0 %v2898
  %3443 = vmatprep.subr.bf16.mxu0 %v3038
  %3444 = vmatpush1.bf16.msra.mxu0 %v3035
  %3445 = vmatprep.subr.bf16.mxu0 0
  %3446 = vmatpush1.bf16.msra.mxu0 0
  %3447 = vmatprep.subr.bf16.mxu0 0
  %3448 = vmatpush1.bf16.msra.mxu0 0
  %3449 = vmatprep.subr.bf16.mxu0 0
  %3450 = vmatpush1.bf16.msra.mxu0 0
  %3451 = vmatprep.subr.bf16.mxu0 0
  %3452 = vmatpush1.bf16.msra.mxu0 0
  %3453 = vmatprep.subr.bf16.mxu0 0
  %3454 = vmatpush1.bf16.msra.mxu0 0
  %3455 = vmatprep.subr.bf16.mxu0 0
  %3456 = vmatpush1.bf16.msra.mxu0 0
  %3457 = vmatprep.subr.bf16.mxu0 0
  %3458 = vmatpush1.bf16.msra.mxu0 0
  %3459 = vmatprep.subr.bf16.mxu0 0
  %3460 = vmatpush1.bf16.msra.mxu0 0
  %3461 = vmatprep.subr.bf16.mxu0 0
  %3462 = vmatpush1.bf16.msra.mxu0 0
  %3463 = vmatprep.subr.bf16.mxu0 0
  %3464 = vmatpush1.bf16.msra.mxu0 0
  %3465 = vmatprep.subr.bf16.mxu0 0
  %3466 = vmatpush1.bf16.msra.mxu0 0
  %3467 = vmatprep.subr.bf16.mxu0 0
  %3468 = vmatpush1.bf16.msra.mxu0 0
  %3469 = vmatprep.subr.bf16.mxu0 0
  %3470 = vmatpush1.bf16.msra.mxu0 0
  %3471 = vmatprep.mubr.bf16.mxu0 0
  %3472 = vmatmul.mubr.bf16.gmra.mrb[0].mxu0 %v3004
  %v3473 = vpop.f32.mrb[0].mxu0
  %v3474 = vadd.f32 %v3341, %v3473
  %v3475 = vpop.f32.mrb[0].mxu0
  %v3476 = vadd.f32 %v3343, %v3475
  %v3477 = vpop.f32.mrb[0].mxu0
  %v3478 = vadd.f32 %v3345, %v3477
  %v3479 = vpop.f32.mrb[0].mxu0
  %v3480 = vadd.f32 %v3347, %v3479
  %3481 = vmatprep.mubr.bf16.mxu0 0
  %3482 = vmatmul.mubr.bf16.gmra.mrb[0].mxu0 %v3007
  %v3483 = vpop.f32.mrb[0].mxu0
  %v3484 = vadd.f32 %v3351, %v3483
  %v3485 = vpop.f32.mrb[0].mxu0
  %v3486 = vadd.f32 %v3353, %v3485
  %v3487 = vpop.f32.mrb[0].mxu0
  %v3488 = vadd.f32 %v3355, %v3487
  %v3489 = vpop.f32.mrb[0].mxu0
  %v3490 = vadd.f32 %v3357, %v3489
  %3491 = vmatprep.mubr.bf16.mxu0 0
  %3492 = vmatmul.mubr.bf16.gmra.mrb[0].mxu0 %v3010
  %v3493 = vpop.f32.mrb[0].mxu0
  %v3494 = vadd.f32 %v3361, %v3493
  %v3495 = vpop.f32.mrb[0].mxu0
  %v3496 = vadd.f32 %v3363, %v3495
  %v3497 = vpop.f32.mrb[0].mxu0
  %v3498 = vadd.f32 %v3365, %v3497
  %v3499 = vpop.f32.mrb[0].mxu0
  %v3500 = vadd.f32 %v3367, %v3499
  %3501 = vmatprep.mubr.bf16.mxu0 0
  %3502 = vmatmul.mubr.bf16.gmra.mrb[0].mxu0 %v3013
  %v3503 = vpop.f32.mrb[0].mxu0
  %v3504 = vadd.f32 %v3371, %v3503
  %v3505 = vpop.f32.mrb[0].mxu0
  %v3506 = vadd.f32 %v3373, %v3505
  %v3507 = vpop.f32.mrb[0].mxu0
  %v3508 = vadd.f32 %v3375, %v3507
  %v3509 = vpop.f32.mrb[0].mxu0
  %v3510 = vadd.f32 %v3377, %v3509
  %3511 = vmatprep.mubr.bf16.mxu0 0
  %3512 = vmatmul.mubr.bf16.gmra.mrb[0].mxu0 %v3016
  %v3513 = vpop.f32.mrb[0].mxu0
  %v3514 = vadd.f32 %v3381, %v3513
  %v3515 = vpop.f32.mrb[0].mxu0
  %v3516 = vadd.f32 %v3383, %v3515
  %v3517 = vpop.f32.mrb[0].mxu0
  %v3518 = vadd.f32 %v3385, %v3517
  %v3519 = vpop.f32.mrb[0].mxu0
  %v3520 = vadd.f32 %v3387, %v3519
  %3521 = vmatprep.mubr.bf16.mxu0 0
  %3522 = vmatmul.mubr.bf16.gmra.mrb[0].mxu0 %v3019
  %v3523 = vpop.f32.mrb[0].mxu0
  %v3524 = vadd.f32 %v3391, %v3523
  %v3525 = vpop.f32.mrb[0].mxu0
  %v3526 = vadd.f32 %v3393, %v3525
  %v3527 = vpop.f32.mrb[0].mxu0
  %v3528 = vadd.f32 %v3395, %v3527
  %v3529 = vpop.f32.mrb[0].mxu0
  %v3530 = vadd.f32 %v3397, %v3529
  %3531 = vmatprep.mubr.bf16.mxu0 0
  %3532 = vmatmul.mubr.bf16.gmra.mrb[0].mxu0 %v3022
  %v3533 = vpop.f32.mrb[0].mxu0
  %v3534 = vadd.f32 %v3401, %v3533
  %v3535 = vpop.f32.mrb[0].mxu0
  %v3536 = vadd.f32 %v3403, %v3535
  %v3537 = vpop.f32.mrb[0].mxu0
  %v3538 = vadd.f32 %v3405, %v3537
  %v3539 = vpop.f32.mrb[0].mxu0
  %v3540 = vadd.f32 %v3407, %v3539
  %3541 = vmatprep.mubr.bf16.mxu0 0
  %3542 = vmatmul.mubr.bf16.gmra.mrb[0].mxu0 %v3025
  %v3543 = vpop.f32.mrb[0].mxu0
  %v3544 = vadd.f32 %v3411, %v3543
  %v3545 = vpop.f32.mrb[0].mxu0
  %v3546 = vadd.f32 %v3413, %v3545
  %v3547 = vpop.f32.mrb[0].mxu0
  %v3548 = vadd.f32 %v3415, %v3547
  %v3549 = vpop.f32.mrb[0].mxu0
  %v3550 = vadd.f32 %v3417, %v3549
  %3551 = vmatprep.mubr.bf16.mxu0 0
  %3552 = vmatmul.mubr.bf16.gmra.mrb[0].mxu0 %v3028
  %v3553 = vpop.f32.mrb[0].mxu0
  %v3554 = vadd.f32 %v3421, %v3553
  %v3555 = vpop.f32.mrb[0].mxu0
  %v3556 = vadd.f32 %v3423, %v3555
  %v3557 = vpop.f32.mrb[0].mxu0
  %v3558 = vadd.f32 %v3425, %v3557
  %v3559 = vpop.f32.mrb[0].mxu0
  %v3560 = vadd.f32 %v3427, %v3559
  %3561 = vmatprep.mubr.bf16.mxu0 0
  %3562 = vmatmul.mubr.bf16.gmra.mrb[0].mxu0 %v3031
  %v3563 = vpop.f32.mrb[0].mxu0
  %v3564 = vadd.f32 %v3431, %v3563
  %v3565 = vpop.f32.mrb[0].mxu0
  %v3566 = vadd.f32 %v3433, %v3565
  %v3567 = vpop.f32.mrb[0].mxu0
  %v3568 = vadd.f32 %v3435, %v3567
  %v3569 = vpop.f32.mrb[0].mxu0
  %v3570 = vadd.f32 %v3437, %v3569
  %3571 = vdwg.mxu0
  %v3572 = vmax.f32 %v3474, 0.0
  %v3573 = vmax.f32 %v3476, 0.0
  %v3574 = vmax.f32 %v3478, 0.0
  %v3575 = vmax.f32 %v3480, 0.0
  %v3576 = vmax.f32 %v3484, 0.0
  %v3577 = vmax.f32 %v3486, 0.0
  %v3578 = vmax.f32 %v3488, 0.0
  %v3579 = vmax.f32 %v3490, 0.0
  %v3580 = vmax.f32 %v3494, 0.0
  %v3581 = vmax.f32 %v3496, 0.0
  %v3582 = vmax.f32 %v3498, 0.0
  %v3583 = vmax.f32 %v3500, 0.0
  %v3584 = vmax.f32 %v3504, 0.0
  %v3585 = vmax.f32 %v3506, 0.0
  %v3586 = vmax.f32 %v3508, 0.0
  %v3587 = vmax.f32 %v3510, 0.0
  %v3588 = vmax.f32 %v3514, 0.0
  %v3589 = vmax.f32 %v3516, 0.0
  %v3590 = vmax.f32 %v3518, 0.0
  %v3591 = vmax.f32 %v3520, 0.0
  %v3592 = vmax.f32 %v3524, 0.0
  %v3593 = vmax.f32 %v3526, 0.0
  %v3594 = vmax.f32 %v3528, 0.0
  %v3595 = vmax.f32 %v3530, 0.0
  %v3596 = vmax.f32 %v3534, 0.0
  %v3597 = vmax.f32 %v3536, 0.0
  %v3598 = vmax.f32 %v3538, 0.0
  %v3599 = vmax.f32 %v3540, 0.0
  %v3600 = vmax.f32 %v3544, 0.0
  %v3601 = vmax.f32 %v3546, 0.0
  %v3602 = vmax.f32 %v3548, 0.0
  %v3603 = vmax.f32 %v3550, 0.0
  %v3604 = vmax.f32 %v3554, 0.0
  %v3605 = vmax.f32 %v3556, 0.0
  %v3606 = vmax.f32 %v3558, 0.0
  %v3607 = vmax.f32 %v3560, 0.0
  %v3608 = vmax.f32 %v3564, 0.0
  %v3609 = vmax.f32 %v3566, 0.0
  %v3610 = vmax.f32 %v3568, 0.0
  %v3611 = vmax.f32 %v3570, 0.0
  %3652 = vrot.lane.b32.xlu0 %v3572, 112
  %v3653 = vpop.permute.xlu0 %3652
  %3654 = vrot.lane.b32.xlu0 %v3573, 112
  %v3655 = vpop.permute.xlu0 %3654
  %3656 = vrot.lane.b32.xlu0 %v3574, 112
  %v3657 = vpop.permute.xlu0 %3656
  %3658 = vrot.lane.b32.xlu0 %v3575, 112
  %v3659 = vpop.permute.xlu0 %3658
  %3660 = vrot.lane.b32.xlu0 %v3576, 112
  %v3661 = vpop.permute.xlu0 %3660
  %3662 = vrot.lane.b32.xlu0 %v3577, 112
  %v3663 = vpop.permute.xlu0 %3662
  %3664 = vrot.lane.b32.xlu0 %v3578, 112
  %v3665 = vpop.permute.xlu0 %3664
  %3666 = vrot.lane.b32.xlu0 %v3579, 112
  %v3667 = vpop.permute.xlu0 %3666
  %3668 = vrot.lane.b32.xlu0 %v3580, 112
  %v3669 = vpop.permute.xlu0 %3668
  %3670 = vrot.lane.b32.xlu0 %v3581, 112
  %v3671 = vpop.permute.xlu0 %3670
  %3672 = vrot.lane.b32.xlu0 %v3582, 112
  %v3673 = vpop.permute.xlu0 %3672
  %3674 = vrot.lane.b32.xlu0 %v3583, 112
  %v3675 = vpop.permute.xlu0 %3674
  %3676 = vrot.lane.b32.xlu0 %v3584, 112
  %v3677 = vpop.permute.xlu0 %3676
  %3678 = vrot.lane.b32.xlu0 %v3585, 112
  %v3679 = vpop.permute.xlu0 %3678
  %3680 = vrot.lane.b32.xlu0 %v3586, 112
  %v3681 = vpop.permute.xlu0 %3680
  %3682 = vrot.lane.b32.xlu0 %v3587, 112
  %v3683 = vpop.permute.xlu0 %3682
  %3684 = vrot.lane.b32.xlu0 %v3588, 112
  %v3685 = vpop.permute.xlu0 %3684
  %3686 = vrot.lane.b32.xlu0 %v3589, 112
  %v3687 = vpop.permute.xlu0 %3686
  %3688 = vrot.lane.b32.xlu0 %v3590, 112
  %v3689 = vpop.permute.xlu0 %3688
  %3690 = vrot.lane.b32.xlu0 %v3591, 112
  %v3691 = vpop.permute.xlu0 %3690
  %3692 = vrot.lane.b32.xlu0 %v3592, 112
  %v3693 = vpop.permute.xlu0 %3692
  %3694 = vrot.lane.b32.xlu0 %v3593, 112
  %v3695 = vpop.permute.xlu0 %3694
  %3696 = vrot.lane.b32.xlu0 %v3594, 112
  %v3697 = vpop.permute.xlu0 %3696
  %3698 = vrot.lane.b32.xlu0 %v3595, 112
  %v3699 = vpop.permute.xlu0 %3698
  %3700 = vrot.lane.b32.xlu0 %v3596, 112
  %v3701 = vpop.permute.xlu0 %3700
  %3702 = vrot.lane.b32.xlu0 %v3597, 112
  %v3703 = vpop.permute.xlu0 %3702
  %3704 = vrot.lane.b32.xlu0 %v3598, 112
  %v3705 = vpop.permute.xlu0 %3704
  %3706 = vrot.lane.b32.xlu0 %v3599, 112
  %v3707 = vpop.permute.xlu0 %3706
  %3708 = vrot.lane.b32.xlu0 %v3600, 112
  %v3709 = vpop.permute.xlu0 %3708
  %3710 = vrot.lane.b32.xlu0 %v3601, 112
  %v3711 = vpop.permute.xlu0 %3710
  %3712 = vrot.lane.b32.xlu0 %v3602, 112
  %v3713 = vpop.permute.xlu0 %3712
  %3714 = vrot.lane.b32.xlu0 %v3603, 112
  %v3715 = vpop.permute.xlu0 %3714
  %3716 = vrot.lane.b32.xlu0 %v3604, 112
  %v3717 = vpop.permute.xlu0 %3716
  %3718 = vrot.lane.b32.xlu0 %v3605, 112
  %v3719 = vpop.permute.xlu0 %3718
  %3720 = vrot.lane.b32.xlu0 %v3606, 112
  %v3721 = vpop.permute.xlu0 %3720
  %3722 = vrot.lane.b32.xlu0 %v3607, 112
  %v3723 = vpop.permute.xlu0 %3722
  %3724 = vrot.lane.b32.xlu0 %v3608, 112
  %v3725 = vpop.permute.xlu0 %3724
  %3726 = vrot.lane.b32.xlu0 %v3609, 112
  %v3727 = vpop.permute.xlu0 %3726
  %3728 = vrot.lane.b32.xlu0 %v3610, 112
  %v3729 = vpop.permute.xlu0 %3728
  %3730 = vrot.lane.b32.xlu0 %v3611, 112
  %v3731 = vpop.permute.xlu0 %3730
  %vm3732 = vcmask 916480
  %v3733 = vsel %vm3732, %v3653, %v3655
  %v3734 = vsel %vm3732, %v3657, %v3659
  %v3735 = vsel %vm3732, %v3661, %v3663
  %v3736 = vsel %vm3732, %v3665, %v3667
  %v3737 = vsel %vm3732, %v3669, %v3671
  %v3738 = vsel %vm3732, %v3673, %v3675
  %v3739 = vsel %vm3732, %v3677, %v3679
  %v3740 = vsel %vm3732, %v3681, %v3683
  %v3741 = vsel %vm3732, %v3685, %v3687
  %v3742 = vsel %vm3732, %v3689, %v3691
  %v3743 = vsel %vm3732, %v3693, %v3695
  %v3744 = vsel %vm3732, %v3697, %v3699
  %v3745 = vsel %vm3732, %v3701, %v3703
  %v3746 = vsel %vm3732, %v3705, %v3707
  %v3747 = vsel %vm3732, %v3709, %v3711
  %v3748 = vsel %vm3732, %v3713, %v3715
  %v3749 = vsel %vm3732, %v3717, %v3719
  %v3750 = vsel %vm3732, %v3721, %v3723
  %v3751 = vsel %vm3732, %v3725, %v3727
  %v3752 = vsel %vm3732, %v3729, %v3731
  %v3793 = vmax.f32 %v3572, %v3733
  %v3794 = vmax.f32 %v3573, %v3655
  %v3795 = vmax.f32 %v3574, %v3734
  %v3796 = vmax.f32 %v3575, %v3659
  %v3797 = vmax.f32 %v3576, %v3735
  %v3798 = vmax.f32 %v3577, %v3663
  %v3799 = vmax.f32 %v3578, %v3736
  %v3800 = vmax.f32 %v3579, %v3667
  %v3801 = vmax.f32 %v3580, %v3737
  %v3802 = vmax.f32 %v3581, %v3671
  %v3803 = vmax.f32 %v3582, %v3738
  %v3804 = vmax.f32 %v3583, %v3675
  %v3805 = vmax.f32 %v3584, %v3739
  %v3806 = vmax.f32 %v3585, %v3679
  %v3807 = vmax.f32 %v3586, %v3740
  %v3808 = vmax.f32 %v3587, %v3683
  %v3809 = vmax.f32 %v3588, %v3741
  %v3810 = vmax.f32 %v3589, %v3687
  %v3811 = vmax.f32 %v3590, %v3742
  %v3812 = vmax.f32 %v3591, %v3691
  %v3813 = vmax.f32 %v3592, %v3743
  %v3814 = vmax.f32 %v3593, %v3695
  %v3815 = vmax.f32 %v3594, %v3744
  %v3816 = vmax.f32 %v3595, %v3699
  %v3817 = vmax.f32 %v3596, %v3745
  %v3818 = vmax.f32 %v3597, %v3703
  %v3819 = vmax.f32 %v3598, %v3746
  %v3820 = vmax.f32 %v3599, %v3707
  %v3821 = vmax.f32 %v3600, %v3747
  %v3822 = vmax.f32 %v3601, %v3711
  %v3823 = vmax.f32 %v3602, %v3748
  %v3824 = vmax.f32 %v3603, %v3715
  %v3825 = vmax.f32 %v3604, %v3749
  %v3826 = vmax.f32 %v3605, %v3719
  %v3827 = vmax.f32 %v3606, %v3750
  %v3828 = vmax.f32 %v3607, %v3723
  %v3829 = vmax.f32 %v3608, %v3751
  %v3830 = vmax.f32 %v3609, %v3727
  %v3831 = vmax.f32 %v3610, %v3752
  %v3832 = vmax.f32 %v3611, %v3731
  %v3833 = vmax.f32 %v3793, %v3797
  %v3834 = vmax.f32 %v3794, %v3798
  %v3835 = vmax.f32 %v3795, %v3799
  %v3836 = vmax.f32 %v3796, %v3800
  %v3837 = vmax.f32 %v3801, %v3805
  %v3838 = vmax.f32 %v3802, %v3806
  %v3839 = vmax.f32 %v3803, %v3807
  %v3840 = vmax.f32 %v3804, %v3808
  %v3841 = vmax.f32 %v3809, %v3813
  %v3842 = vmax.f32 %v3810, %v3814
  %v3843 = vmax.f32 %v3811, %v3815
  %v3844 = vmax.f32 %v3812, %v3816
  %v3845 = vmax.f32 %v3817, %v3821
  %v3846 = vmax.f32 %v3818, %v3822
  %v3847 = vmax.f32 %v3819, %v3823
  %v3848 = vmax.f32 %v3820, %v3824
  %v3849 = vmax.f32 %v3825, %v3829
  %v3850 = vmax.f32 %v3826, %v3830
  %v3851 = vmax.f32 %v3827, %v3831
  %v3852 = vmax.f32 %v3828, %v3832
  %v3853 = vpack.c.bf16 %v3835, %v3833
  %v3854 = vpack.c.bf16 %v3836, %v3834
  %v3855 = vpack.c.bf16 %v3839, %v3837
  %v3856 = vpack.c.bf16 %v3840, %v3838
  %v3857 = vpack.c.bf16 %v3843, %v3841
  %v3858 = vpack.c.bf16 %v3844, %v3842
  %v3859 = vpack.c.bf16 %v3847, %v3845
  %v3860 = vpack.c.bf16 %v3848, %v3846
  %v3861 = vpack.c.bf16 %v3851, %v3849
  %v3862 = vpack.c.bf16 %v3852, %v3850
  %v3863 = vld [vmem:[%s5] sm:$0xf]
  %v3864 = vld [vmem:[%s5 + $0x4] sm:$0xf]
  %v3865 = vld [vmem:[%s5 + $0x8] sm:$0xf]
  %v3866 = vld [vmem:[%s5 + $0xc] sm:$0xf]
  %v3867 = vld [vmem:[%s5 + $0x10] sm:$0xf]
  %v3868 = vld [vmem:[%s5 + $0x14] sm:$0xf]
  %v3869 = vld [vmem:[%s5 + $0x18] sm:$0xf]
  %v3870 = vld [vmem:[%s5 + $0x1c] sm:$0xf]
  %v3871 = vld [vmem:[%s5 + $0x20] sm:$0xf]
  %v3872 = vld [vmem:[%s5 + $0x24] sm:$0xf]
  %v3873 = vld [vmem:[%s5 + $0x28] sm:$0xf]
  %v3874 = vld [vmem:[%s5 + $0x2c] sm:$0xf]
  %v3875 = vld [vmem:[%s5 + $0x30] sm:$0xf]
  %v3876 = vld [vmem:[%s5 + $0x34] sm:$0xf]
  %v3877 = vld [vmem:[%s5 + $0x38] sm:$0xf]
  %v3878 = vld [vmem:[%s5 + $0x3c] sm:$0xf]
  %v3879 = vld [vmem:[%s5 + $0x40] sm:$0xf]
  %v3880 = vld [vmem:[%s5 + $0x44] sm:$0xf]
  %v3881 = vld [vmem:[%s6] sm:$0x1]
  %v3883 = vlaneseq
  %v3884 = vshrl.u32 %v3883, 7
  %v3885 = vsub.s32 0, %v3884
  %v3886 = vrot.slane %v3881, %v3885
  %v3906 = vunpack.c.l.b16 %v3863
  %v3907 = vunpack.c.l.b16 %v3864
  %v3908 = vunpack.c.l.b16 %v3865
  %v3909 = vunpack.c.l.b16 %v3866
  %v3910 = vunpack.c.l.b16 %v3867
  %v3911 = vunpack.c.l.b16 %v3868
  %v3912 = vunpack.c.l.b16 %v3869
  %v3913 = vunpack.c.l.b16 %v3870
  %v3914 = vunpack.c.l.b16 %v3871
  %v3915 = vunpack.c.l.b16 %v3872
  %v3916 = vunpack.c.l.b16 %v3873
  %v3917 = vunpack.c.l.b16 %v3874
  %v3918 = vunpack.c.l.b16 %v3875
  %v3919 = vunpack.c.l.b16 %v3876
  %v3920 = vunpack.c.l.b16 %v3877
  %v3921 = vunpack.c.l.b16 %v3878
  %v3922 = vunpack.c.l.b16 %v3879
  %v3923 = vunpack.c.l.b16 %v3880
  %v3924 = vpack.c.b16 %v3907, %v3906
  %v3925 = vpack.c.b16 %v3909, %v3908
  %v3926 = vpack.c.b16 %v3911, %v3910
  %v3927 = vpack.c.b16 %v3913, %v3912
  %v3928 = vpack.c.b16 %v3915, %v3914
  %v3929 = vpack.c.b16 %v3917, %v3916
  %v3930 = vpack.c.b16 %v3919, %v3918
  %v3931 = vpack.c.b16 %v3921, %v3920
  %v3932 = vpack.c.b16 %v3923, %v3922
  %vm3942 = vcmask 130048
  %v3944 = vsel %vm3942, %v3854, 0
  %3946 = vmatprep.subr.bf16.mxu0 0
  %3947 = vmatpush1.bf16.msra.mxu0 %v3924
  %3948 = vmatprep.subr.bf16.mxu0 0
  %3949 = vmatpush1.bf16.msra.mxu0 %v3925
  %3950 = vmatprep.subr.bf16.mxu0 0
  %3951 = vmatpush1.bf16.msra.mxu0 %v3926
  %3952 = vmatprep.subr.bf16.mxu0 0
  %3953 = vmatpush1.bf16.msra.mxu0 %v3927
  %3954 = vmatprep.subr.bf16.mxu0 0
  %3955 = vmatpush1.bf16.msra.mxu0 %v3928
  %3956 = vmatprep.subr.bf16.mxu0 0
  %3957 = vmatpush1.bf16.msra.mxu0 %v3929
  %3958 = vmatprep.subr.bf16.mxu0 0
  %3959 = vmatpush1.bf16.msra.mxu0 %v3930
  %3960 = vmatprep.subr.bf16.mxu0 0
  %3961 = vmatpush1.bf16.msra.mxu0 %v3931
  %3962 = vmatprep.subr.bf16.mxu0 0
  %3963 = vmatpush1.bf16.msra.mxu0 %v3932
  %3964 = vmatprep.subr.bf16.mxu0 0
  %3965 = vmatpush1.bf16.msra.mxu0 0
  %3966 = vmatprep.subr.bf16.mxu0 0
  %3967 = vmatpush1.bf16.msra.mxu0 0
  %3968 = vmatprep.subr.bf16.mxu0 0
  %3969 = vmatpush1.bf16.msra.mxu0 0
  %3970 = vmatprep.subr.bf16.mxu0 0
  %3971 = vmatpush1.bf16.msra.mxu0 0
  %3972 = vmatprep.subr.bf16.mxu0 0
  %3973 = vmatpush1.bf16.msra.mxu0 0
  %3974 = vmatprep.subr.bf16.mxu0 0
  %3975 = vmatpush1.bf16.msra.mxu0 0
  %3976 = vmatprep.subr.bf16.mxu0 0
  %3977 = vmatpush1.bf16.msra.mxu0 0
  %3978 = vmatprep.mubr.bf16.mxu0 %v3944
  %3979 = vmatmul.mubr.bf16.gmra.mrb[0].mxu0 %v3853
  %v3980 = vpop.f32.mrb[0].mxu0
  %v3981 = vadd.f32 %v3886, %v3980
  %v3982 = vpop.f32.mrb[0].mxu0
  %v3983 = vpop.f32.mrb[0].mxu0
  %v3984 = vadd.f32 %v3886, %v3983
  %v3985 = vpop.f32.mrb[0].mxu0
  %3986 = vdwg.mxu0
  %s3987 = scalar_lea.vmem %s5, 72
  %v3988 = vld [vmem:[%s3987] sm:$0xf]
  %v3989 = vld [vmem:[%s3987 + $0x4] sm:$0xf]
  %v3990 = vld [vmem:[%s3987 + $0x8] sm:$0xf]
  %v3991 = vld [vmem:[%s3987 + $0xc] sm:$0xf]
  %v3992 = vld [vmem:[%s3987 + $0x10] sm:$0xf]
  %v3993 = vld [vmem:[%s3987 + $0x14] sm:$0xf]
  %v3994 = vld [vmem:[%s3987 + $0x18] sm:$0xf]
  %v3995 = vld [vmem:[%s3987 + $0x1c] sm:$0xf]
  %v3996 = vld [vmem:[%s3987 + $0x20] sm:$0xf]
  %v3997 = vld [vmem:[%s3987 + $0x24] sm:$0xf]
  %v3998 = vld [vmem:[%s3987 + $0x28] sm:$0xf]
  %v3999 = vld [vmem:[%s3987 + $0x2c] sm:$0xf]
  %v4000 = vld [vmem:[%s3987 + $0x30] sm:$0xf]
  %v4001 = vld [vmem:[%s3987 + $0x34] sm:$0xf]
  %v4002 = vld [vmem:[%s3987 + $0x38] sm:$0xf]
  %v4003 = vld [vmem:[%s3987 + $0x3c] sm:$0xf]
  %v4004 = vld [vmem:[%s3987 + $0x40] sm:$0xf]
  %v4005 = vld [vmem:[%s3987 + $0x44] sm:$0xf]
  %v4024 = vunpack.c.l.b16 %v3988
  %v4025 = vunpack.c.l.b16 %v3989
  %v4026 = vunpack.c.l.b16 %v3990
  %v4027 = vunpack.c.l.b16 %v3991
  %v4028 = vunpack.c.l.b16 %v3992
  %v4029 = vunpack.c.l.b16 %v3993
  %v4030 = vunpack.c.l.b16 %v3994
  %v4031 = vunpack.c.l.b16 %v3995
  %v4032 = vunpack.c.l.b16 %v3996
  %v4033 = vunpack.c.l.b16 %v3997
  %v4034 = vunpack.c.l.b16 %v3998
  %v4035 = vunpack.c.l.b16 %v3999
  %v4036 = vunpack.c.l.b16 %v4000
  %v4037 = vunpack.c.l.b16 %v4001
  %v4038 = vunpack.c.l.b16 %v4002
  %v4039 = vunpack.c.l.b16 %v4003
  %v4040 = vunpack.c.l.b16 %v4004
  %v4041 = vunpack.c.l.b16 %v4005
  %v4042 = vpack.c.b16 %v4025, %v4024
  %v4043 = vpack.c.b16 %v4027, %v4026
  %v4044 = vpack.c.b16 %v4029, %v4028
  %v4045 = vpack.c.b16 %v4031, %v4030
  %v4046 = vpack.c.b16 %v4033, %v4032
  %v4047 = vpack.c.b16 %v4035, %v4034
  %v4048 = vpack.c.b16 %v4037, %v4036
  %v4049 = vpack.c.b16 %v4039, %v4038
  %v4050 = vpack.c.b16 %v4041, %v4040
  %v4061 = vsel %vm3942, %v3856, 0
  %4063 = vmatprep.subr.bf16.mxu0 0
  %4064 = vmatpush1.bf16.msra.mxu0 %v4042
  %4065 = vmatprep.subr.bf16.mxu0 0
  %4066 = vmatpush1.bf16.msra.mxu0 %v4043
  %4067 = vmatprep.subr.bf16.mxu0 0
  %4068 = vmatpush1.bf16.msra.mxu0 %v4044
  %4069 = vmatprep.subr.bf16.mxu0 0
  %4070 = vmatpush1.bf16.msra.mxu0 %v4045
  %4071 = vmatprep.subr.bf16.mxu0 0
  %4072 = vmatpush1.bf16.msra.mxu0 %v4046
  %4073 = vmatprep.subr.bf16.mxu0 0
  %4074 = vmatpush1.bf16.msra.mxu0 %v4047
  %4075 = vmatprep.subr.bf16.mxu0 0
  %4076 = vmatpush1.bf16.msra.mxu0 %v4048
  %4077 = vmatprep.subr.bf16.mxu0 0
  %4078 = vmatpush1.bf16.msra.mxu0 %v4049
  %4079 = vmatprep.subr.bf16.mxu0 0
  %4080 = vmatpush1.bf16.msra.mxu0 %v4050
  %4081 = vmatprep.subr.bf16.mxu0 0
  %4082 = vmatpush1.bf16.msra.mxu0 0
  %4083 = vmatprep.subr.bf16.mxu0 0
  %4084 = vmatpush1.bf16.msra.mxu0 0
  %4085 = vmatprep.subr.bf16.mxu0 0
  %4086 = vmatpush1.bf16.msra.mxu0 0
  %4087 = vmatprep.subr.bf16.mxu0 0
  %4088 = vmatpush1.bf16.msra.mxu0 0
  %4089 = vmatprep.subr.bf16.mxu0 0
  %4090 = vmatpush1.bf16.msra.mxu0 0
  %4091 = vmatprep.subr.bf16.mxu0 0
  %4092 = vmatpush1.bf16.msra.mxu0 0
  %4093 = vmatprep.subr.bf16.mxu0 0
  %4094 = vmatpush1.bf16.msra.mxu0 0
  %4095 = vmatprep.mubr.bf16.mxu0 %v4061
  %4096 = vmatmul.mubr.bf16.gmra.mrb[0].mxu0 %v3855
  %v4097 = vpop.f32.mrb[0].mxu0
  %v4098 = vadd.f32 0.0, %v4097
  %v4099 = vpop.f32.mrb[0].mxu0
  %v4100 = vpop.f32.mrb[0].mxu0
  %v4101 = vadd.f32 0.0, %v4100
  %v4102 = vpop.f32.mrb[0].mxu0
  %4103 = vdwg.mxu0
  %v4104 = vadd.f32 %v3981, %v4098
  %v4105 = vadd.f32 %v3984, %v4101
  %s4106 = scalar_lea.vmem %s5, 144
  %v4107 = vld [vmem:[%s4106] sm:$0xf]
  %v4108 = vld [vmem:[%s4106 + $0x4] sm:$0xf]
  %v4109 = vld [vmem:[%s4106 + $0x8] sm:$0xf]
  %v4110 = vld [vmem:[%s4106 + $0xc] sm:$0xf]
  %v4111 = vld [vmem:[%s4106 + $0x10] sm:$0xf]
  %v4112 = vld [vmem:[%s4106 + $0x14] sm:$0xf]
  %v4113 = vld [vmem:[%s4106 + $0x18] sm:$0xf]
  %v4114 = vld [vmem:[%s4106 + $0x1c] sm:$0xf]
  %v4115 = vld [vmem:[%s4106 + $0x20] sm:$0xf]
  %v4116 = vld [vmem:[%s4106 + $0x24] sm:$0xf]
  %v4117 = vld [vmem:[%s4106 + $0x28] sm:$0xf]
  %v4118 = vld [vmem:[%s4106 + $0x2c] sm:$0xf]
  %v4119 = vld [vmem:[%s4106 + $0x30] sm:$0xf]
  %v4120 = vld [vmem:[%s4106 + $0x34] sm:$0xf]
  %v4121 = vld [vmem:[%s4106 + $0x38] sm:$0xf]
  %v4122 = vld [vmem:[%s4106 + $0x3c] sm:$0xf]
  %v4123 = vld [vmem:[%s4106 + $0x40] sm:$0xf]
  %v4124 = vld [vmem:[%s4106 + $0x44] sm:$0xf]
  %v4143 = vunpack.c.l.b16 %v4107
  %v4144 = vunpack.c.l.b16 %v4108
  %v4145 = vunpack.c.l.b16 %v4109
  %v4146 = vunpack.c.l.b16 %v4110
  %v4147 = vunpack.c.l.b16 %v4111
  %v4148 = vunpack.c.l.b16 %v4112
  %v4149 = vunpack.c.l.b16 %v4113
  %v4150 = vunpack.c.l.b16 %v4114
  %v4151 = vunpack.c.l.b16 %v4115
  %v4152 = vunpack.c.l.b16 %v4116
  %v4153 = vunpack.c.l.b16 %v4117
  %v4154 = vunpack.c.l.b16 %v4118
  %v4155 = vunpack.c.l.b16 %v4119
  %v4156 = vunpack.c.l.b16 %v4120
  %v4157 = vunpack.c.l.b16 %v4121
  %v4158 = vunpack.c.l.b16 %v4122
  %v4159 = vunpack.c.l.b16 %v4123
  %v4160 = vunpack.c.l.b16 %v4124
  %v4161 = vpack.c.b16 %v4144, %v4143
  %v4162 = vpack.c.b16 %v4146, %v4145
  %v4163 = vpack.c.b16 %v4148, %v4147
  %v4164 = vpack.c.b16 %v4150, %v4149
  %v4165 = vpack.c.b16 %v4152, %v4151
  %v4166 = vpack.c.b16 %v4154, %v4153
  %v4167 = vpack.c.b16 %v4156, %v4155
  %v4168 = vpack.c.b16 %v4158, %v4157
  %v4169 = vpack.c.b16 %v4160, %v4159
  %v4180 = vsel %vm3942, %v3858, 0
  %4182 = vmatprep.subr.bf16.mxu0 0
  %4183 = vmatpush1.bf16.msra.mxu0 %v4161
  %4184 = vmatprep.subr.bf16.mxu0 0
  %4185 = vmatpush1.bf16.msra.mxu0 %v4162
  %4186 = vmatprep.subr.bf16.mxu0 0
  %4187 = vmatpush1.bf16.msra.mxu0 %v4163
  %4188 = vmatprep.subr.bf16.mxu0 0
  %4189 = vmatpush1.bf16.msra.mxu0 %v4164
  %4190 = vmatprep.subr.bf16.mxu0 0
  %4191 = vmatpush1.bf16.msra.mxu0 %v4165
  %4192 = vmatprep.subr.bf16.mxu0 0
  %4193 = vmatpush1.bf16.msra.mxu0 %v4166
  %4194 = vmatprep.subr.bf16.mxu0 0
  %4195 = vmatpush1.bf16.msra.mxu0 %v4167
  %4196 = vmatprep.subr.bf16.mxu0 0
  %4197 = vmatpush1.bf16.msra.mxu0 %v4168
  %4198 = vmatprep.subr.bf16.mxu0 0
  %4199 = vmatpush1.bf16.msra.mxu0 %v4169
  %4200 = vmatprep.subr.bf16.mxu0 0
  %4201 = vmatpush1.bf16.msra.mxu0 0
  %4202 = vmatprep.subr.bf16.mxu0 0
  %4203 = vmatpush1.bf16.msra.mxu0 0
  %4204 = vmatprep.subr.bf16.mxu0 0
  %4205 = vmatpush1.bf16.msra.mxu0 0
  %4206 = vmatprep.subr.bf16.mxu0 0
  %4207 = vmatpush1.bf16.msra.mxu0 0
  %4208 = vmatprep.subr.bf16.mxu0 0
  %4209 = vmatpush1.bf16.msra.mxu0 0
  %4210 = vmatprep.subr.bf16.mxu0 0
  %4211 = vmatpush1.bf16.msra.mxu0 0
  %4212 = vmatprep.subr.bf16.mxu0 0
  %4213 = vmatpush1.bf16.msra.mxu0 0
  %4214 = vmatprep.mubr.bf16.mxu0 %v4180
  %4215 = vmatmul.mubr.bf16.gmra.mrb[0].mxu0 %v3857
  %v4216 = vpop.f32.mrb[0].mxu0
  %v4217 = vadd.f32 0.0, %v4216
  %v4218 = vpop.f32.mrb[0].mxu0
  %v4219 = vpop.f32.mrb[0].mxu0
  %v4220 = vadd.f32 0.0, %v4219
  %v4221 = vpop.f32.mrb[0].mxu0
  %4222 = vdwg.mxu0
  %v4223 = vadd.f32 %v4104, %v4217
  %v4224 = vadd.f32 %v4105, %v4220
  %s4225 = scalar_lea.vmem %s5, 216
  %v4226 = vld [vmem:[%s4225] sm:$0xf]
  %v4227 = vld [vmem:[%s4225 + $0x4] sm:$0xf]
  %v4228 = vld [vmem:[%s4225 + $0x8] sm:$0xf]
  %v4229 = vld [vmem:[%s4225 + $0xc] sm:$0xf]
  %v4230 = vld [vmem:[%s4225 + $0x10] sm:$0xf]
  %v4231 = vld [vmem:[%s4225 + $0x14] sm:$0xf]
  %v4232 = vld [vmem:[%s4225 + $0x18] sm:$0xf]
  %v4233 = vld [vmem:[%s4225 + $0x1c] sm:$0xf]
  %v4234 = vld [vmem:[%s4225 + $0x20] sm:$0xf]
  %v4235 = vld [vmem:[%s4225 + $0x24] sm:$0xf]
  %v4236 = vld [vmem:[%s4225 + $0x28] sm:$0xf]
  %v4237 = vld [vmem:[%s4225 + $0x2c] sm:$0xf]
  %v4238 = vld [vmem:[%s4225 + $0x30] sm:$0xf]
  %v4239 = vld [vmem:[%s4225 + $0x34] sm:$0xf]
  %v4240 = vld [vmem:[%s4225 + $0x38] sm:$0xf]
  %v4241 = vld [vmem:[%s4225 + $0x3c] sm:$0xf]
  %v4242 = vld [vmem:[%s4225 + $0x40] sm:$0xf]
  %v4243 = vld [vmem:[%s4225 + $0x44] sm:$0xf]
  %v4262 = vunpack.c.l.b16 %v4226
  %v4263 = vunpack.c.l.b16 %v4227
  %v4264 = vunpack.c.l.b16 %v4228
  %v4265 = vunpack.c.l.b16 %v4229
  %v4266 = vunpack.c.l.b16 %v4230
  %v4267 = vunpack.c.l.b16 %v4231
  %v4268 = vunpack.c.l.b16 %v4232
  %v4269 = vunpack.c.l.b16 %v4233
  %v4270 = vunpack.c.l.b16 %v4234
  %v4271 = vunpack.c.l.b16 %v4235
  %v4272 = vunpack.c.l.b16 %v4236
  %v4273 = vunpack.c.l.b16 %v4237
  %v4274 = vunpack.c.l.b16 %v4238
  %v4275 = vunpack.c.l.b16 %v4239
  %v4276 = vunpack.c.l.b16 %v4240
  %v4277 = vunpack.c.l.b16 %v4241
  %v4278 = vunpack.c.l.b16 %v4242
  %v4279 = vunpack.c.l.b16 %v4243
  %v4280 = vpack.c.b16 %v4263, %v4262
  %v4281 = vpack.c.b16 %v4265, %v4264
  %v4282 = vpack.c.b16 %v4267, %v4266
  %v4283 = vpack.c.b16 %v4269, %v4268
  %v4284 = vpack.c.b16 %v4271, %v4270
  %v4285 = vpack.c.b16 %v4273, %v4272
  %v4286 = vpack.c.b16 %v4275, %v4274
  %v4287 = vpack.c.b16 %v4277, %v4276
  %v4288 = vpack.c.b16 %v4279, %v4278
  %v4299 = vsel %vm3942, %v3860, 0
  %4301 = vmatprep.subr.bf16.mxu0 0
  %4302 = vmatpush1.bf16.msra.mxu0 %v4280
  %4303 = vmatprep.subr.bf16.mxu0 0
  %4304 = vmatpush1.bf16.msra.mxu0 %v4281
  %4305 = vmatprep.subr.bf16.mxu0 0
  %4306 = vmatpush1.bf16.msra.mxu0 %v4282
  %4307 = vmatprep.subr.bf16.mxu0 0
  %4308 = vmatpush1.bf16.msra.mxu0 %v4283
  %4309 = vmatprep.subr.bf16.mxu0 0
  %4310 = vmatpush1.bf16.msra.mxu0 %v4284
  %4311 = vmatprep.subr.bf16.mxu0 0
  %4312 = vmatpush1.bf16.msra.mxu0 %v4285
  %4313 = vmatprep.subr.bf16.mxu0 0
  %4314 = vmatpush1.bf16.msra.mxu0 %v4286
  %4315 = vmatprep.subr.bf16.mxu0 0
  %4316 = vmatpush1.bf16.msra.mxu0 %v4287
  %4317 = vmatprep.subr.bf16.mxu0 0
  %4318 = vmatpush1.bf16.msra.mxu0 %v4288
  %4319 = vmatprep.subr.bf16.mxu0 0
  %4320 = vmatpush1.bf16.msra.mxu0 0
  %4321 = vmatprep.subr.bf16.mxu0 0
  %4322 = vmatpush1.bf16.msra.mxu0 0
  %4323 = vmatprep.subr.bf16.mxu0 0
  %4324 = vmatpush1.bf16.msra.mxu0 0
  %4325 = vmatprep.subr.bf16.mxu0 0
  %4326 = vmatpush1.bf16.msra.mxu0 0
  %4327 = vmatprep.subr.bf16.mxu0 0
  %4328 = vmatpush1.bf16.msra.mxu0 0
  %4329 = vmatprep.subr.bf16.mxu0 0
  %4330 = vmatpush1.bf16.msra.mxu0 0
  %4331 = vmatprep.subr.bf16.mxu0 0
  %4332 = vmatpush1.bf16.msra.mxu0 0
  %4333 = vmatprep.mubr.bf16.mxu0 %v4299
  %4334 = vmatmul.mubr.bf16.gmra.mrb[0].mxu0 %v3859
  %v4335 = vpop.f32.mrb[0].mxu0
  %v4336 = vadd.f32 0.0, %v4335
  %v4337 = vpop.f32.mrb[0].mxu0
  %v4338 = vpop.f32.mrb[0].mxu0
  %v4339 = vadd.f32 0.0, %v4338
  %v4340 = vpop.f32.mrb[0].mxu0
  %4341 = vdwg.mxu0
  %v4342 = vadd.f32 %v4223, %v4336
  %v4343 = vadd.f32 %v4224, %v4339
  %s4344 = scalar_lea.vmem %s5, 288
  %v4345 = vld [vmem:[%s4344] sm:$0xf]
  %v4346 = vld [vmem:[%s4344 + $0x4] sm:$0xf]
  %v4347 = vld [vmem:[%s4344 + $0x8] sm:$0xf]
  %v4348 = vld [vmem:[%s4344 + $0xc] sm:$0xf]
  %v4349 = vld [vmem:[%s4344 + $0x10] sm:$0xf]
  %v4350 = vld [vmem:[%s4344 + $0x14] sm:$0xf]
  %v4351 = vld [vmem:[%s4344 + $0x18] sm:$0xf]
  %v4352 = vld [vmem:[%s4344 + $0x1c] sm:$0xf]
  %v4353 = vld [vmem:[%s4344 + $0x20] sm:$0xf]
  %v4354 = vld [vmem:[%s4344 + $0x24] sm:$0xf]
  %v4355 = vld [vmem:[%s4344 + $0x28] sm:$0xf]
  %v4356 = vld [vmem:[%s4344 + $0x2c] sm:$0xf]
  %v4357 = vld [vmem:[%s4344 + $0x30] sm:$0xf]
  %v4358 = vld [vmem:[%s4344 + $0x34] sm:$0xf]
  %v4359 = vld [vmem:[%s4344 + $0x38] sm:$0xf]
  %v4360 = vld [vmem:[%s4344 + $0x3c] sm:$0xf]
  %v4361 = vld [vmem:[%s4344 + $0x40] sm:$0xf]
  %v4362 = vld [vmem:[%s4344 + $0x44] sm:$0xf]
  %v4381 = vunpack.c.l.b16 %v4345
  %v4382 = vunpack.c.l.b16 %v4346
  %v4383 = vunpack.c.l.b16 %v4347
  %v4384 = vunpack.c.l.b16 %v4348
  %v4385 = vunpack.c.l.b16 %v4349
  %v4386 = vunpack.c.l.b16 %v4350
  %v4387 = vunpack.c.l.b16 %v4351
  %v4388 = vunpack.c.l.b16 %v4352
  %v4389 = vunpack.c.l.b16 %v4353
  %v4390 = vunpack.c.l.b16 %v4354
  %v4391 = vunpack.c.l.b16 %v4355
  %v4392 = vunpack.c.l.b16 %v4356
  %v4393 = vunpack.c.l.b16 %v4357
  %v4394 = vunpack.c.l.b16 %v4358
  %v4395 = vunpack.c.l.b16 %v4359
  %v4396 = vunpack.c.l.b16 %v4360
  %v4397 = vunpack.c.l.b16 %v4361
  %v4398 = vunpack.c.l.b16 %v4362
  %v4399 = vpack.c.b16 %v4382, %v4381
  %v4400 = vpack.c.b16 %v4384, %v4383
  %v4401 = vpack.c.b16 %v4386, %v4385
  %v4402 = vpack.c.b16 %v4388, %v4387
  %v4403 = vpack.c.b16 %v4390, %v4389
  %v4404 = vpack.c.b16 %v4392, %v4391
  %v4405 = vpack.c.b16 %v4394, %v4393
  %v4406 = vpack.c.b16 %v4396, %v4395
  %v4407 = vpack.c.b16 %v4398, %v4397
  %v4418 = vsel %vm3942, %v3862, 0
  %4420 = vmatprep.subr.bf16.mxu0 0
  %4421 = vmatpush1.bf16.msra.mxu0 %v4399
  %4422 = vmatprep.subr.bf16.mxu0 0
  %4423 = vmatpush1.bf16.msra.mxu0 %v4400
  %4424 = vmatprep.subr.bf16.mxu0 0
  %4425 = vmatpush1.bf16.msra.mxu0 %v4401
  %4426 = vmatprep.subr.bf16.mxu0 0
  %4427 = vmatpush1.bf16.msra.mxu0 %v4402
  %4428 = vmatprep.subr.bf16.mxu0 0
  %4429 = vmatpush1.bf16.msra.mxu0 %v4403
  %4430 = vmatprep.subr.bf16.mxu0 0
  %4431 = vmatpush1.bf16.msra.mxu0 %v4404
  %4432 = vmatprep.subr.bf16.mxu0 0
  %4433 = vmatpush1.bf16.msra.mxu0 %v4405
  %4434 = vmatprep.subr.bf16.mxu0 0
  %4435 = vmatpush1.bf16.msra.mxu0 %v4406
  %4436 = vmatprep.subr.bf16.mxu0 0
  %4437 = vmatpush1.bf16.msra.mxu0 %v4407
  %4438 = vmatprep.subr.bf16.mxu0 0
  %4439 = vmatpush1.bf16.msra.mxu0 0
  %4440 = vmatprep.subr.bf16.mxu0 0
  %4441 = vmatpush1.bf16.msra.mxu0 0
  %4442 = vmatprep.subr.bf16.mxu0 0
  %4443 = vmatpush1.bf16.msra.mxu0 0
  %4444 = vmatprep.subr.bf16.mxu0 0
  %4445 = vmatpush1.bf16.msra.mxu0 0
  %4446 = vmatprep.subr.bf16.mxu0 0
  %4447 = vmatpush1.bf16.msra.mxu0 0
  %4448 = vmatprep.subr.bf16.mxu0 0
  %4449 = vmatpush1.bf16.msra.mxu0 0
  %4450 = vmatprep.subr.bf16.mxu0 0
  %4451 = vmatpush1.bf16.msra.mxu0 0
  %4452 = vmatprep.mubr.bf16.mxu0 %v4418
  %4453 = vmatmul.mubr.bf16.gmra.mrb[0].mxu0 %v3861
  %v4454 = vpop.f32.mrb[0].mxu0
  %v4455 = vadd.f32 0.0, %v4454
  %v4456 = vpop.f32.mrb[0].mxu0
  %v4457 = vpop.f32.mrb[0].mxu0
  %v4458 = vadd.f32 0.0, %v4457
  %v4459 = vpop.f32.mrb[0].mxu0
  %4460 = vdwg.mxu0
  %v4461 = vadd.f32 %v4342, %v4455
  %v4462 = vadd.f32 %v4343, %v4458
  %v4463 = vmax.f32 %v4461, 0.0
  %v4464 = vmax.f32 %v4462, 0.0
  %v4465 = vpack.c.bf16 %v4464, %v4463
  %v4466 = vld [vmem:[%s7] sm:$0xf]
  %v4467 = vld [vmem:[%s7 + $0x4] sm:$0xf]
  %v4468 = vld [vmem:[%s7 + $0x8] sm:$0xf]
  %v4469 = vld [vmem:[%s7 + $0xc] sm:$0xf]
  %v4470 = vld [vmem:[%s7 + $0x10] sm:$0xf]
  %v4471 = vld [vmem:[%s7 + $0x14] sm:$0xf]
  %v4472 = vld [vmem:[%s7 + $0x18] sm:$0xf]
  %v4473 = vld [vmem:[%s7 + $0x1c] sm:$0xf]
  %v4474 = vld [vmem:[%s7 + $0x20] sm:$0xf]
  %v4475 = vld [vmem:[%s7 + $0x24] sm:$0xf]
  %v4476 = vld [vmem:[%s7 + $0x28] sm:$0xf]
  %v4477 = vld [vmem:[%s7 + $0x2c] sm:$0xf]
  %v4478 = vld [vmem:[%s7 + $0x30] sm:$0xf]
  %v4479 = vld [vmem:[%s7 + $0x34] sm:$0xf]
  %v4480 = vld [vmem:[%s7 + $0x38] sm:$0xf]
  %v4481 = vld [vmem:[%s7 + $0x3c] sm:$0xf]
  %v4482 = vld [vmem:[%s8] sm:$0x1]
  %v4484 = vlaneseq
  %v4485 = vshrl.u32 %v4484, 7
  %v4486 = vsub.s32 0, %v4485
  %v4487 = vrot.slane %v4482, %v4486
  %v4505 = vunpack.c.l.b16 %v4466
  %v4506 = vunpack.c.l.b16 %v4467
  %v4507 = vunpack.c.l.b16 %v4468
  %v4508 = vunpack.c.l.b16 %v4469
  %v4509 = vunpack.c.l.b16 %v4470
  %v4510 = vunpack.c.l.b16 %v4471
  %v4511 = vunpack.c.l.b16 %v4472
  %v4512 = vunpack.c.l.b16 %v4473
  %v4513 = vunpack.c.l.b16 %v4474
  %v4514 = vunpack.c.l.b16 %v4475
  %v4515 = vunpack.c.l.b16 %v4476
  %v4516 = vunpack.c.l.b16 %v4477
  %v4517 = vunpack.c.l.b16 %v4478
  %v4518 = vunpack.c.l.b16 %v4479
  %v4519 = vunpack.c.l.b16 %v4480
  %v4520 = vunpack.c.l.b16 %v4481
  %v4521 = vpack.c.b16 %v4506, %v4505
  %v4522 = vpack.c.b16 %v4508, %v4507
  %v4523 = vpack.c.b16 %v4510, %v4509
  %v4524 = vpack.c.b16 %v4512, %v4511
  %v4525 = vpack.c.b16 %v4514, %v4513
  %v4526 = vpack.c.b16 %v4516, %v4515
  %v4527 = vpack.c.b16 %v4518, %v4517
  %v4528 = vpack.c.b16 %v4520, %v4519
  %4537 = vmatprep.subr.bf16.mxu0 0
  %4538 = vmatpush1.bf16.msra.mxu0 %v4521
  %4539 = vmatprep.subr.bf16.mxu0 0
  %4540 = vmatpush1.bf16.msra.mxu0 %v4522
  %4541 = vmatprep.subr.bf16.mxu0 0
  %4542 = vmatpush1.bf16.msra.mxu0 %v4523
  %4543 = vmatprep.subr.bf16.mxu0 0
  %4544 = vmatpush1.bf16.msra.mxu0 %v4524
  %4545 = vmatprep.subr.bf16.mxu0 0
  %4546 = vmatpush1.bf16.msra.mxu0 %v4525
  %4547 = vmatprep.subr.bf16.mxu0 0
  %4548 = vmatpush1.bf16.msra.mxu0 %v4526
  %4549 = vmatprep.subr.bf16.mxu0 0
  %4550 = vmatpush1.bf16.msra.mxu0 %v4527
  %4551 = vmatprep.subr.bf16.mxu0 0
  %4552 = vmatpush1.bf16.msra.mxu0 %v4528
  %4553 = vmatprep.subr.bf16.mxu0 0
  %4554 = vmatpush1.bf16.msra.mxu0 0
  %4555 = vmatprep.subr.bf16.mxu0 0
  %4556 = vmatpush1.bf16.msra.mxu0 0
  %4557 = vmatprep.subr.bf16.mxu0 0
  %4558 = vmatpush1.bf16.msra.mxu0 0
  %4559 = vmatprep.subr.bf16.mxu0 0
  %4560 = vmatpush1.bf16.msra.mxu0 0
  %4561 = vmatprep.subr.bf16.mxu0 0
  %4562 = vmatpush1.bf16.msra.mxu0 0
  %4563 = vmatprep.subr.bf16.mxu0 0
  %4564 = vmatpush1.bf16.msra.mxu0 0
  %4565 = vmatprep.subr.bf16.mxu0 0
  %4566 = vmatpush1.bf16.msra.mxu0 0
  %4567 = vmatprep.subr.bf16.mxu0 0
  %4568 = vmatpush1.bf16.msra.mxu0 0
  %4569 = vmatprep.mubr.bf16.mxu0 0
  %4570 = vmatmul.mubr.bf16.gmra.mrb[0].mxu0 %v4465
  %v4571 = vpop.f32.mrb[0].mxu0
  %v4572 = vadd.f32 %v4487, %v4571
  %v4573 = vpop.f32.mrb[0].mxu0
  %v4574 = vpop.f32.mrb[0].mxu0
  %v4575 = vadd.f32 %v4487, %v4574
  %v4576 = vpop.f32.mrb[0].mxu0
  %4577 = vdwg.mxu0
  %v4578 = vmax.f32 %v4572, 0.0
  %v4579 = vmax.f32 %v4575, 0.0
  %v4580 = vpack.c.bf16 %v4579, %v4578
  %v4581 = vld [vmem:[%s9] sm:$0xf]
  %v4582 = vld [vmem:[%s9 + $0x4] sm:$0xf]
  %v4583 = vld [vmem:[%s9 + $0x8] sm:$0xf]
  %v4584 = vld [vmem:[%s9 + $0xc] sm:$0xf]
  %v4585 = vld [vmem:[%s9 + $0x10] sm:$0xf]
  %v4586 = vld [vmem:[%s9 + $0x14] sm:$0xf]
  %v4587 = vld [vmem:[%s9 + $0x18] sm:$0xf]
  %v4588 = vld [vmem:[%s9 + $0x1c] sm:$0xf]
  %v4589 = vld [vmem:[%s9 + $0x20] sm:$0xf]
  %v4590 = vld [vmem:[%s9 + $0x24] sm:$0xf]
  %v4591 = vld [vmem:[%s9 + $0x28] sm:$0xf]
  %v4592 = vld [vmem:[%s9 + $0x2c] sm:$0xf]
  %v4593 = vld [vmem:[%s9 + $0x30] sm:$0xf]
  %v4594 = vld [vmem:[%s9 + $0x34] sm:$0xf]
  %v4595 = vld [vmem:[%s9 + $0x38] sm:$0xf]
  %v4596 = vld [vmem:[%s9 + $0x3c] sm:$0xf]
  %v4597 = vld [vmem:[%s10] sm:$0x1]
  %v4599 = vlaneseq
  %v4600 = vshrl.u32 %v4599, 7
  %v4601 = vsub.s32 0, %v4600
  %v4602 = vrot.slane %v4597, %v4601
  %v4620 = vunpack.c.l.b16 %v4581
  %v4621 = vunpack.c.l.b16 %v4582
  %v4622 = vunpack.c.l.b16 %v4583
  %v4623 = vunpack.c.l.b16 %v4584
  %v4624 = vunpack.c.l.b16 %v4585
  %v4625 = vunpack.c.l.b16 %v4586
  %v4626 = vunpack.c.l.b16 %v4587
  %v4627 = vunpack.c.l.b16 %v4588
  %v4628 = vunpack.c.l.b16 %v4589
  %v4629 = vunpack.c.l.b16 %v4590
  %v4630 = vunpack.c.l.b16 %v4591
  %v4631 = vunpack.c.l.b16 %v4592
  %v4632 = vunpack.c.l.b16 %v4593
  %v4633 = vunpack.c.l.b16 %v4594
  %v4634 = vunpack.c.l.b16 %v4595
  %v4635 = vunpack.c.l.b16 %v4596
  %v4636 = vpack.c.b16 %v4621, %v4620
  %v4637 = vpack.c.b16 %v4623, %v4622
  %v4638 = vpack.c.b16 %v4625, %v4624
  %v4639 = vpack.c.b16 %v4627, %v4626
  %v4640 = vpack.c.b16 %v4629, %v4628
  %v4641 = vpack.c.b16 %v4631, %v4630
  %v4642 = vpack.c.b16 %v4633, %v4632
  %v4643 = vpack.c.b16 %v4635, %v4634
  %4652 = vmatprep.subr.bf16.mxu0 0
  %4653 = vmatpush1.bf16.msra.mxu0 %v4636
  %4654 = vmatprep.subr.bf16.mxu0 0
  %4655 = vmatpush1.bf16.msra.mxu0 %v4637
  %4656 = vmatprep.subr.bf16.mxu0 0
  %4657 = vmatpush1.bf16.msra.mxu0 %v4638
  %4658 = vmatprep.subr.bf16.mxu0 0
  %4659 = vmatpush1.bf16.msra.mxu0 %v4639
  %4660 = vmatprep.subr.bf16.mxu0 0
  %4661 = vmatpush1.bf16.msra.mxu0 %v4640
  %4662 = vmatprep.subr.bf16.mxu0 0
  %4663 = vmatpush1.bf16.msra.mxu0 %v4641
  %4664 = vmatprep.subr.bf16.mxu0 0
  %4665 = vmatpush1.bf16.msra.mxu0 %v4642
  %4666 = vmatprep.subr.bf16.mxu0 0
  %4667 = vmatpush1.bf16.msra.mxu0 %v4643
  %4668 = vmatprep.subr.bf16.mxu0 0
  %4669 = vmatpush1.bf16.msra.mxu0 0
  %4670 = vmatprep.subr.bf16.mxu0 0
  %4671 = vmatpush1.bf16.msra.mxu0 0
  %4672 = vmatprep.subr.bf16.mxu0 0
  %4673 = vmatpush1.bf16.msra.mxu0 0
  %4674 = vmatprep.subr.bf16.mxu0 0
  %4675 = vmatpush1.bf16.msra.mxu0 0
  %4676 = vmatprep.subr.bf16.mxu0 0
  %4677 = vmatpush1.bf16.msra.mxu0 0
  %4678 = vmatprep.subr.bf16.mxu0 0
  %4679 = vmatpush1.bf16.msra.mxu0 0
  %4680 = vmatprep.subr.bf16.mxu0 0
  %4681 = vmatpush1.bf16.msra.mxu0 0
  %4682 = vmatprep.subr.bf16.mxu0 0
  %4683 = vmatpush1.bf16.msra.mxu0 0
  %4684 = vmatprep.mubr.bf16.mxu0 0
  %4685 = vmatmul.mubr.bf16.gmra.mrb[0].mxu0 %v4580
  %v4686 = vpop.f32.mrb[0].mxu0
  %v4687 = vadd.f32 %v4602, %v4686
  %v4688 = vpop.f32.mrb[0].mxu0
  %v4689 = vpop.f32.mrb[0].mxu0
  %v4690 = vadd.f32 %v4602, %v4689
  %v4691 = vpop.f32.mrb[0].mxu0
  %4692 = vdwg.mxu0
  %4693 = vst [vmem:[%s11] sm:$0xff] %v4687
  %4694 = vst [vmem:[%s11 + $0x8] sm:$0xff] %v4690
  // Predicated region
  $region46: #{lenet5_forward.1} parent=0 // pred_check
    _
  $region47: #{lenet5_forward.1} parent=0 // pred_check_branch
    %4696 = sbr.rel (0) target = $region49
  $region48: #{lenet5_forward.1} parent=0 // pred_region
    _
  $region49: #{lenet5_forward.1} parent=0 // pred_fallthru
    _
  // Predicated region
  $region50: #{lenet5_forward.1} parent=0 // pred_check
    _
  $region51: #{lenet5_forward.1} parent=0 // pred_check_branch
    %4698 = sbr.rel (0) target = $region53
  $region52: #{lenet5_forward.1} parent=0 // pred_region
    _
  $region53: #{lenet5_forward.1} parent=0 // pred_fallthru
    _

</llo_original>
